<compile_context>
chip_gen: v7x
topology: tpu7x:2x2x1
jax: 0.10.0
libtpu: 0.0.40
codegen_flags: <defaults>
</compile_context>

<pallas_src>
import jax
import jax.numpy as jnp
import numpy as np
from jax import lax
from jax.experimental import pallas as pl
from jax.experimental.pallas import tpu as pltpu

# Static geometry implied by the torch module (fc1 expects 16 * 7 * 7).
H1, W1, C0, C1 = 28, 28, 3, 6       # conv1: 3 -> 6 channels on 28x28
H2, W2, C2 = 14, 14, 16             # conv2: 6 -> 16 channels on 14x14
H3, W3 = 7, 7                       # after the second 2x2 pool
NCLS = 10


# ----------------------------- fused Pallas kernel -----------------------------

def fused_cnn_kernel(x_ref, bd1_ref, b1t_ref, rs1_ref, cs1_ref,
                     bd2_ref, b2t_ref, rs2_ref, cs2_ref,
                     wfc_ref, bfc_ref, o_ref, p1pad_ref, p2_ref):
    f32 = jnp.float32

    # ---- conv1 (3x3, pad 1, 3->6) + bias + ReLU;  y1: (28, 28*6) ----
    y1 = None
    for t in range(9):
        dy, dx = divmod(t, 3)
        patch = x_ref[0, dy:dy + H1, C0 * dx:C0 * dx + W1 * C0]      # (28, 84)
        part = jnp.dot(patch, bd1_ref[t], preferred_element_type=f32)
        y1 = part if y1 is None else y1 + part
    y1 = jnp.maximum(y1 + b1t_ref[...], 0.0)                         # (28, 168)

    # ---- maxpool 2x2 fused with the zero padding conv2 needs; (16, 16*6) ----
    r1 = jnp.maximum(jnp.dot(rs1_ref[0], y1, preferred_element_type=f32),
                     jnp.dot(rs1_ref[1], y1, preferred_element_type=f32))
    p1pad_ref[...] = jnp.maximum(
        jnp.dot(r1, cs1_ref[0], preferred_element_type=f32),
        jnp.dot(r1, cs1_ref[1], preferred_element_type=f32))

    # ---- conv2 (3x3, pad 1, 6->16) + bias + ReLU;  y2: (14, 14*16) ----
    y2 = None
    for t in range(9):
        dy, dx = divmod(t, 3)
        patch = p1pad_ref[dy:dy + H2, C1 * dx:C1 * dx + W2 * C1]     # (14, 84)
        part = jnp.dot(patch, bd2_ref[t], preferred_element_type=f32)
        y2 = part if y2 is None else y2 + part
    y2 = jnp.maximum(y2 + b2t_ref[...], 0.0)                         # (14, 224)

    # ---- maxpool 2x2;  p2: (7, 7*16), kept in VMEM ----
    r2 = jnp.maximum(jnp.dot(rs2_ref[0], y2, preferred_element_type=f32),
                     jnp.dot(rs2_ref[1], y2, preferred_element_type=f32))
    p2_ref[...] = jnp.maximum(
        jnp.dot(r2, cs2_ref[0], preferred_element_type=f32),
        jnp.dot(r2, cs2_ref[1], preferred_element_type=f32))

    # ---- fc1: contract the 7 row-blocks of the flattened feature map ----
    acc = None
    for h in range(H3):
        part = jnp.dot(p2_ref[h:h + 1, :], wfc_ref[h],
                       preferred_element_type=f32)
        acc = part if acc is None else acc + part
    o_ref[0] = (acc + bfc_ref[...]).astype(o_ref.dtype)              # (1, 10)


# ------------------------------- Pallas wrapper --------------------------------

def _const_spec(shape):
    """Full-array block whose index never changes (DMA'd once, not per step)."""
    return pl.BlockSpec(tuple(shape), lambda *_: (0,) * len(shape))


def fused_cnn(xp2, bd1, b1t, rs1, cs1, bd2, b2t, rs2, cs2, wfc3, bfc2):
    n = xp2.shape[0]
    out = pl.pallas_call(
        fused_cnn_kernel,
        out_shape=jax.ShapeDtypeStruct((n, 1, NCLS), jnp.float32),
        grid=(n,),
        in_specs=[
            pl.BlockSpec((1, H1 + 2, (W1 + 2) * C0), lambda i: (i, 0, 0)),
            _const_spec(bd1.shape), _const_spec(b1t.shape),
            _const_spec(rs1.shape), _const_spec(cs1.shape),
            _const_spec(bd2.shape), _const_spec(b2t.shape),
            _const_spec(rs2.shape), _const_spec(cs2.shape),
            _const_spec(wfc3.shape), _const_spec(bfc2.shape),
        ],
        out_specs=pl.BlockSpec((1, 1, NCLS), lambda i: (i, 0, 0)),
        scratch_shapes=[
            pltpu.VMEM((H2 + 2, (W2 + 2) * C1), jnp.float32),   # padded pool1 out
            pltpu.VMEM((H3, W3 * C2), jnp.float32),             # pool2 / fc feat
        ],
        compiler_params=pltpu.CompilerParams(
            dimension_semantics=("parallel",)),
    )(xp2, bd1, b1t, rs1, cs1, bd2, b2t, rs2, cs2, wfc3, bfc2)
    return out[:, 0, :]


# --------------------------- host-side constant prep ---------------------------

def _pool_row_select(h_out, pad):
    """(2, h_out+2*pad, 2*h_out) 0/1 matrices picking even/odd input rows
    (rows outside the valid band are all-zero => output row padding)."""
    m = np.zeros((2, h_out + 2 * pad, 2 * h_out), np.float32)
    for r in range(h_out):
        m[0, pad + r, 2 * r] = 1.0
        m[1, pad + r, 2 * r + 1] = 1.0
    return m


def _pool_col_select(w_out, c, pad):
    """(2, 2*w_out*c, (w_out+2*pad)*c) 0/1 matrices picking the even/odd W
    column groups of the (H, W*C) layout (all-zero output columns give the
    zero padding needed by the following convolution)."""
    m = np.zeros((2, 2 * w_out * c, (w_out + 2 * pad) * c), np.float32)
    for w in range(w_out):
        for cc in range(c):
            m[0, (2 * w) * c + cc, (pad + w) * c + cc] = 1.0
            m[1, (2 * w + 1) * c + cc, (pad + w) * c + cc] = 1.0
    return m


_RS1 = _pool_row_select(H2, pad=1)          # (2, 16, 28)
_CS1 = _pool_col_select(W2, C1, pad=1)      # (2, 168, 96)
_RS2 = _pool_row_select(H3, pad=0)          # (2, 7, 14)
_CS2 = _pool_col_select(W3, C2, pad=0)      # (2, 224, 112)


def _conv_weight_blockdiag(w, width):
    """torch (Co, Ci, 3, 3) -> (9, width*Ci, width*Co) block-diagonal matrices
    so a shifted (H, width*Ci) row-slab @ this equals that conv tap's output in
    the (H, width*Co) layout."""
    co, ci = w.shape[0], w.shape[1]
    taps = jnp.transpose(w, (2, 3, 1, 0)).reshape(9, ci, co)     # (tap, ci, co)
    eye = jnp.eye(width, dtype=w.dtype)
    bd = jnp.einsum('wv,tio->twivo', eye, taps)
    return bd.reshape(9, width * ci, width * co)


# --------------------------------- full forward --------------------------------

@jax.jit
def cnn_forward(x_nchw, params):
    n = x_nchw.shape[0]
    x = jnp.transpose(x_nchw, (0, 2, 3, 1)).astype(jnp.float32)         # NHWC
    xp2 = jnp.pad(x, ((0, 0), (1, 1), (1, 1), (0, 0)))                  # SAME pad
    xp2 = xp2.reshape(n, H1 + 2, (W1 + 2) * C0)                         # (N,30,90)

    bd1 = _conv_weight_blockdiag(params["w1"], W1)                      # (9,84,168)
    bd2 = _conv_weight_blockdiag(params["w2"], W2)                      # (9,84,224)
    b1t = jnp.tile(params["b1"], W1)[None, :]                           # (1,168)
    b2t = jnp.tile(params["b2"], W2)[None, :]                           # (1,224)
    # fc1 weight permuted so the in-kernel (h, w*16 + c) layout reproduces
    # torch's x.reshape(N, -1) CHW flatten order exactly.
    wfc3 = jnp.transpose(params["wfc"].reshape(NCLS, C2, H3, W3),
                         (2, 3, 1, 0)).reshape(H3, W3 * C2, NCLS)       # (7,112,10)
    bfc2 = params["bfc"][None, :]                                       # (1,10)

    return fused_cnn(xp2, bd1, b1t, jnp.asarray(_RS1), jnp.asarray(_CS1),
                     bd2, b2t, jnp.asarray(_RS2), jnp.asarray(_CS2),
                     wfc3, bfc2)


# ------------------------------ pure-JAX reference ------------------------------

def reference_forward(x_nchw, params):
    x = jnp.transpose(x_nchw, (0, 2, 3, 1))
    dn = ("NHWC", "HWIO", "NHWC")

    def conv(x, w, b):
        w_hwio = jnp.transpose(w, (2, 3, 1, 0))
        y = lax.conv_general_dilated(x, w_hwio, (1, 1), "SAME",
                                     dimension_numbers=dn)
        return jnp.maximum(y + b[None, None, None, :], 0.0)

    def pool(x):
        return lax.reduce_window(x, -jnp.inf, lax.max,
                                 (1, 2, 2, 1), (1, 2, 2, 1), "VALID")

    h = pool(conv(x, params["w1"], params["b1"]))
    h = pool(conv(h, params["w2"], params["b2"]))
    feat = jnp.transpose(h, (0, 3, 1, 2)).reshape(x.shape[0], -1)
    return feat @ params["wfc"].T + params["bfc"][None, :]


# ------------------------------------- main -------------------------------------

if __name__ == "__main__":
    key = jax.random.PRNGKey(0)
    ks = jax.random.split(key, 7)
    N = 2
    # forward implies 28x28 spatial (fc1 expects 16*7*7 features)
    x = jax.random.normal(ks[0], (N, 3, 28, 28), jnp.float32)

    params = {
        "w1": jax.random.normal(ks[1], (6, 3, 3, 3), jnp.float32) * 0.1,
        "b1": jax.random.normal(ks[2], (6,), jnp.float32) * 0.1,
        "w2": jax.random.normal(ks[3], (16, 6, 3, 3), jnp.float32) * 0.1,
        "b2": jax.random.normal(ks[4], (16,), jnp.float32) * 0.1,
        "wfc": jax.random.normal(ks[5], (10, 16 * 7 * 7), jnp.float32) * 0.05,
        "bfc": jax.random.normal(ks[6], (10,), jnp.float32) * 0.05,
    }

    out = jax.block_until_ready(cnn_forward(x, params))
    ref = jax.block_until_ready(reference_forward(x, params))

    assert out.shape == (N, 10)
    np.testing.assert_allclose(np.asarray(out), np.asarray(ref),
                               rtol=2e-4, atol=2e-4)
    print("KERNEL_OK")
</pallas_src>

<mosaic_0001>
module attributes {stable_mosaic.version = 11 : i64} {
  func.func @fused_cnn_kernel(%arg0: i32, %arg1: memref<1x30x90xf32, #tpu.memory_space<vmem>>, %arg2: memref<9x84x168xf32, #tpu.memory_space<vmem>>, %arg3: memref<1x168xf32, #tpu.memory_space<vmem>>, %arg4: memref<2x16x28xf32, #tpu.memory_space<vmem>>, %arg5: memref<2x168x96xf32, #tpu.memory_space<vmem>>, %arg6: memref<9x84x224xf32, #tpu.memory_space<vmem>>, %arg7: memref<1x224xf32, #tpu.memory_space<vmem>>, %arg8: memref<2x7x14xf32, #tpu.memory_space<vmem>>, %arg9: memref<2x224x112xf32, #tpu.memory_space<vmem>>, %arg10: memref<7x112x10xf32, #tpu.memory_space<vmem>>, %arg11: memref<1x10xf32, #tpu.memory_space<vmem>>, %arg12: memref<1x1x10xf32, #tpu.memory_space<vmem>>, %arg13: memref<16x96xf32, #tpu.memory_space<vmem>>, %arg14: memref<7x112xf32, #tpu.memory_space<vmem>>) attributes {dimension_semantics = [#tpu.dimension_semantics<parallel>], iteration_bounds = array<i64: 2>, scalar_prefetch = 0 : i64, scratch_operands = 2 : i64, tpu.core_type = #tpu.core_type<tc>, window_params = [{transform_indices = @transform_0, window_bounds = array<i64: 1, 30, 90>}, {pipeline_mode = #tpu.pipeline_mode<synchronous>, transform_indices = @transform_1, window_bounds = array<i64: 9, 84, 168>}, {pipeline_mode = #tpu.pipeline_mode<synchronous>, transform_indices = @transform_2, window_bounds = array<i64: 1, 168>}, {pipeline_mode = #tpu.pipeline_mode<synchronous>, transform_indices = @transform_3, window_bounds = array<i64: 2, 16, 28>}, {pipeline_mode = #tpu.pipeline_mode<synchronous>, transform_indices = @transform_4, window_bounds = array<i64: 2, 168, 96>}, {pipeline_mode = #tpu.pipeline_mode<synchronous>, transform_indices = @transform_5, window_bounds = array<i64: 9, 84, 224>}, {pipeline_mode = #tpu.pipeline_mode<synchronous>, transform_indices = @transform_6, window_bounds = array<i64: 1, 224>}, {pipeline_mode = #tpu.pipeline_mode<synchronous>, transform_indices = @transform_7, window_bounds = array<i64: 2, 7, 14>}, {pipeline_mode = #tpu.pipeline_mode<synchronous>, transform_indices = @transform_8, window_bounds = array<i64: 2, 224, 112>}, {pipeline_mode = #tpu.pipeline_mode<synchronous>, transform_indices = @transform_9, window_bounds = array<i64: 7, 112, 10>}, {pipeline_mode = #tpu.pipeline_mode<synchronous>, transform_indices = @transform_10, window_bounds = array<i64: 1, 10>}, {transform_indices = @transform_11, window_bounds = array<i64: 1, 1, 10>}]} {
    %c0 = arith.constant 0 : index
    %c0_0 = arith.constant 0 : index
    %c0_1 = arith.constant 0 : index
    %0 = vector.load %arg1[%c0, %c0_0, %c0_1] : memref<1x30x90xf32, #tpu.memory_space<vmem>>, vector<1x28x84xf32>
    %1 = vector.shape_cast %0 : vector<1x28x84xf32> to vector<28x84xf32>
    %c0_2 = arith.constant 0 : index
    %c0_3 = arith.constant 0 : index
    %c0_4 = arith.constant 0 : index
    %2 = vector.load %arg2[%c0_2, %c0_3, %c0_4] : memref<9x84x168xf32, #tpu.memory_space<vmem>>, vector<1x84x168xf32>
    %3 = vector.shape_cast %2 : vector<1x84x168xf32> to vector<84x168xf32>
    %cst = arith.constant dense<0.000000e+00> : vector<28x168xf32>
    %4 = tpu.matmul %1, %3, %cst {dimension_numbers = #tpu.dot_dimension_numbers<[1], [0], [0], [1], [0, 0, 1, 1], [], []>} : vector<28x84xf32>, vector<84x168xf32>, vector<28x168xf32> -> vector<28x168xf32>
    %c0_5 = arith.constant 0 : index
    %c0_6 = arith.constant 0 : index
    %c3 = arith.constant 3 : index
    %5 = vector.load %arg1[%c0_5, %c0_6, %c3] : memref<1x30x90xf32, #tpu.memory_space<vmem>>, vector<1x28x84xf32>
    %6 = vector.shape_cast %5 : vector<1x28x84xf32> to vector<28x84xf32>
    %c1 = arith.constant 1 : index
    %c0_7 = arith.constant 0 : index
    %c0_8 = arith.constant 0 : index
    %7 = vector.load %arg2[%c1, %c0_7, %c0_8] : memref<9x84x168xf32, #tpu.memory_space<vmem>>, vector<1x84x168xf32>
    %8 = vector.shape_cast %7 : vector<1x84x168xf32> to vector<84x168xf32>
    %cst_9 = arith.constant dense<0.000000e+00> : vector<28x168xf32>
    %9 = tpu.matmul %6, %8, %cst_9 {dimension_numbers = #tpu.dot_dimension_numbers<[1], [0], [0], [1], [0, 0, 1, 1], [], []>} : vector<28x84xf32>, vector<84x168xf32>, vector<28x168xf32> -> vector<28x168xf32>
    %10 = arith.addf %4, %9 : vector<28x168xf32>
    %c0_10 = arith.constant 0 : index
    %c0_11 = arith.constant 0 : index
    %c6 = arith.constant 6 : index
    %11 = vector.load %arg1[%c0_10, %c0_11, %c6] : memref<1x30x90xf32, #tpu.memory_space<vmem>>, vector<1x28x84xf32>
    %12 = vector.shape_cast %11 : vector<1x28x84xf32> to vector<28x84xf32>
    %c2 = arith.constant 2 : index
    %c0_12 = arith.constant 0 : index
    %c0_13 = arith.constant 0 : index
    %13 = vector.load %arg2[%c2, %c0_12, %c0_13] : memref<9x84x168xf32, #tpu.memory_space<vmem>>, vector<1x84x168xf32>
    %14 = vector.shape_cast %13 : vector<1x84x168xf32> to vector<84x168xf32>
    %cst_14 = arith.constant dense<0.000000e+00> : vector<28x168xf32>
    %15 = tpu.matmul %12, %14, %cst_14 {dimension_numbers = #tpu.dot_dimension_numbers<[1], [0], [0], [1], [0, 0, 1, 1], [], []>} : vector<28x84xf32>, vector<84x168xf32>, vector<28x168xf32> -> vector<28x168xf32>
    %16 = arith.addf %10, %15 : vector<28x168xf32>
    %c0_15 = arith.constant 0 : index
    %c1_16 = arith.constant 1 : index
    %c0_17 = arith.constant 0 : index
    %17 = vector.load %arg1[%c0_15, %c1_16, %c0_17] : memref<1x30x90xf32, #tpu.memory_space<vmem>>, vector<1x28x84xf32>
    %18 = vector.shape_cast %17 : vector<1x28x84xf32> to vector<28x84xf32>
    %c3_18 = arith.constant 3 : index
    %c0_19 = arith.constant 0 : index
    %c0_20 = arith.constant 0 : index
    %19 = vector.load %arg2[%c3_18, %c0_19, %c0_20] : memref<9x84x168xf32, #tpu.memory_space<vmem>>, vector<1x84x168xf32>
    %20 = vector.shape_cast %19 : vector<1x84x168xf32> to vector<84x168xf32>
    %cst_21 = arith.constant dense<0.000000e+00> : vector<28x168xf32>
    %21 = tpu.matmul %18, %20, %cst_21 {dimension_numbers = #tpu.dot_dimension_numbers<[1], [0], [0], [1], [0, 0, 1, 1], [], []>} : vector<28x84xf32>, vector<84x168xf32>, vector<28x168xf32> -> vector<28x168xf32>
    %22 = arith.addf %16, %21 : vector<28x168xf32>
    %c0_22 = arith.constant 0 : index
    %c1_23 = arith.constant 1 : index
    %c3_24 = arith.constant 3 : index
    %23 = vector.load %arg1[%c0_22, %c1_23, %c3_24] : memref<1x30x90xf32, #tpu.memory_space<vmem>>, vector<1x28x84xf32>
    %24 = vector.shape_cast %23 : vector<1x28x84xf32> to vector<28x84xf32>
    %c4 = arith.constant 4 : index
    %c0_25 = arith.constant 0 : index
    %c0_26 = arith.constant 0 : index
    %25 = vector.load %arg2[%c4, %c0_25, %c0_26] : memref<9x84x168xf32, #tpu.memory_space<vmem>>, vector<1x84x168xf32>
    %26 = vector.shape_cast %25 : vector<1x84x168xf32> to vector<84x168xf32>
    %cst_27 = arith.constant dense<0.000000e+00> : vector<28x168xf32>
    %27 = tpu.matmul %24, %26, %cst_27 {dimension_numbers = #tpu.dot_dimension_numbers<[1], [0], [0], [1], [0, 0, 1, 1], [], []>} : vector<28x84xf32>, vector<84x168xf32>, vector<28x168xf32> -> vector<28x168xf32>
    %28 = arith.addf %22, %27 : vector<28x168xf32>
    %c0_28 = arith.constant 0 : index
    %c1_29 = arith.constant 1 : index
    %c6_30 = arith.constant 6 : index
    %29 = vector.load %arg1[%c0_28, %c1_29, %c6_30] : memref<1x30x90xf32, #tpu.memory_space<vmem>>, vector<1x28x84xf32>
    %30 = vector.shape_cast %29 : vector<1x28x84xf32> to vector<28x84xf32>
    %c5 = arith.constant 5 : index
    %c0_31 = arith.constant 0 : index
    %c0_32 = arith.constant 0 : index
    %31 = vector.load %arg2[%c5, %c0_31, %c0_32] : memref<9x84x168xf32, #tpu.memory_space<vmem>>, vector<1x84x168xf32>
    %32 = vector.shape_cast %31 : vector<1x84x168xf32> to vector<84x168xf32>
    %cst_33 = arith.constant dense<0.000000e+00> : vector<28x168xf32>
    %33 = tpu.matmul %30, %32, %cst_33 {dimension_numbers = #tpu.dot_dimension_numbers<[1], [0], [0], [1], [0, 0, 1, 1], [], []>} : vector<28x84xf32>, vector<84x168xf32>, vector<28x168xf32> -> vector<28x168xf32>
    %34 = arith.addf %28, %33 : vector<28x168xf32>
    %c0_34 = arith.constant 0 : index
    %c2_35 = arith.constant 2 : index
    %c0_36 = arith.constant 0 : index
    %35 = vector.load %arg1[%c0_34, %c2_35, %c0_36] : memref<1x30x90xf32, #tpu.memory_space<vmem>>, vector<1x28x84xf32>
    %36 = vector.shape_cast %35 : vector<1x28x84xf32> to vector<28x84xf32>
    %c6_37 = arith.constant 6 : index
    %c0_38 = arith.constant 0 : index
    %c0_39 = arith.constant 0 : index
    %37 = vector.load %arg2[%c6_37, %c0_38, %c0_39] : memref<9x84x168xf32, #tpu.memory_space<vmem>>, vector<1x84x168xf32>
    %38 = vector.shape_cast %37 : vector<1x84x168xf32> to vector<84x168xf32>
    %cst_40 = arith.constant dense<0.000000e+00> : vector<28x168xf32>
    %39 = tpu.matmul %36, %38, %cst_40 {dimension_numbers = #tpu.dot_dimension_numbers<[1], [0], [0], [1], [0, 0, 1, 1], [], []>} : vector<28x84xf32>, vector<84x168xf32>, vector<28x168xf32> -> vector<28x168xf32>
    %40 = arith.addf %34, %39 : vector<28x168xf32>
    %c0_41 = arith.constant 0 : index
    %c2_42 = arith.constant 2 : index
    %c3_43 = arith.constant 3 : index
    %41 = vector.load %arg1[%c0_41, %c2_42, %c3_43] : memref<1x30x90xf32, #tpu.memory_space<vmem>>, vector<1x28x84xf32>
    %42 = vector.shape_cast %41 : vector<1x28x84xf32> to vector<28x84xf32>
    %c7 = arith.constant 7 : index
    %c0_44 = arith.constant 0 : index
    %c0_45 = arith.constant 0 : index
    %43 = vector.load %arg2[%c7, %c0_44, %c0_45] : memref<9x84x168xf32, #tpu.memory_space<vmem>>, vector<1x84x168xf32>
    %44 = vector.shape_cast %43 : vector<1x84x168xf32> to vector<84x168xf32>
    %cst_46 = arith.constant dense<0.000000e+00> : vector<28x168xf32>
    %45 = tpu.matmul %42, %44, %cst_46 {dimension_numbers = #tpu.dot_dimension_numbers<[1], [0], [0], [1], [0, 0, 1, 1], [], []>} : vector<28x84xf32>, vector<84x168xf32>, vector<28x168xf32> -> vector<28x168xf32>
    %46 = arith.addf %40, %45 : vector<28x168xf32>
    %c0_47 = arith.constant 0 : index
    %c2_48 = arith.constant 2 : index
    %c6_49 = arith.constant 6 : index
    %47 = vector.load %arg1[%c0_47, %c2_48, %c6_49] : memref<1x30x90xf32, #tpu.memory_space<vmem>>, vector<1x28x84xf32>
    %48 = vector.shape_cast %47 : vector<1x28x84xf32> to vector<28x84xf32>
    %c8 = arith.constant 8 : index
    %c0_50 = arith.constant 0 : index
    %c0_51 = arith.constant 0 : index
    %49 = vector.load %arg2[%c8, %c0_50, %c0_51] : memref<9x84x168xf32, #tpu.memory_space<vmem>>, vector<1x84x168xf32>
    %50 = vector.shape_cast %49 : vector<1x84x168xf32> to vector<84x168xf32>
    %cst_52 = arith.constant dense<0.000000e+00> : vector<28x168xf32>
    %51 = tpu.matmul %48, %50, %cst_52 {dimension_numbers = #tpu.dot_dimension_numbers<[1], [0], [0], [1], [0, 0, 1, 1], [], []>} : vector<28x84xf32>, vector<84x168xf32>, vector<28x168xf32> -> vector<28x168xf32>
    %52 = arith.addf %46, %51 : vector<28x168xf32>
    %c0_53 = arith.constant 0 : index
    %c0_54 = arith.constant 0 : index
    %53 = vector.load %arg3[%c0_53, %c0_54] : memref<1x168xf32, #tpu.memory_space<vmem>>, vector<1x168xf32>
    %54 = vector.broadcast %53 : vector<1x168xf32> to vector<28x168xf32>
    %55 = arith.addf %52, %54 : vector<28x168xf32>
    %cst_55 = arith.constant 0.000000e+00 : f32
    %56 = vector.broadcast %cst_55 : f32 to vector<28x168xf32>
    %57 = arith.maximumf %55, %56 : vector<28x168xf32>
    %c0_56 = arith.constant 0 : index
    %c0_57 = arith.constant 0 : index
    %c0_58 = arith.constant 0 : index
    %58 = vector.load %arg4[%c0_56, %c0_57, %c0_58] : memref<2x16x28xf32, #tpu.memory_space<vmem>>, vector<1x16x28xf32>
    %59 = vector.shape_cast %58 : vector<1x16x28xf32> to vector<16x28xf32>
    %cst_59 = arith.constant dense<0.000000e+00> : vector<16x168xf32>
    %60 = tpu.matmul %59, %57, %cst_59 {dimension_numbers = #tpu.dot_dimension_numbers<[1], [0], [0], [1], [0, 0, 1, 1], [], []>} : vector<16x28xf32>, vector<28x168xf32>, vector<16x168xf32> -> vector<16x168xf32>
    %c1_60 = arith.constant 1 : index
    %c0_61 = arith.constant 0 : index
    %c0_62 = arith.constant 0 : index
    %61 = vector.load %arg4[%c1_60, %c0_61, %c0_62] : memref<2x16x28xf32, #tpu.memory_space<vmem>>, vector<1x16x28xf32>
    %62 = vector.shape_cast %61 : vector<1x16x28xf32> to vector<16x28xf32>
    %cst_63 = arith.constant dense<0.000000e+00> : vector<16x168xf32>
    %63 = tpu.matmul %62, %57, %cst_63 {dimension_numbers = #tpu.dot_dimension_numbers<[1], [0], [0], [1], [0, 0, 1, 1], [], []>} : vector<16x28xf32>, vector<28x168xf32>, vector<16x168xf32> -> vector<16x168xf32>
    %64 = arith.maximumf %60, %63 : vector<16x168xf32>
    %c0_64 = arith.constant 0 : index
    %c0_65 = arith.constant 0 : index
    %c0_66 = arith.constant 0 : index
    %65 = vector.load %arg5[%c0_64, %c0_65, %c0_66] : memref<2x168x96xf32, #tpu.memory_space<vmem>>, vector<1x168x96xf32>
    %66 = vector.shape_cast %65 : vector<1x168x96xf32> to vector<168x96xf32>
    %cst_67 = arith.constant dense<0.000000e+00> : vector<16x96xf32>
    %67 = tpu.matmul %64, %66, %cst_67 {dimension_numbers = #tpu.dot_dimension_numbers<[1], [0], [0], [1], [0, 0, 1, 1], [], []>} : vector<16x168xf32>, vector<168x96xf32>, vector<16x96xf32> -> vector<16x96xf32>
    %c1_68 = arith.constant 1 : index
    %c0_69 = arith.constant 0 : index
    %c0_70 = arith.constant 0 : index
    %68 = vector.load %arg5[%c1_68, %c0_69, %c0_70] : memref<2x168x96xf32, #tpu.memory_space<vmem>>, vector<1x168x96xf32>
    %69 = vector.shape_cast %68 : vector<1x168x96xf32> to vector<168x96xf32>
    %cst_71 = arith.constant dense<0.000000e+00> : vector<16x96xf32>
    %70 = tpu.matmul %64, %69, %cst_71 {dimension_numbers = #tpu.dot_dimension_numbers<[1], [0], [0], [1], [0, 0, 1, 1], [], []>} : vector<16x168xf32>, vector<168x96xf32>, vector<16x96xf32> -> vector<16x96xf32>
    %71 = arith.maximumf %67, %70 : vector<16x96xf32>
    %c0_72 = arith.constant 0 : index
    %c0_73 = arith.constant 0 : index
    %72 = vector.load %arg13[%c0_72, %c0_73] : memref<16x96xf32, #tpu.memory_space<vmem>>, vector<16x96xf32>
    tpu.vector_store %arg13[%c0_72, %c0_73], %71 {strides = array<i32>} : memref<16x96xf32, #tpu.memory_space<vmem>>, vector<16x96xf32>,
    %c0_74 = arith.constant 0 : index
    %c0_75 = arith.constant 0 : index
    %73 = vector.load %arg13[%c0_74, %c0_75] : memref<16x96xf32, #tpu.memory_space<vmem>>, vector<14x84xf32>
    %c0_76 = arith.constant 0 : index
    %c0_77 = arith.constant 0 : index
    %c0_78 = arith.constant 0 : index
    %74 = vector.load %arg6[%c0_76, %c0_77, %c0_78] : memref<9x84x224xf32, #tpu.memory_space<vmem>>, vector<1x84x224xf32>
    %75 = vector.shape_cast %74 : vector<1x84x224xf32> to vector<84x224xf32>
    %cst_79 = arith.constant dense<0.000000e+00> : vector<14x224xf32>
    %76 = tpu.matmul %73, %75, %cst_79 {dimension_numbers = #tpu.dot_dimension_numbers<[1], [0], [0], [1], [0, 0, 1, 1], [], []>} : vector<14x84xf32>, vector<84x224xf32>, vector<14x224xf32> -> vector<14x224xf32>
    %c0_80 = arith.constant 0 : index
    %c6_81 = arith.constant 6 : index
    %77 = vector.load %arg13[%c0_80, %c6_81] : memref<16x96xf32, #tpu.memory_space<vmem>>, vector<14x84xf32>
    %c1_82 = arith.constant 1 : index
    %c0_83 = arith.constant 0 : index
    %c0_84 = arith.constant 0 : index
    %78 = vector.load %arg6[%c1_82, %c0_83, %c0_84] : memref<9x84x224xf32, #tpu.memory_space<vmem>>, vector<1x84x224xf32>
    %79 = vector.shape_cast %78 : vector<1x84x224xf32> to vector<84x224xf32>
    %cst_85 = arith.constant dense<0.000000e+00> : vector<14x224xf32>
    %80 = tpu.matmul %77, %79, %cst_85 {dimension_numbers = #tpu.dot_dimension_numbers<[1], [0], [0], [1], [0, 0, 1, 1], [], []>} : vector<14x84xf32>, vector<84x224xf32>, vector<14x224xf32> -> vector<14x224xf32>
    %81 = arith.addf %76, %80 : vector<14x224xf32>
    %c0_86 = arith.constant 0 : index
    %c12 = arith.constant 12 : index
    %82 = vector.load %arg13[%c0_86, %c12] : memref<16x96xf32, #tpu.memory_space<vmem>>, vector<14x84xf32>
    %c2_87 = arith.constant 2 : index
    %c0_88 = arith.constant 0 : index
    %c0_89 = arith.constant 0 : index
    %83 = vector.load %arg6[%c2_87, %c0_88, %c0_89] : memref<9x84x224xf32, #tpu.memory_space<vmem>>, vector<1x84x224xf32>
    %84 = vector.shape_cast %83 : vector<1x84x224xf32> to vector<84x224xf32>
    %cst_90 = arith.constant dense<0.000000e+00> : vector<14x224xf32>
    %85 = tpu.matmul %82, %84, %cst_90 {dimension_numbers = #tpu.dot_dimension_numbers<[1], [0], [0], [1], [0, 0, 1, 1], [], []>} : vector<14x84xf32>, vector<84x224xf32>, vector<14x224xf32> -> vector<14x224xf32>
    %86 = arith.addf %81, %85 : vector<14x224xf32>
    %c1_91 = arith.constant 1 : index
    %c0_92 = arith.constant 0 : index
    %87 = vector.load %arg13[%c1_91, %c0_92] : memref<16x96xf32, #tpu.memory_space<vmem>>, vector<14x84xf32>
    %c3_93 = arith.constant 3 : index
    %c0_94 = arith.constant 0 : index
    %c0_95 = arith.constant 0 : index
    %88 = vector.load %arg6[%c3_93, %c0_94, %c0_95] : memref<9x84x224xf32, #tpu.memory_space<vmem>>, vector<1x84x224xf32>
    %89 = vector.shape_cast %88 : vector<1x84x224xf32> to vector<84x224xf32>
    %cst_96 = arith.constant dense<0.000000e+00> : vector<14x224xf32>
    %90 = tpu.matmul %87, %89, %cst_96 {dimension_numbers = #tpu.dot_dimension_numbers<[1], [0], [0], [1], [0, 0, 1, 1], [], []>} : vector<14x84xf32>, vector<84x224xf32>, vector<14x224xf32> -> vector<14x224xf32>
    %91 = arith.addf %86, %90 : vector<14x224xf32>
    %c1_97 = arith.constant 1 : index
    %c6_98 = arith.constant 6 : index
    %92 = vector.load %arg13[%c1_97, %c6_98] : memref<16x96xf32, #tpu.memory_space<vmem>>, vector<14x84xf32>
    %c4_99 = arith.constant 4 : index
    %c0_100 = arith.constant 0 : index
    %c0_101 = arith.constant 0 : index
    %93 = vector.load %arg6[%c4_99, %c0_100, %c0_101] : memref<9x84x224xf32, #tpu.memory_space<vmem>>, vector<1x84x224xf32>
    %94 = vector.shape_cast %93 : vector<1x84x224xf32> to vector<84x224xf32>
    %cst_102 = arith.constant dense<0.000000e+00> : vector<14x224xf32>
    %95 = tpu.matmul %92, %94, %cst_102 {dimension_numbers = #tpu.dot_dimension_numbers<[1], [0], [0], [1], [0, 0, 1, 1], [], []>} : vector<14x84xf32>, vector<84x224xf32>, vector<14x224xf32> -> vector<14x224xf32>
    %96 = arith.addf %91, %95 : vector<14x224xf32>
    %c1_103 = arith.constant 1 : index
    %c12_104 = arith.constant 12 : index
    %97 = vector.load %arg13[%c1_103, %c12_104] : memref<16x96xf32, #tpu.memory_space<vmem>>, vector<14x84xf32>
    %c5_105 = arith.constant 5 : index
    %c0_106 = arith.constant 0 : index
    %c0_107 = arith.constant 0 : index
    %98 = vector.load %arg6[%c5_105, %c0_106, %c0_107] : memref<9x84x224xf32, #tpu.memory_space<vmem>>, vector<1x84x224xf32>
    %99 = vector.shape_cast %98 : vector<1x84x224xf32> to vector<84x224xf32>
    %cst_108 = arith.constant dense<0.000000e+00> : vector<14x224xf32>
    %100 = tpu.matmul %97, %99, %cst_108 {dimension_numbers = #tpu.dot_dimension_numbers<[1], [0], [0], [1], [0, 0, 1, 1], [], []>} : vector<14x84xf32>, vector<84x224xf32>, vector<14x224xf32> -> vector<14x224xf32>
    %101 = arith.addf %96, %100 : vector<14x224xf32>
    %c2_109 = arith.constant 2 : index
    %c0_110 = arith.constant 0 : index
    %102 = vector.load %arg13[%c2_109, %c0_110] : memref<16x96xf32, #tpu.memory_space<vmem>>, vector<14x84xf32>
    %c6_111 = arith.constant 6 : index
    %c0_112 = arith.constant 0 : index
    %c0_113 = arith.constant 0 : index
    %103 = vector.load %arg6[%c6_111, %c0_112, %c0_113] : memref<9x84x224xf32, #tpu.memory_space<vmem>>, vector<1x84x224xf32>
    %104 = vector.shape_cast %103 : vector<1x84x224xf32> to vector<84x224xf32>
    %cst_114 = arith.constant dense<0.000000e+00> : vector<14x224xf32>
    %105 = tpu.matmul %102, %104, %cst_114 {dimension_numbers = #tpu.dot_dimension_numbers<[1], [0], [0], [1], [0, 0, 1, 1], [], []>} : vector<14x84xf32>, vector<84x224xf32>, vector<14x224xf32> -> vector<14x224xf32>
    %106 = arith.addf %101, %105 : vector<14x224xf32>
    %c2_115 = arith.constant 2 : index
    %c6_116 = arith.constant 6 : index
    %107 = vector.load %arg13[%c2_115, %c6_116] : memref<16x96xf32, #tpu.memory_space<vmem>>, vector<14x84xf32>
    %c7_117 = arith.constant 7 : index
    %c0_118 = arith.constant 0 : index
    %c0_119 = arith.constant 0 : index
    %108 = vector.load %arg6[%c7_117, %c0_118, %c0_119] : memref<9x84x224xf32, #tpu.memory_space<vmem>>, vector<1x84x224xf32>
    %109 = vector.shape_cast %108 : vector<1x84x224xf32> to vector<84x224xf32>
    %cst_120 = arith.constant dense<0.000000e+00> : vector<14x224xf32>
    %110 = tpu.matmul %107, %109, %cst_120 {dimension_numbers = #tpu.dot_dimension_numbers<[1], [0], [0], [1], [0, 0, 1, 1], [], []>} : vector<14x84xf32>, vector<84x224xf32>, vector<14x224xf32> -> vector<14x224xf32>
    %111 = arith.addf %106, %110 : vector<14x224xf32>
    %c2_121 = arith.constant 2 : index
    %c12_122 = arith.constant 12 : index
    %112 = vector.load %arg13[%c2_121, %c12_122] : memref<16x96xf32, #tpu.memory_space<vmem>>, vector<14x84xf32>
    %c8_123 = arith.constant 8 : index
    %c0_124 = arith.constant 0 : index
    %c0_125 = arith.constant 0 : index
    %113 = vector.load %arg6[%c8_123, %c0_124, %c0_125] : memref<9x84x224xf32, #tpu.memory_space<vmem>>, vector<1x84x224xf32>
    %114 = vector.shape_cast %113 : vector<1x84x224xf32> to vector<84x224xf32>
    %cst_126 = arith.constant dense<0.000000e+00> : vector<14x224xf32>
    %115 = tpu.matmul %112, %114, %cst_126 {dimension_numbers = #tpu.dot_dimension_numbers<[1], [0], [0], [1], [0, 0, 1, 1], [], []>} : vector<14x84xf32>, vector<84x224xf32>, vector<14x224xf32> -> vector<14x224xf32>
    %116 = arith.addf %111, %115 : vector<14x224xf32>
    %c0_127 = arith.constant 0 : index
    %c0_128 = arith.constant 0 : index
    %117 = vector.load %arg7[%c0_127, %c0_128] : memref<1x224xf32, #tpu.memory_space<vmem>>, vector<1x224xf32>
    %118 = vector.broadcast %117 : vector<1x224xf32> to vector<14x224xf32>
    %119 = arith.addf %116, %118 : vector<14x224xf32>
    %cst_129 = arith.constant 0.000000e+00 : f32
    %120 = vector.broadcast %cst_129 : f32 to vector<14x224xf32>
    %121 = arith.maximumf %119, %120 : vector<14x224xf32>
    %c0_130 = arith.constant 0 : index
    %c0_131 = arith.constant 0 : index
    %c0_132 = arith.constant 0 : index
    %122 = vector.load %arg8[%c0_130, %c0_131, %c0_132] : memref<2x7x14xf32, #tpu.memory_space<vmem>>, vector<1x7x14xf32>
    %123 = vector.shape_cast %122 : vector<1x7x14xf32> to vector<7x14xf32>
    %cst_133 = arith.constant dense<0.000000e+00> : vector<7x224xf32>
    %124 = tpu.matmul %123, %121, %cst_133 {dimension_numbers = #tpu.dot_dimension_numbers<[1], [0], [0], [1], [0, 0, 1, 1], [], []>} : vector<7x14xf32>, vector<14x224xf32>, vector<7x224xf32> -> vector<7x224xf32>
    %c1_134 = arith.constant 1 : index
    %c0_135 = arith.constant 0 : index
    %c0_136 = arith.constant 0 : index
    %125 = vector.load %arg8[%c1_134, %c0_135, %c0_136] : memref<2x7x14xf32, #tpu.memory_space<vmem>>, vector<1x7x14xf32>
    %126 = vector.shape_cast %125 : vector<1x7x14xf32> to vector<7x14xf32>
    %cst_137 = arith.constant dense<0.000000e+00> : vector<7x224xf32>
    %127 = tpu.matmul %126, %121, %cst_137 {dimension_numbers = #tpu.dot_dimension_numbers<[1], [0], [0], [1], [0, 0, 1, 1], [], []>} : vector<7x14xf32>, vector<14x224xf32>, vector<7x224xf32> -> vector<7x224xf32>
    %128 = arith.maximumf %124, %127 : vector<7x224xf32>
    %c0_138 = arith.constant 0 : index
    %c0_139 = arith.constant 0 : index
    %c0_140 = arith.constant 0 : index
    %129 = vector.load %arg9[%c0_138, %c0_139, %c0_140] : memref<2x224x112xf32, #tpu.memory_space<vmem>>, vector<1x224x112xf32>
    %130 = vector.shape_cast %129 : vector<1x224x112xf32> to vector<224x112xf32>
    %cst_141 = arith.constant dense<0.000000e+00> : vector<7x112xf32>
    %131 = tpu.matmul %128, %130, %cst_141 {dimension_numbers = #tpu.dot_dimension_numbers<[1], [0], [0], [1], [0, 0, 1, 1], [], []>} : vector<7x224xf32>, vector<224x112xf32>, vector<7x112xf32> -> vector<7x112xf32>
    %c1_142 = arith.constant 1 : index
    %c0_143 = arith.constant 0 : index
    %c0_144 = arith.constant 0 : index
    %132 = vector.load %arg9[%c1_142, %c0_143, %c0_144] : memref<2x224x112xf32, #tpu.memory_space<vmem>>, vector<1x224x112xf32>
    %133 = vector.shape_cast %132 : vector<1x224x112xf32> to vector<224x112xf32>
    %cst_145 = arith.constant dense<0.000000e+00> : vector<7x112xf32>
    %134 = tpu.matmul %128, %133, %cst_145 {dimension_numbers = #tpu.dot_dimension_numbers<[1], [0], [0], [1], [0, 0, 1, 1], [], []>} : vector<7x224xf32>, vector<224x112xf32>, vector<7x112xf32> -> vector<7x112xf32>
    %135 = arith.maximumf %131, %134 : vector<7x112xf32>
    %c0_146 = arith.constant 0 : index
    %c0_147 = arith.constant 0 : index
    %136 = vector.load %arg14[%c0_146, %c0_147] : memref<7x112xf32, #tpu.memory_space<vmem>>, vector<7x112xf32>
    tpu.vector_store %arg14[%c0_146, %c0_147], %135 {strides = array<i32>} : memref<7x112xf32, #tpu.memory_space<vmem>>, vector<7x112xf32>,
    %c0_148 = arith.constant 0 : index
    %c0_149 = arith.constant 0 : index
    %137 = vector.load %arg14[%c0_148, %c0_149] : memref<7x112xf32, #tpu.memory_space<vmem>>, vector<1x112xf32>
    %c0_150 = arith.constant 0 : index
    %c0_151 = arith.constant 0 : index
    %c0_152 = arith.constant 0 : index
    %138 = vector.load %arg10[%c0_150, %c0_151, %c0_152] : memref<7x112x10xf32, #tpu.memory_space<vmem>>, vector<1x112x10xf32>
    %139 = vector.shape_cast %138 : vector<1x112x10xf32> to vector<112x10xf32>
    %cst_153 = arith.constant dense<0.000000e+00> : vector<1x10xf32>
    %140 = tpu.matmul %137, %139, %cst_153 {dimension_numbers = #tpu.dot_dimension_numbers<[1], [0], [0], [1], [0, 0, 1, 1], [], []>} : vector<1x112xf32>, vector<112x10xf32>, vector<1x10xf32> -> vector<1x10xf32>
    %c1_154 = arith.constant 1 : index
    %c0_155 = arith.constant 0 : index
    %141 = vector.load %arg14[%c1_154, %c0_155] : memref<7x112xf32, #tpu.memory_space<vmem>>, vector<1x112xf32>
    %c1_156 = arith.constant 1 : index
    %c0_157 = arith.constant 0 : index
    %c0_158 = arith.constant 0 : index
    %142 = vector.load %arg10[%c1_156, %c0_157, %c0_158] : memref<7x112x10xf32, #tpu.memory_space<vmem>>, vector<1x112x10xf32>
    %143 = vector.shape_cast %142 : vector<1x112x10xf32> to vector<112x10xf32>
    %cst_159 = arith.constant dense<0.000000e+00> : vector<1x10xf32>
    %144 = tpu.matmul %141, %143, %cst_159 {dimension_numbers = #tpu.dot_dimension_numbers<[1], [0], [0], [1], [0, 0, 1, 1], [], []>} : vector<1x112xf32>, vector<112x10xf32>, vector<1x10xf32> -> vector<1x10xf32>
    %145 = arith.addf %140, %144 : vector<1x10xf32>
    %c2_160 = arith.constant 2 : index
    %c0_161 = arith.constant 0 : index
    %146 = vector.load %arg14[%c2_160, %c0_161] : memref<7x112xf32, #tpu.memory_space<vmem>>, vector<1x112xf32>
    %c2_162 = arith.constant 2 : index
    %c0_163 = arith.constant 0 : index
    %c0_164 = arith.constant 0 : index
    %147 = vector.load %arg10[%c2_162, %c0_163, %c0_164] : memref<7x112x10xf32, #tpu.memory_space<vmem>>, vector<1x112x10xf32>
    %148 = vector.shape_cast %147 : vector<1x112x10xf32> to vector<112x10xf32>
    %cst_165 = arith.constant dense<0.000000e+00> : vector<1x10xf32>
    %149 = tpu.matmul %146, %148, %cst_165 {dimension_numbers = #tpu.dot_dimension_numbers<[1], [0], [0], [1], [0, 0, 1, 1], [], []>} : vector<1x112xf32>, vector<112x10xf32>, vector<1x10xf32> -> vector<1x10xf32>
    %150 = arith.addf %145, %149 : vector<1x10xf32>
    %c3_166 = arith.constant 3 : index
    %c0_167 = arith.constant 0 : index
    %151 = vector.load %arg14[%c3_166, %c0_167] : memref<7x112xf32, #tpu.memory_space<vmem>>, vector<1x112xf32>
    %c3_168 = arith.constant 3 : index
    %c0_169 = arith.constant 0 : index
    %c0_170 = arith.constant 0 : index
    %152 = vector.load %arg10[%c3_168, %c0_169, %c0_170] : memref<7x112x10xf32, #tpu.memory_space<vmem>>, vector<1x112x10xf32>
    %153 = vector.shape_cast %152 : vector<1x112x10xf32> to vector<112x10xf32>
    %cst_171 = arith.constant dense<0.000000e+00> : vector<1x10xf32>
    %154 = tpu.matmul %151, %153, %cst_171 {dimension_numbers = #tpu.dot_dimension_numbers<[1], [0], [0], [1], [0, 0, 1, 1], [], []>} : vector<1x112xf32>, vector<112x10xf32>, vector<1x10xf32> -> vector<1x10xf32>
    %155 = arith.addf %150, %154 : vector<1x10xf32>
    %c4_172 = arith.constant 4 : index
    %c0_173 = arith.constant 0 : index
    %156 = vector.load %arg14[%c4_172, %c0_173] : memref<7x112xf32, #tpu.memory_space<vmem>>, vector<1x112xf32>
    %c4_174 = arith.constant 4 : index
    %c0_175 = arith.constant 0 : index
    %c0_176 = arith.constant 0 : index
    %157 = vector.load %arg10[%c4_174, %c0_175, %c0_176] : memref<7x112x10xf32, #tpu.memory_space<vmem>>, vector<1x112x10xf32>
    %158 = vector.shape_cast %157 : vector<1x112x10xf32> to vector<112x10xf32>
    %cst_177 = arith.constant dense<0.000000e+00> : vector<1x10xf32>
    %159 = tpu.matmul %156, %158, %cst_177 {dimension_numbers = #tpu.dot_dimension_numbers<[1], [0], [0], [1], [0, 0, 1, 1], [], []>} : vector<1x112xf32>, vector<112x10xf32>, vector<1x10xf32> -> vector<1x10xf32>
    %160 = arith.addf %155, %159 : vector<1x10xf32>
    %c5_178 = arith.constant 5 : index
    %c0_179 = arith.constant 0 : index
    %161 = vector.load %arg14[%c5_178, %c0_179] : memref<7x112xf32, #tpu.memory_space<vmem>>, vector<1x112xf32>
    %c5_180 = arith.constant 5 : index
    %c0_181 = arith.constant 0 : index
    %c0_182 = arith.constant 0 : index
    %162 = vector.load %arg10[%c5_180, %c0_181, %c0_182] : memref<7x112x10xf32, #tpu.memory_space<vmem>>, vector<1x112x10xf32>
    %163 = vector.shape_cast %162 : vector<1x112x10xf32> to vector<112x10xf32>
    %cst_183 = arith.constant dense<0.000000e+00> : vector<1x10xf32>
    %164 = tpu.matmul %161, %163, %cst_183 {dimension_numbers = #tpu.dot_dimension_numbers<[1], [0], [0], [1], [0, 0, 1, 1], [], []>} : vector<1x112xf32>, vector<112x10xf32>, vector<1x10xf32> -> vector<1x10xf32>
    %165 = arith.addf %160, %164 : vector<1x10xf32>
    %c6_184 = arith.constant 6 : index
    %c0_185 = arith.constant 0 : index
    %166 = vector.load %arg14[%c6_184, %c0_185] : memref<7x112xf32, #tpu.memory_space<vmem>>, vector<1x112xf32>
    %c6_186 = arith.constant 6 : index
    %c0_187 = arith.constant 0 : index
    %c0_188 = arith.constant 0 : index
    %167 = vector.load %arg10[%c6_186, %c0_187, %c0_188] : memref<7x112x10xf32, #tpu.memory_space<vmem>>, vector<1x112x10xf32>
    %168 = vector.shape_cast %167 : vector<1x112x10xf32> to vector<112x10xf32>
    %cst_189 = arith.constant dense<0.000000e+00> : vector<1x10xf32>
    %169 = tpu.matmul %166, %168, %cst_189 {dimension_numbers = #tpu.dot_dimension_numbers<[1], [0], [0], [1], [0, 0, 1, 1], [], []>} : vector<1x112xf32>, vector<112x10xf32>, vector<1x10xf32> -> vector<1x10xf32>
    %170 = arith.addf %165, %169 : vector<1x10xf32>
    %c0_190 = arith.constant 0 : index
    %c0_191 = arith.constant 0 : index
    %171 = vector.load %arg11[%c0_190, %c0_191] : memref<1x10xf32, #tpu.memory_space<vmem>>, vector<1x10xf32>
    %172 = arith.addf %170, %171 : vector<1x10xf32>
    %c0_192 = arith.constant 0 : index
    %c0_193 = arith.constant 0 : index
    %c0_194 = arith.constant 0 : index
    %173 = vector.load %arg12[%c0_192, %c0_193, %c0_194] : memref<1x1x10xf32, #tpu.memory_space<vmem>>, vector<1x1x10xf32>
    %174 = vector.shape_cast %173 : vector<1x1x10xf32> to vector<1x10xf32>
    %175 = vector.shape_cast %172 : vector<1x10xf32> to vector<1x1x10xf32>
    tpu.vector_store %arg12[%c0_192, %c0_193, %c0_194], %175 {strides = array<i32>} : memref<1x1x10xf32, #tpu.memory_space<vmem>>, vector<1x1x10xf32>,
    return
  }
  func.func @transform_0(%arg0: i32) -> (i32, i32, i32) {
    %c0_i32 = arith.constant 0 : i32
    %c0_i32_0 = arith.constant 0 : i32
    %c0_i32_1 = arith.constant 0 : i32
    return %arg0, %c0_i32, %c0_i32_0 : i32, i32, i32
  }
  func.func @transform_1(%arg0: i32) -> (i32, i32, i32) {
    %c0_i32 = arith.constant 0 : i32
    %c0_i32_0 = arith.constant 0 : i32
    %c0_i32_1 = arith.constant 0 : i32
    %c0_i32_2 = arith.constant 0 : i32
    return %c0_i32, %c0_i32_0, %c0_i32_1 : i32, i32, i32
  }
  func.func @transform_2(%arg0: i32) -> (i32, i32) {
    %c0_i32 = arith.constant 0 : i32
    %c0_i32_0 = arith.constant 0 : i32
    %c0_i32_1 = arith.constant 0 : i32
    return %c0_i32, %c0_i32_0 : i32, i32
  }
  func.func @transform_3(%arg0: i32) -> (i32, i32, i32) {
    %c0_i32 = arith.constant 0 : i32
    %c0_i32_0 = arith.constant 0 : i32
    %c0_i32_1 = arith.constant 0 : i32
    %c0_i32_2 = arith.constant 0 : i32
    return %c0_i32, %c0_i32_0, %c0_i32_1 : i32, i32, i32
  }
  func.func @transform_4(%arg0: i32) -> (i32, i32, i32) {
    %c0_i32 = arith.constant 0 : i32
    %c0_i32_0 = arith.constant 0 : i32
    %c0_i32_1 = arith.constant 0 : i32
    %c0_i32_2 = arith.constant 0 : i32
    return %c0_i32, %c0_i32_0, %c0_i32_1 : i32, i32, i32
  }
  func.func @transform_5(%arg0: i32) -> (i32, i32, i32) {
    %c0_i32 = arith.constant 0 : i32
    %c0_i32_0 = arith.constant 0 : i32
    %c0_i32_1 = arith.constant 0 : i32
    %c0_i32_2 = arith.constant 0 : i32
    return %c0_i32, %c0_i32_0, %c0_i32_1 : i32, i32, i32
  }
  func.func @transform_6(%arg0: i32) -> (i32, i32) {
    %c0_i32 = arith.constant 0 : i32
    %c0_i32_0 = arith.constant 0 : i32
    %c0_i32_1 = arith.constant 0 : i32
    return %c0_i32, %c0_i32_0 : i32, i32
  }
  func.func @transform_7(%arg0: i32) -> (i32, i32, i32) {
    %c0_i32 = arith.constant 0 : i32
    %c0_i32_0 = arith.constant 0 : i32
    %c0_i32_1 = arith.constant 0 : i32
    %c0_i32_2 = arith.constant 0 : i32
    return %c0_i32, %c0_i32_0, %c0_i32_1 : i32, i32, i32
  }
  func.func @transform_8(%arg0: i32) -> (i32, i32, i32) {
    %c0_i32 = arith.constant 0 : i32
    %c0_i32_0 = arith.constant 0 : i32
    %c0_i32_1 = arith.constant 0 : i32
    %c0_i32_2 = arith.constant 0 : i32
    return %c0_i32, %c0_i32_0, %c0_i32_1 : i32, i32, i32
  }
  func.func @transform_9(%arg0: i32) -> (i32, i32, i32) {
    %c0_i32 = arith.constant 0 : i32
    %c0_i32_0 = arith.constant 0 : i32
    %c0_i32_1 = arith.constant 0 : i32
    %c0_i32_2 = arith.constant 0 : i32
    return %c0_i32, %c0_i32_0, %c0_i32_1 : i32, i32, i32
  }
  func.func @transform_10(%arg0: i32) -> (i32, i32) {
    %c0_i32 = arith.constant 0 : i32
    %c0_i32_0 = arith.constant 0 : i32
    %c0_i32_1 = arith.constant 0 : i32
    return %c0_i32, %c0_i32_0 : i32, i32
  }
  func.func @transform_11(%arg0: i32) -> (i32, i32, i32) {
    %c0_i32 = arith.constant 0 : i32
    %c0_i32_0 = arith.constant 0 : i32
    %c0_i32_1 = arith.constant 0 : i32
    return %arg0, %c0_i32, %c0_i32_0 : i32, i32, i32
  }
}

</mosaic_0001>

<llo_original>
// kernel: tile.13
$region0: #{tile.13}
  #allocation0 [shape = 's32[1]{0}', space=sflag, size = 0x4, scoped, tag = 'scoped memory for tile.13']
  %s0 = inlined_call_operand.vmem [shape: f32[6], index: 0, kind: input, shape index: {}]
  %s1 = inlined_call_operand.vmem [shape: f32[28,6], index: 1, kind: output, shape index: {}]
  // Predicated region
  $region2: #{tile.13} parent=0 // pred_check
    _
  $region3: #{tile.13} parent=0 // pred_check_branch
    %3 = sbr.rel (0) target = $region5
  $region4: #{tile.13} parent=0 // pred_region
    _
  $region5: #{tile.13} parent=0 // pred_fallthru
    _
  %v4 = vld [vmem:[%s0] ss:$0 sm:$0xff]
  %5 = vst [vmem:[%s1] sm:$0xff] %v4
  %s6 = scalar_lea.vmem %s1, 8
  %7 = vst [vmem:[%s6] sm:$0xff] %v4
  %s8 = scalar_lea.vmem %s1, 16
  %9 = vst [vmem:[%s8] sm:$0xff] %v4
  %s10 = scalar_lea.vmem %s1, 24
  %11 = vst [vmem:[%s10] sm:$0xff] %v4

// kernel: tile.14
$region0: #{tile.14}
  %s0 = inlined_call_operand.vmem [shape: f32[28,6], index: 0, kind: input, shape index: {}]
  %s1 = inlined_call_operand.vmem [shape: f32[1,168], index: 1, kind: output, shape index: {}]
  $region1: #{tile.14} parent=0
    #allocation0 [shape = 'u8[8192]{0}', space=vmem, size = 0x2000, scoped, tag = 'scoped mem for output reshape']
    %v2 = vld [vmem:[%s0] sm:$0x1]
    %vm3 = vcmask 48128
    %4 = vst.msk [vmem:[#allocation0] sm:$0x1] %vm3, %v2
    %s5 = scalar_lea.vmem %s0, 21
    %v6 = vld [vmem:[%s5] sm:$0x1]
    %s7 = scalar_lea.vmem %s0, 21
    %v8 = vld [vmem:[%s7] sm:$0x1]
    %vm9 = vcmask 15360
    %v10 = vsel %vm9, %v8, %v6
    %11 = vrot.lane.b32.xlu0 %v10, 126
    %v12 = vpop.permute.xlu0 %11
    %vm13 = vcmask 31744
    %s14 = scalar_lea.vmem [#allocation0], 8
    %15 = vst.msk [vmem:[%s14] sm:$0x1] %vm13, %v12
    %vm16 = vcmask 1048560
    %17 = vst.msk [vmem:[#allocation0] sm:$0x1] %vm16, %v12
    %s18 = scalar_lea.vmem %s0, 20
    %v19 = vld [vmem:[%s18] sm:$0x1]
    %20 = vrot.lane.b32.xlu0 %v19, 120
    %v21 = vpop.permute.xlu0 %20
    %vm22 = vcmask 1032128
    %23 = vst.msk [vmem:[#allocation0] sm:$0x1] %vm22, %v21
    %s24 = scalar_lea.vmem %s0, 19
    %v25 = vld [vmem:[%s24] sm:$0x1]
    %26 = vrot.lane.b32.xlu0 %v25, 114
    %v27 = vpop.permute.xlu0 %26
    %vm28 = vcmask 982928
    %29 = vst.msk [vmem:[#allocation0] sm:$0x1] %vm28, %v27
    %s30 = scalar_lea.vmem %s0, 18
    %v31 = vld [vmem:[%s30] sm:$0x1]
    %32 = vrot.lane.b32.xlu0 %v31, 108
    %v33 = vpop.permute.xlu0 %32
    %vm34 = vcmask 933728
    %35 = vst.msk [vmem:[#allocation0] sm:$0x1] %vm34, %v33
    %s36 = scalar_lea.vmem %s0, 17
    %v37 = vld [vmem:[%s36] sm:$0x1]
    %38 = vrot.lane.b32.xlu0 %v37, 102
    %v39 = vpop.permute.xlu0 %38
    %vm40 = vcmask 884528
    %41 = vst.msk [vmem:[#allocation0] sm:$0x1] %vm40, %v39
    %s42 = scalar_lea.vmem %s0, 16
    %v43 = vld [vmem:[%s42] sm:$0x1]
    %44 = vrot.lane.b32.xlu0 %v43, 96
    %v45 = vpop.permute.xlu0 %44
    %vm46 = vcmask 835328
    %47 = vst.msk [vmem:[#allocation0] sm:$0x1] %vm46, %v45
    %s48 = scalar_lea.vmem %s0, 15
    %v49 = vld [vmem:[%s48] sm:$0x1]
    %50 = vrot.lane.b32.xlu0 %v49, 90
    %v51 = vpop.permute.xlu0 %50
    %vm52 = vcmask 786128
    %53 = vst.msk [vmem:[#allocation0] sm:$0x1] %vm52, %v51
    %s54 = scalar_lea.vmem %s0, 14
    %v55 = vld [vmem:[%s54] sm:$0x1]
    %56 = vrot.lane.b32.xlu0 %v55, 84
    %v57 = vpop.permute.xlu0 %56
    %vm58 = vcmask 736928
    %59 = vst.msk [vmem:[#allocation0] sm:$0x1] %vm58, %v57
    %s60 = scalar_lea.vmem %s0, 13
    %v61 = vld [vmem:[%s60] sm:$0x1]
    %62 = vrot.lane.b32.xlu0 %v61, 78
    %v63 = vpop.permute.xlu0 %62
    %vm64 = vcmask 687728
    %65 = vst.msk [vmem:[#allocation0] sm:$0x1] %vm64, %v63
    %s66 = scalar_lea.vmem %s0, 12
    %v67 = vld [vmem:[%s66] sm:$0x1]
    %68 = vrot.lane.b32.xlu0 %v67, 72
    %v69 = vpop.permute.xlu0 %68
    %vm70 = vcmask 638528
    %71 = vst.msk [vmem:[#allocation0] sm:$0x1] %vm70, %v69
    %s72 = scalar_lea.vmem %s0, 11
    %v73 = vld [vmem:[%s72] sm:$0x1]
    %74 = vrot.lane.b32.xlu0 %v73, 66
    %v75 = vpop.permute.xlu0 %74
    %vm76 = vcmask 589328
    %77 = vst.msk [vmem:[#allocation0] sm:$0x1] %vm76, %v75
    %s78 = scalar_lea.vmem %s0, 10
    %v79 = vld [vmem:[%s78] sm:$0x1]
    %80 = vrot.lane.b32.xlu0 %v79, 60
    %v81 = vpop.permute.xlu0 %80
    %vm82 = vcmask 540128
    %83 = vst.msk [vmem:[#allocation0] sm:$0x1] %vm82, %v81
    %s84 = scalar_lea.vmem %s0, 9
    %v85 = vld [vmem:[%s84] sm:$0x1]
    %86 = vrot.lane.b32.xlu0 %v85, 54
    %v87 = vpop.permute.xlu0 %86
    %vm88 = vcmask 490928
    %89 = vst.msk [vmem:[#allocation0] sm:$0x1] %vm88, %v87
    %s90 = scalar_lea.vmem %s0, 8
    %v91 = vld [vmem:[%s90] sm:$0x1]
    %92 = vrot.lane.b32.xlu0 %v91, 48
    %v93 = vpop.permute.xlu0 %92
    %vm94 = vcmask 441728
    %95 = vst.msk [vmem:[#allocation0] sm:$0x1] %vm94, %v93
    %s96 = scalar_lea.vmem %s0, 7
    %v97 = vld [vmem:[%s96] sm:$0x1]
    %98 = vrot.lane.b32.xlu0 %v97, 42
    %v99 = vpop.permute.xlu0 %98
    %vm100 = vcmask 392528
    %101 = vst.msk [vmem:[#allocation0] sm:$0x1] %vm100, %v99
    %s102 = scalar_lea.vmem %s0, 6
    %v103 = vld [vmem:[%s102] sm:$0x1]
    %104 = vrot.lane.b32.xlu0 %v103, 36
    %v105 = vpop.permute.xlu0 %104
    %vm106 = vcmask 343328
    %107 = vst.msk [vmem:[#allocation0] sm:$0x1] %vm106, %v105
    %s108 = scalar_lea.vmem %s0, 27
    %v109 = vld [vmem:[%s108] sm:$0x1]
    %110 = vrot.lane.b32.xlu0 %v109, 34
    %v111 = vpop.permute.xlu0 %110
    %vm112 = vcmask 326928
    %s113 = scalar_lea.vmem [#allocation0], 8
    %114 = vst.msk [vmem:[%s113] sm:$0x1] %vm112, %v111
    %s115 = scalar_lea.vmem %s0, 5
    %v116 = vld [vmem:[%s115] sm:$0x1]
    %117 = vrot.lane.b32.xlu0 %v116, 30
    %v118 = vpop.permute.xlu0 %117
    %vm119 = vcmask 294128
    %120 = vst.msk [vmem:[#allocation0] sm:$0x1] %vm119, %v118
    %s121 = scalar_lea.vmem %s0, 26
    %v122 = vld [vmem:[%s121] sm:$0x1]
    %123 = vrot.lane.b32.xlu0 %v122, 28
    %v124 = vpop.permute.xlu0 %123
    %vm125 = vcmask 277728
    %s126 = scalar_lea.vmem [#allocation0], 8
    %127 = vst.msk [vmem:[%s126] sm:$0x1] %vm125, %v124
    %s128 = scalar_lea.vmem %s0, 4
    %v129 = vld [vmem:[%s128] sm:$0x1]
    %130 = vrot.lane.b32.xlu0 %v129, 24
    %v131 = vpop.permute.xlu0 %130
    %vm132 = vcmask 244928
    %133 = vst.msk [vmem:[#allocation0] sm:$0x1] %vm132, %v131
    %s134 = scalar_lea.vmem %s0, 25
    %v135 = vld [vmem:[%s134] sm:$0x1]
    %136 = vrot.lane.b32.xlu0 %v135, 22
    %v137 = vpop.permute.xlu0 %136
    %vm138 = vcmask 228528
    %s139 = scalar_lea.vmem [#allocation0], 8
    %140 = vst.msk [vmem:[%s139] sm:$0x1] %vm138, %v137
    %s141 = scalar_lea.vmem %s0, 3
    %v142 = vld [vmem:[%s141] sm:$0x1]
    %143 = vrot.lane.b32.xlu0 %v142, 18
    %v144 = vpop.permute.xlu0 %143
    %vm145 = vcmask 195728
    %146 = vst.msk [vmem:[#allocation0] sm:$0x1] %vm145, %v144
    %s147 = scalar_lea.vmem %s0, 24
    %v148 = vld [vmem:[%s147] sm:$0x1]
    %149 = vrot.lane.b32.xlu0 %v148, 16
    %v150 = vpop.permute.xlu0 %149
    %vm151 = vcmask 179328
    %s152 = scalar_lea.vmem [#allocation0], 8
    %153 = vst.msk [vmem:[%s152] sm:$0x1] %vm151, %v150
    %s154 = scalar_lea.vmem %s0, 2
    %v155 = vld [vmem:[%s154] sm:$0x1]
    %156 = vrot.lane.b32.xlu0 %v155, 12
    %v157 = vpop.permute.xlu0 %156
    %vm158 = vcmask 146528
    %159 = vst.msk [vmem:[#allocation0] sm:$0x1] %vm158, %v157
    %s160 = scalar_lea.vmem %s0, 23
    %v161 = vld [vmem:[%s160] sm:$0x1]
    %162 = vrot.lane.b32.xlu0 %v161, 10
    %v163 = vpop.permute.xlu0 %162
    %vm164 = vcmask 130128
    %s165 = scalar_lea.vmem [#allocation0], 8
    %166 = vst.msk [vmem:[%s165] sm:$0x1] %vm164, %v163
    %s167 = scalar_lea.vmem %s0, 1
    %v168 = vld [vmem:[%s167] sm:$0x1]
    %169 = vrot.lane.b32.xlu0 %v168, 6
    %v170 = vpop.permute.xlu0 %169
    %vm171 = vcmask 97328
    %172 = vst.msk [vmem:[#allocation0] sm:$0x1] %vm171, %v170
    %s173 = scalar_lea.vmem %s0, 22
    %v174 = vld [vmem:[%s173] sm:$0x1]
    %175 = vrot.lane.b32.xlu0 %v174, 4
    %v176 = vpop.permute.xlu0 %175
    %vm177 = vcmask 80928
    %s178 = scalar_lea.vmem [#allocation0], 8
    %179 = vst.msk [vmem:[%s178] sm:$0x1] %vm177, %v176
    %s181 = sshllo.u32 0, 1
    %v183 = vld [vmem:[#allocation0] sm:%s181]
    %s184 = sshllo.u32 0, 1
    %185 = vst [vmem:[%s1] sm:%s184] %v183
    %s186 = scalar_lea.vmem [#allocation0], 8
    %v187 = vld [vmem:[%s186] sm:%s181]
    %s188 = sshllo.u32 0, 1
    %s189 = scalar_lea.vmem %s1, 1
    %190 = vst [vmem:[%s189] sm:%s188] %v187

// kernel: tile.18
$region0: #{tile.18}
  #allocation0 [shape = 's32[1]{0}', space=sflag, size = 0x4, scoped, tag = 'scoped memory for tile.18']
  %s0 = inlined_call_operand.vmem [shape: f32[16], index: 0, kind: input, shape index: {}]
  %s1 = inlined_call_operand.vmem [shape: f32[14,16], index: 1, kind: output, shape index: {}]
  // Predicated region
  $region2: #{tile.18} parent=0 // pred_check
    _
  $region3: #{tile.18} parent=0 // pred_check_branch
    %3 = sbr.rel (0) target = $region5
  $region4: #{tile.18} parent=0 // pred_region
    _
  $region5: #{tile.18} parent=0 // pred_fallthru
    _
  %v4 = vld [vmem:[%s0] ss:$0 sm:$0xff]
  %5 = vst [vmem:[%s1] sm:$0xff] %v4
  %s6 = scalar_lea.vmem %s1, 8
  %7 = vst [vmem:[%s6] sm:$0xff] %v4

// kernel: tile.19
$region0: #{tile.19}
  %s0 = inlined_call_operand.vmem [shape: f32[14,16], index: 0, kind: input, shape index: {}]
  %s1 = inlined_call_operand.vmem [shape: f32[1,224], index: 1, kind: output, shape index: {}]
  $region1: #{tile.19} parent=0
    #allocation0 [shape = 'u8[8192]{0}', space=vmem, size = 0x2000, scoped, tag = 'scoped mem for output reshape']
    %s2 = smov 3
    %v3 = vld [vmem:[%s0] ss:$8 sm:%s2]
    %vm4 = vcmask 130048
    %5 = vst.msk [vmem:[#allocation0] ss:$8 sm:$0x3] %vm4, %v3
    %s6 = scalar_lea.vmem %s0, 7
    %v7 = vld [vmem:[%s6] sm:$0x1]
    %8 = vrot.lane.b32.xlu0 %v7, 112
    %v9 = vpop.permute.xlu0 %8
    %vm10 = vcmask 1048448
    %11 = vst.msk [vmem:[#allocation0] sm:$0x1] %vm10, %v9
    %s12 = scalar_lea.vmem %s0, 6
    %v13 = vld [vmem:[%s12] sm:$0x1]
    %14 = vrot.lane.b32.xlu0 %v13, 96
    %v15 = vpop.permute.xlu0 %14
    %vm16 = vcmask 917248
    %17 = vst.msk [vmem:[#allocation0] sm:$0x1] %vm16, %v15
    %s18 = scalar_lea.vmem %s0, 5
    %s19 = smov 3
    %v20 = vld [vmem:[%s18] ss:$8 sm:%s19]
    %21 = vrot.lane.b32.xlu0 %v20, 80
    %v22 = vpop.permute.xlu0 %21
    %vm23 = vcmask 786048
    %24 = vst.msk [vmem:[#allocation0] ss:$8 sm:$0x3] %vm23, %v22
    %s25 = scalar_lea.vmem %s0, 4
    %s26 = smov 3
    %v27 = vld [vmem:[%s25] ss:$8 sm:%s26]
    %28 = vrot.lane.b32.xlu0 %v27, 64
    %v29 = vpop.permute.xlu0 %28
    %vm30 = vcmask 654848
    %31 = vst.msk [vmem:[#allocation0] ss:$8 sm:$0x3] %vm30, %v29
    %s32 = scalar_lea.vmem %s0, 3
    %s33 = smov 3
    %v34 = vld [vmem:[%s32] ss:$8 sm:%s33]
    %35 = vrot.lane.b32.xlu0 %v34, 48
    %v36 = vpop.permute.xlu0 %35
    %vm37 = vcmask 523648
    %38 = vst.msk [vmem:[#allocation0] ss:$8 sm:$0x3] %vm37, %v36
    %s39 = scalar_lea.vmem %s0, 2
    %s40 = smov 3
    %v41 = vld [vmem:[%s39] ss:$8 sm:%s40]
    %42 = vrot.lane.b32.xlu0 %v41, 32
    %v43 = vpop.permute.xlu0 %42
    %vm44 = vcmask 392448
    %45 = vst.msk [vmem:[#allocation0] ss:$8 sm:$0x3] %vm44, %v43
    %s46 = scalar_lea.vmem %s0, 1
    %s47 = smov 3
    %v48 = vld [vmem:[%s46] ss:$8 sm:%s47]
    %49 = vrot.lane.b32.xlu0 %v48, 16
    %v50 = vpop.permute.xlu0 %49
    %vm51 = vcmask 261248
    %52 = vst.msk [vmem:[#allocation0] ss:$8 sm:$0x3] %vm51, %v50
    %s54 = sshllo.u32 0, 1
    %v56 = vld [vmem:[#allocation0] sm:%s54]
    %s57 = sshllo.u32 0, 1
    %58 = vst [vmem:[%s1] sm:%s57] %v56
    %s59 = scalar_lea.vmem [#allocation0], 8
    %v60 = vld [vmem:[%s59] sm:%s54]
    %s61 = sshllo.u32 0, 1
    %s62 = scalar_lea.vmem %s1, 1
    %63 = vst [vmem:[%s62] sm:%s61] %v60

// kernel: cnn_forward.1
$region0: #{cnn_forward.1}
  #allocation0 [shape = 'u32[]', space=smem, size = 0x4, offset = 0x4, fixed_abs, tag = 'smem constant byte address 0x4 - core index']
  #allocation1 [shape = 'u32[144,128]{1,0:T(1,128)}', space=vmem, size = 0x12000, scoped, tag = 'internal scratch']
  #allocation2 [shape = 'f32[16,96]{1,0:T(8,128)}', space=vmem, size = 0x2000, scoped, tag = 'scratch operand']
  #allocation3 [shape = 'f32[7,112]{1,0:T(8,128)}', space=vmem, size = 0x1000, scoped, tag = 'scratch operand']
  %s0 = inlined_call_operand.vmem [shape: f32[2,30,90], index: 0, kind: input, shape index: {}]
  %s1 = inlined_call_operand.vmem [shape: f32[9,84,168], index: 1, kind: input, shape index: {}]
  %s2 = inlined_call_operand.vmem [shape: f32[1,168], index: 2, kind: input, shape index: {}]
  %s3 = inlined_call_operand.vmem [shape: f32[2,16,28], index: 3, kind: input, shape index: {}]
  %s4 = inlined_call_operand.vmem [shape: f32[2,168,96], index: 4, kind: input, shape index: {}]
  %s5 = inlined_call_operand.vmem [shape: f32[9,84,224], index: 5, kind: input, shape index: {}]
  %s6 = inlined_call_operand.vmem [shape: f32[1,224], index: 6, kind: input, shape index: {}]
  %s7 = inlined_call_operand.vmem [shape: f32[2,7,14], index: 7, kind: input, shape index: {}]
  %s8 = inlined_call_operand.vmem [shape: f32[2,224,112], index: 8, kind: input, shape index: {}]
  %s9 = inlined_call_operand.vmem [shape: f32[7,112,10], index: 9, kind: input, shape index: {}]
  %s10 = inlined_call_operand.vmem [shape: f32[1,10], index: 10, kind: input, shape index: {}]
  %s11 = inlined_call_operand.hbm [shape: f32[2,1,10], index: 11, kind: output, shape index: {}]
  %s12 = sld [smem:[#allocation0]]
  $region77: #{cnn_forward.1} parent=0
    _
  %s14 = ssub.s32 1, %s12
  %s15 = scalar_select 0, %s14, %s12
  $region1: #{cnn_forward.1} parent=0
    #allocation4 [shape = 'u8[1024]{0}', space=vmem, size = 0x400, scoped, tag = 'output window, operand 0']
    #allocation5 [shape = 's32[2]{0}', space=sflag, size = 0x8, scoped, tag = 'scoped memory for cnn_forward.1']
    %16 = vsyncpa [#allocation5], 0
    %s17 = scalar_lea.sflag [#allocation5], 1
    %18 = vsyncpa %s17, 0
    loop: start=0, step=1, limit=4
    $region2: #{cnn_forward.1} parent=1 // loop_pre_header
      _
    $region3: #{cnn_forward.1} parent=1 // loop_header
      %s20 = sphi 0, %s24
      %p21 = scmp.ge.s32.totalorder %s20, 4
      %s30 = sphi 0, %s32
      %s33 = sphi 0, %s30
      %s34 = sphi 0, %s33
      %s50 = sphi 0, %s34
      %s54 = sphi 0, %s54
      %s56 = sphi 0, %s54
      %s57 = sphi 0, %s56
      %s71 = sphi 0, %s57
      %s75 = sphi 0, %s75
      %s77 = sphi 0, %s75
      %s78 = sphi 0, %s77
      %s92 = sphi 0, %s78
      %s96 = sphi 0, %s96
      %s98 = sphi 0, %s96
      %s99 = sphi 0, %s98
      %s113 = sphi 0, %s99
      %s117 = sphi 0, %s117
      %s119 = sphi 0, %s117
      %s120 = sphi 0, %s119
      %s134 = sphi 0, %s120
      %s138 = sphi 0, %s138
      %s140 = sphi 0, %s138
      %s141 = sphi 0, %s140
      %s155 = sphi 0, %s141
      %s159 = sphi 0, %s159
      %s161 = sphi 0, %s159
      %s162 = sphi 0, %s161
      %s176 = sphi 0, %s162
      %s180 = sphi 0, %s180
      %s182 = sphi 0, %s180
      %s183 = sphi 0, %s182
      %s197 = sphi 0, %s183
      %s201 = sphi 0, %s201
      %s203 = sphi 0, %s201
      %s204 = sphi 0, %s203
      %s218 = sphi 0, %s204
      %s222 = sphi 0, %s222
      %s224 = sphi 0, %s222
      %s225 = sphi 0, %s224
      %s239 = sphi 0, %s225
      %s243 = sphi 0, %s243
      %s245 = sphi 0, %s243
      %s246 = sphi 0, %s245
      %s260 = sphi 0, %s246
      %s266 = sphi 0, %s268
      %s269 = sphi 0, %s266
      %s270 = sphi 0, %s269
      %s286 = sphi 0, %s270
    $region4: #{cnn_forward.1} parent=1 // loop_header_branch
      %23 = sbr.rel (%p21) target = $region8
    $region5: #{cnn_forward.1} parent=1 // loop_body
      %s25 = ssub.s32 %s20, 1
      %s26 = ssub.s32 %s20, 2
      %s27 = sadd.s32 %s20, 1
      %s28 = ssub.s32 %s20, %s27
      %p29 = scmp.eq.s32.totalorder %s28, 0
      %s31 = sadd.s32 %s30, 1
      %s32 = scalar_select %p29, %s30, %s31
      %p35 = pneg %p29
      %p36 = scmp.eq.s32.totalorder %s20, 1
      %p37 = por %p35, %p36
      %p38 = scmp.ne.s32.totalorder %s30, %s33
      %p39 = scmp.eq.s32.totalorder %s20, 0
      %p40 = por %p38, %p39
      %p41 = scmp.ne.s32.totalorder %s30, %s33
      %p42 = scmp.eq.s32.totalorder %s25, 1
      %p43 = por %p41, %p42
      %p44 = scmp.ne.s32.totalorder %s33, %s34
      %p45 = scmp.eq.s32.totalorder %s25, 0
      %p46 = por %p44, %p45
      %p47 = scmp.ne.s32.totalorder %s33, %s34
      %p48 = scmp.eq.s32.totalorder %s26, 1
      %p49 = por %p47, %p48
      %p51 = scmp.ne.s32.totalorder %s34, %s50
      %p52 = scmp.eq.s32.totalorder %s26, 0
      %p53 = por %p51, %p52
      %s55 = sadd.s32 %s54, 1
      %p58 = scmp.eq.s32.totalorder %s20, 1
      %p59 = scmp.ne.s32.totalorder %s54, %s56
      %p60 = scmp.eq.s32.totalorder %s20, 0
      %p61 = por %p59, %p60
      %p62 = scmp.ne.s32.totalorder %s54, %s56
      %p63 = scmp.eq.s32.totalorder %s25, 1
      %p64 = por %p62, %p63
      %p65 = scmp.ne.s32.totalorder %s56, %s57
      %p66 = scmp.eq.s32.totalorder %s25, 0
      %p67 = por %p65, %p66
      %p68 = scmp.ne.s32.totalorder %s56, %s57
      %p69 = scmp.eq.s32.totalorder %s26, 1
      %p70 = por %p68, %p69
      %p72 = scmp.ne.s32.totalorder %s57, %s71
      %p73 = scmp.eq.s32.totalorder %s26, 0
      %p74 = por %p72, %p73
      %s76 = sadd.s32 %s75, 1
      %p79 = scmp.eq.s32.totalorder %s20, 1
      %p80 = scmp.ne.s32.totalorder %s75, %s77
      %p81 = scmp.eq.s32.totalorder %s20, 0
      %p82 = por %p80, %p81
      %p83 = scmp.ne.s32.totalorder %s75, %s77
      %p84 = scmp.eq.s32.totalorder %s25, 1
      %p85 = por %p83, %p84
      %p86 = scmp.ne.s32.totalorder %s77, %s78
      %p87 = scmp.eq.s32.totalorder %s25, 0
      %p88 = por %p86, %p87
      %p89 = scmp.ne.s32.totalorder %s77, %s78
      %p90 = scmp.eq.s32.totalorder %s26, 1
      %p91 = por %p89, %p90
      %p93 = scmp.ne.s32.totalorder %s78, %s92
      %p94 = scmp.eq.s32.totalorder %s26, 0
      %p95 = por %p93, %p94
      %s97 = sadd.s32 %s96, 1
      %p100 = scmp.eq.s32.totalorder %s20, 1
      %p101 = scmp.ne.s32.totalorder %s96, %s98
      %p102 = scmp.eq.s32.totalorder %s20, 0
      %p103 = por %p101, %p102
      %p104 = scmp.ne.s32.totalorder %s96, %s98
      %p105 = scmp.eq.s32.totalorder %s25, 1
      %p106 = por %p104, %p105
      %p107 = scmp.ne.s32.totalorder %s98, %s99
      %p108 = scmp.eq.s32.totalorder %s25, 0
      %p109 = por %p107, %p108
      %p110 = scmp.ne.s32.totalorder %s98, %s99
      %p111 = scmp.eq.s32.totalorder %s26, 1
      %p112 = por %p110, %p111
      %p114 = scmp.ne.s32.totalorder %s99, %s113
      %p115 = scmp.eq.s32.totalorder %s26, 0
      %p116 = por %p114, %p115
      %s118 = sadd.s32 %s117, 1
      %p121 = scmp.eq.s32.totalorder %s20, 1
      %p122 = scmp.ne.s32.totalorder %s117, %s119
      %p123 = scmp.eq.s32.totalorder %s20, 0
      %p124 = por %p122, %p123
      %p125 = scmp.ne.s32.totalorder %s117, %s119
      %p126 = scmp.eq.s32.totalorder %s25, 1
      %p127 = por %p125, %p126
      %p128 = scmp.ne.s32.totalorder %s119, %s120
      %p129 = scmp.eq.s32.totalorder %s25, 0
      %p130 = por %p128, %p129
      %p131 = scmp.ne.s32.totalorder %s119, %s120
      %p132 = scmp.eq.s32.totalorder %s26, 1
      %p133 = por %p131, %p132
      %p135 = scmp.ne.s32.totalorder %s120, %s134
      %p136 = scmp.eq.s32.totalorder %s26, 0
      %p137 = por %p135, %p136
      %s139 = sadd.s32 %s138, 1
      %p142 = scmp.eq.s32.totalorder %s20, 1
      %p143 = scmp.ne.s32.totalorder %s138, %s140
      %p144 = scmp.eq.s32.totalorder %s20, 0
      %p145 = por %p143, %p144
      %p146 = scmp.ne.s32.totalorder %s138, %s140
      %p147 = scmp.eq.s32.totalorder %s25, 1
      %p148 = por %p146, %p147
      %p149 = scmp.ne.s32.totalorder %s140, %s141
      %p150 = scmp.eq.s32.totalorder %s25, 0
      %p151 = por %p149, %p150
      %p152 = scmp.ne.s32.totalorder %s140, %s141
      %p153 = scmp.eq.s32.totalorder %s26, 1
      %p154 = por %p152, %p153
      %p156 = scmp.ne.s32.totalorder %s141, %s155
      %p157 = scmp.eq.s32.totalorder %s26, 0
      %p158 = por %p156, %p157
      %s160 = sadd.s32 %s159, 1
      %p163 = scmp.eq.s32.totalorder %s20, 1
      %p164 = scmp.ne.s32.totalorder %s159, %s161
      %p165 = scmp.eq.s32.totalorder %s20, 0
      %p166 = por %p164, %p165
      %p167 = scmp.ne.s32.totalorder %s159, %s161
      %p168 = scmp.eq.s32.totalorder %s25, 1
      %p169 = por %p167, %p168
      %p170 = scmp.ne.s32.totalorder %s161, %s162
      %p171 = scmp.eq.s32.totalorder %s25, 0
      %p172 = por %p170, %p171
      %p173 = scmp.ne.s32.totalorder %s161, %s162
      %p174 = scmp.eq.s32.totalorder %s26, 1
      %p175 = por %p173, %p174
      %p177 = scmp.ne.s32.totalorder %s162, %s176
      %p178 = scmp.eq.s32.totalorder %s26, 0
      %p179 = por %p177, %p178
      %s181 = sadd.s32 %s180, 1
      %p184 = scmp.eq.s32.totalorder %s20, 1
      %p185 = scmp.ne.s32.totalorder %s180, %s182
      %p186 = scmp.eq.s32.totalorder %s20, 0
      %p187 = por %p185, %p186
      %p188 = scmp.ne.s32.totalorder %s180, %s182
      %p189 = scmp.eq.s32.totalorder %s25, 1
      %p190 = por %p188, %p189
      %p191 = scmp.ne.s32.totalorder %s182, %s183
      %p192 = scmp.eq.s32.totalorder %s25, 0
      %p193 = por %p191, %p192
      %p194 = scmp.ne.s32.totalorder %s182, %s183
      %p195 = scmp.eq.s32.totalorder %s26, 1
      %p196 = por %p194, %p195
      %p198 = scmp.ne.s32.totalorder %s183, %s197
      %p199 = scmp.eq.s32.totalorder %s26, 0
      %p200 = por %p198, %p199
      %s202 = sadd.s32 %s201, 1
      %p205 = scmp.eq.s32.totalorder %s20, 1
      %p206 = scmp.ne.s32.totalorder %s201, %s203
      %p207 = scmp.eq.s32.totalorder %s20, 0
      %p208 = por %p206, %p207
      %p209 = scmp.ne.s32.totalorder %s201, %s203
      %p210 = scmp.eq.s32.totalorder %s25, 1
      %p211 = por %p209, %p210
      %p212 = scmp.ne.s32.totalorder %s203, %s204
      %p213 = scmp.eq.s32.totalorder %s25, 0
      %p214 = por %p212, %p213
      %p215 = scmp.ne.s32.totalorder %s203, %s204
      %p216 = scmp.eq.s32.totalorder %s26, 1
      %p217 = por %p215, %p216
      %p219 = scmp.ne.s32.totalorder %s204, %s218
      %p220 = scmp.eq.s32.totalorder %s26, 0
      %p221 = por %p219, %p220
      %s223 = sadd.s32 %s222, 1
      %p226 = scmp.eq.s32.totalorder %s20, 1
      %p227 = scmp.ne.s32.totalorder %s222, %s224
      %p228 = scmp.eq.s32.totalorder %s20, 0
      %p229 = por %p227, %p228
      %p230 = scmp.ne.s32.totalorder %s222, %s224
      %p231 = scmp.eq.s32.totalorder %s25, 1
      %p232 = por %p230, %p231
      %p233 = scmp.ne.s32.totalorder %s224, %s225
      %p234 = scmp.eq.s32.totalorder %s25, 0
      %p235 = por %p233, %p234
      %p236 = scmp.ne.s32.totalorder %s224, %s225
      %p237 = scmp.eq.s32.totalorder %s26, 1
      %p238 = por %p236, %p237
      %p240 = scmp.ne.s32.totalorder %s225, %s239
      %p241 = scmp.eq.s32.totalorder %s26, 0
      %p242 = por %p240, %p241
      %s244 = sadd.s32 %s243, 1
      %p247 = scmp.eq.s32.totalorder %s20, 1
      %p248 = scmp.ne.s32.totalorder %s243, %s245
      %p249 = scmp.eq.s32.totalorder %s20, 0
      %p250 = por %p248, %p249
      %p251 = scmp.ne.s32.totalorder %s243, %s245
      %p252 = scmp.eq.s32.totalorder %s25, 1
      %p253 = por %p251, %p252
      %p254 = scmp.ne.s32.totalorder %s245, %s246
      %p255 = scmp.eq.s32.totalorder %s25, 0
      %p256 = por %p254, %p255
      %p257 = scmp.ne.s32.totalorder %s245, %s246
      %p258 = scmp.eq.s32.totalorder %s26, 1
      %p259 = por %p257, %p258
      %p261 = scmp.ne.s32.totalorder %s246, %s260
      %p262 = scmp.eq.s32.totalorder %s26, 0
      %p263 = por %p261, %p262
      %s264 = ssub.s32 %s20, %s27
      %p265 = scmp.eq.s32.totalorder %s264, 0
      %s267 = sadd.s32 %s266, 1
      %s268 = scalar_select %p265, %s266, %s267
      %p271 = pneg %p265
      %p272 = scmp.eq.s32.totalorder %s20, 1
      %p273 = por %p271, %p272
      %p274 = scmp.ne.s32.totalorder %s266, %s269
      %p275 = scmp.eq.s32.totalorder %s20, 0
      %p276 = por %p274, %p275
      %p277 = scmp.ne.s32.totalorder %s266, %s269
      %p278 = scmp.eq.s32.totalorder %s25, 1
      %p279 = por %p277, %p278
      %p280 = scmp.ne.s32.totalorder %s269, %s270
      %p281 = scmp.eq.s32.totalorder %s25, 0
      %p282 = por %p280, %p281
      %p283 = scmp.ne.s32.totalorder %s269, %s270
      %p284 = scmp.eq.s32.totalorder %s26, 1
      %p285 = por %p283, %p284
      %p287 = scmp.ne.s32.totalorder %s270, %s286
      %p288 = scmp.eq.s32.totalorder %s26, 0
      %p289 = por %p287, %p288
      %p290 = scmp.le.s32.totalorder 1, %s20
      %p291 = scmp.lt.s32.totalorder %s20, 3
      %p292 = pnand %p290, %p291
      %p293 = pneg %p292
      // Predicated region
      $region9: #{cnn_forward.1} parent=5 // pred_check
        _
      $region10: #{cnn_forward.1} parent=5 // pred_check_branch
        %295 = sbr.rel (%p292) target = $region12
      $region11: #{cnn_forward.1} parent=5 // pred_region
        %s296 = ssub.s32 %s20, 1
        // Predicated region
        $region13: #{cnn_forward.1} parent=11 // pred_check
          %p297 = pneg %p67
        $region14: #{cnn_forward.1} parent=11 // pred_check_branch
          %299 = sbr.rel (%p297) target = $region16
        $region15: #{cnn_forward.1} parent=11 // pred_region
          _
        $region16: #{cnn_forward.1} parent=11 // pred_fallthru
          _
        // Predicated region
        $region17: #{cnn_forward.1} parent=11 // pred_check
          %p300 = pneg %p88
        $region18: #{cnn_forward.1} parent=11 // pred_check_branch
          %302 = sbr.rel (%p300) target = $region20
        $region19: #{cnn_forward.1} parent=11 // pred_region
          _
        $region20: #{cnn_forward.1} parent=11 // pred_fallthru
          _
        // Predicated region
        $region21: #{cnn_forward.1} parent=11 // pred_check
          %p303 = pneg %p109
        $region22: #{cnn_forward.1} parent=11 // pred_check_branch
          %305 = sbr.rel (%p303) target = $region24
        $region23: #{cnn_forward.1} parent=11 // pred_region
          _
        $region24: #{cnn_forward.1} parent=11 // pred_fallthru
          _
        // Predicated region
        $region25: #{cnn_forward.1} parent=11 // pred_check
          %p306 = pneg %p130
        $region26: #{cnn_forward.1} parent=11 // pred_check_branch
          %308 = sbr.rel (%p306) target = $region28
        $region27: #{cnn_forward.1} parent=11 // pred_region
          _
        $region28: #{cnn_forward.1} parent=11 // pred_fallthru
          _
        // Predicated region
        $region29: #{cnn_forward.1} parent=11 // pred_check
          %p309 = pneg %p151
        $region30: #{cnn_forward.1} parent=11 // pred_check_branch
          %311 = sbr.rel (%p309) target = $region32
        $region31: #{cnn_forward.1} parent=11 // pred_region
          _
        $region32: #{cnn_forward.1} parent=11 // pred_fallthru
          _
        // Predicated region
        $region33: #{cnn_forward.1} parent=11 // pred_check
          %p312 = pneg %p172
        $region34: #{cnn_forward.1} parent=11 // pred_check_branch
          %314 = sbr.rel (%p312) target = $region36
        $region35: #{cnn_forward.1} parent=11 // pred_region
          _
        $region36: #{cnn_forward.1} parent=11 // pred_fallthru
          _
        // Predicated region
        $region37: #{cnn_forward.1} parent=11 // pred_check
          %p315 = pneg %p193
        $region38: #{cnn_forward.1} parent=11 // pred_check_branch
          %317 = sbr.rel (%p315) target = $region40
        $region39: #{cnn_forward.1} parent=11 // pred_region
          _
        $region40: #{cnn_forward.1} parent=11 // pred_fallthru
          _
        // Predicated region
        $region41: #{cnn_forward.1} parent=11 // pred_check
          %p318 = pneg %p214
        $region42: #{cnn_forward.1} parent=11 // pred_check_branch
          %320 = sbr.rel (%p318) target = $region44
        $region43: #{cnn_forward.1} parent=11 // pred_region
          _
        $region44: #{cnn_forward.1} parent=11 // pred_fallthru
          _
        // Predicated region
        $region45: #{cnn_forward.1} parent=11 // pred_check
          %p321 = pneg %p235
        $region46: #{cnn_forward.1} parent=11 // pred_check_branch
          %323 = sbr.rel (%p321) target = $region48
        $region47: #{cnn_forward.1} parent=11 // pred_region
          _
        $region48: #{cnn_forward.1} parent=11 // pred_fallthru
          _
        // Predicated region
        $region49: #{cnn_forward.1} parent=11 // pred_check
          %p324 = pneg %p256
        $region50: #{cnn_forward.1} parent=11 // pred_check_branch
          %326 = sbr.rel (%p324) target = $region52
        $region51: #{cnn_forward.1} parent=11 // pred_region
          _
        $region52: #{cnn_forward.1} parent=11 // pred_fallthru
          _
      $region12: #{cnn_forward.1} parent=5 // pred_fallthru
        _
      %p327 = scmp.lt.s32.totalorder %s20, 2
      // Predicated region
      $region53: #{cnn_forward.1} parent=5 // pred_check
        %p328 = pneg %p327
      $region54: #{cnn_forward.1} parent=5 // pred_check_branch
        %330 = sbr.rel (%p328) target = $region56
      $region55: #{cnn_forward.1} parent=5 // pred_region
        // Predicated region
        $region57: #{cnn_forward.1} parent=55 // pred_check
          %p331 = pneg %p40
        $region58: #{cnn_forward.1} parent=55 // pred_check_branch
          %333 = sbr.rel (%p331) target = $region60
        $region59: #{cnn_forward.1} parent=55 // pred_region
          %p334 = scmp.lt.s32.totalorder %s20, 1
          %s335 = scalar_select %p334, %s20, 1
          %s336 = smul.addr %s335, 4
          %s337 = smul.addr %s336, 8
          %s338 = scalar_lea.vmem %s0, %s337
        $region60: #{cnn_forward.1} parent=55 // pred_fallthru
          _
      $region56: #{cnn_forward.1} parent=5 // pred_fallthru
        _
      %p339 = scmp.le.s32.totalorder 1, %s20
      %p340 = scmp.lt.s32.totalorder %s20, 3
      %p341 = pnand %p339, %p340
      %p342 = pneg %p341
      // Predicated region
      $region61: #{cnn_forward.1} parent=5 // pred_check
        _
      $region62: #{cnn_forward.1} parent=5 // pred_check_branch
        %344 = sbr.rel (%p341) target = $region64
      $region63: #{cnn_forward.1} parent=5 // pred_region
        %s345 = ssub.s32 %s20, 1
        %p346 = scmp.lt.s32.totalorder %s25, 1
        %s347 = scalar_select %p346, %s25, 1
        %s348 = smul.addr %s347, 4
        %s349 = smul.addr %s348, 8
        %s350 = scalar_lea.vmem %s0, %s349
        %p351 = pneg %p46
        %p352 = pneg %p43
        %p353 = pneg %p67
        %p354 = pneg %p64
        %p355 = pneg %p88
        %p356 = pneg %p85
        %p357 = pneg %p109
        %p358 = pneg %p106
        %p359 = pneg %p130
        %p360 = pneg %p127
        %p361 = pneg %p151
        %p362 = pneg %p148
        %p363 = pneg %p172
        %p364 = pneg %p169
        %p365 = pneg %p193
        %p366 = pneg %p190
        %p367 = pneg %p214
        %p368 = pneg %p211
        %p369 = pneg %p235
        %p370 = pneg %p232
        %p371 = pneg %p256
        %p372 = pneg %p253
        %p373 = pneg %p282
        %p374 = pneg %p279
        %s375 = sand.u32 %s269, 1
        %s376 = scalar_lea.sflag [#allocation5], %s375
        %s377 = sand.u32 %s269, 1
        %s378 = scalar_lea.vmem [#allocation4], %s377
        %p379 = scmp.lt.s32.totalorder %s25, 1
        %s380 = scalar_select %p379, %s25, 1
        %s381 = smul.addr %s380, 4
        %s382 = smul.addr %s381, 8
        %s383 = scalar_lea.vmem %s0, %s382
        %v384 = vld [vmem:[%s383] sm:$0xff]
        %v385 = vld [vmem:[%s383 + $0x8] sm:$0xff]
        %v386 = vld [vmem:[%s383 + $0x10] sm:$0xff]
        %v387 = vld [vmem:[%s383 + $0x18] sm:$0xf]
        %v388 = vld [vmem:[%s1] sm:$0xff]
        %v389 = vld [vmem:[%s1 + $0x8] sm:$0xff]
        %v390 = vld [vmem:[%s1 + $0x10] sm:$0xff]
        %v391 = vld [vmem:[%s1 + $0x18] sm:$0xff]
        %v392 = vld [vmem:[%s1 + $0x20] sm:$0xff]
        %v393 = vld [vmem:[%s1 + $0x28] sm:$0xff]
        %v394 = vld [vmem:[%s1 + $0x30] sm:$0xff]
        %v395 = vld [vmem:[%s1 + $0x38] sm:$0xff]
        %v396 = vld [vmem:[%s1 + $0x40] sm:$0xff]
        %v397 = vld [vmem:[%s1 + $0x48] sm:$0xff]
        %v398 = vld [vmem:[%s1 + $0x50] sm:$0xff]
        %v399 = vld [vmem:[%s1 + $0x58] sm:$0xff]
        %v400 = vld [vmem:[%s1 + $0x60] sm:$0xff]
        %v401 = vld [vmem:[%s1 + $0x68] sm:$0xff]
        %v402 = vld [vmem:[%s1 + $0x70] sm:$0xff]
        %v403 = vld [vmem:[%s1 + $0x78] sm:$0xff]
        %v404 = vld [vmem:[%s1 + $0x80] sm:$0xff]
        %v405 = vld [vmem:[%s1 + $0x88] sm:$0xff]
        %v406 = vld [vmem:[%s1 + $0x90] sm:$0xff]
        %v407 = vld [vmem:[%s1 + $0x98] sm:$0xff]
        %v408 = vld [vmem:[%s1 + $0xa0] sm:$0xf]
        %v409 = vld [vmem:[%s1 + $0xa8] sm:$0xf]
        %s410 = scalar_lea.vmem %s1, 176
        %v411 = vld [vmem:[%s410] sm:$0xff]
        %v412 = vld [vmem:[%s410 + $0x8] sm:$0xff]
        %v413 = vld [vmem:[%s410 + $0x10] sm:$0xff]
        %v414 = vld [vmem:[%s410 + $0x18] sm:$0xff]
        %v415 = vld [vmem:[%s410 + $0x20] sm:$0xff]
        %v416 = vld [vmem:[%s410 + $0x28] sm:$0xff]
        %v417 = vld [vmem:[%s410 + $0x30] sm:$0xff]
        %v418 = vld [vmem:[%s410 + $0x38] sm:$0xff]
        %v419 = vld [vmem:[%s410 + $0x40] sm:$0xff]
        %v420 = vld [vmem:[%s410 + $0x48] sm:$0xff]
        %v421 = vld [vmem:[%s410 + $0x50] sm:$0xff]
        %v422 = vld [vmem:[%s410 + $0x58] sm:$0xff]
        %v423 = vld [vmem:[%s410 + $0x60] sm:$0xff]
        %v424 = vld [vmem:[%s410 + $0x68] sm:$0xff]
        %v425 = vld [vmem:[%s410 + $0x70] sm:$0xff]
        %v426 = vld [vmem:[%s410 + $0x78] sm:$0xff]
        %v427 = vld [vmem:[%s410 + $0x80] sm:$0xff]
        %v428 = vld [vmem:[%s410 + $0x88] sm:$0xff]
        %v429 = vld [vmem:[%s410 + $0x90] sm:$0xff]
        %v430 = vld [vmem:[%s410 + $0x98] sm:$0xff]
        %v431 = vld [vmem:[%s410 + $0xa0] sm:$0xf]
        %v432 = vld [vmem:[%s410 + $0xa8] sm:$0xf]
        %437 = vrot.lane.b32.xlu0 %v384, 125
        %v438 = vpop.permute.xlu0 %437
        %439 = vrot.lane.b32.xlu0 %v385, 125
        %v440 = vpop.permute.xlu0 %439
        %441 = vrot.lane.b32.xlu0 %v386, 125
        %v442 = vpop.permute.xlu0 %441
        %443 = vrot.lane.b32.xlu0 %v387, 125
        %v444 = vpop.permute.xlu0 %443
        %vm445 = vcmask 687104
        %v446 = vsel %vm445, %v438, 0
        %v448 = vsel %vm445, %v440, 0
        %v450 = vsel %vm445, %v442, 0
        %v452 = vsel %vm445, %v444, 0
        %vm454 = vcmask 1043456
        %v456 = vsel %vm454, %v431, 0
        %v459 = vsel %vm454, %v432, 0
        %461 = vmatprep.subr.mxu0 %v412
        %462 = vmatpush1.msra.mxu0 %v411
        %463 = vmatprep.subr.mxu0 %v414
        %464 = vmatpush1.msra.mxu0 %v413
        %465 = vmatprep.subr.mxu0 %v416
        %466 = vmatpush1.msra.mxu0 %v415
        %467 = vmatprep.subr.mxu0 %v418
        %468 = vmatpush1.msra.mxu0 %v417
        %469 = vmatprep.subr.mxu0 %v420
        %470 = vmatpush1.msra.mxu0 %v419
        %471 = vmatprep.subr.mxu0 %v422
        %472 = vmatpush1.msra.mxu0 %v421
        %473 = vmatprep.subr.mxu0 %v424
        %474 = vmatpush1.msra.mxu0 %v423
        %475 = vmatprep.subr.mxu0 %v426
        %476 = vmatpush1.msra.mxu0 %v425
        %477 = vmatprep.subr.mxu0 %v428
        %478 = vmatpush1.msra.mxu0 %v427
        %479 = vmatprep.subr.mxu0 %v430
        %480 = vmatpush1.msra.mxu0 %v429
        %481 = vmatprep.subr.mxu0 %v459
        %482 = vmatpush1.msra.mxu0 %v456
        %483 = vmatprep.subr.mxu0 0.0
        %484 = vmatpush1.msra.mxu0 0.0
        %485 = vmatprep.subr.mxu0 0.0
        %486 = vmatpush1.msra.mxu0 0.0
        %487 = vmatprep.subr.mxu0 0.0
        %488 = vmatpush1.msra.mxu0 0.0
        %489 = vmatprep.subr.mxu0 0.0
        %490 = vmatpush1.msra.mxu0 0.0
        %491 = vmatprep.subr.mxu0 0.0
        %492 = vmatpush1.msra.mxu0 0.0
        %493 = vmatprep.subr.mxu0 0.0
        %494 = vmatpush1.msra.mxu0 0.0
        %495 = vmatprep.subr.mxu0 0.0
        %496 = vmatpush1.msra.mxu0 0.0
        %497 = vmatprep.subr.mxu0 0.0
        %498 = vmatpush1.msra.mxu0 0.0
        %499 = vmatprep.subr.mxu0 0.0
        %500 = vmatpush1.msra.mxu0 0.0
        %501 = vmatprep.subr.mxu0 0.0
        %502 = vmatpush1.msra.mxu0 0.0
        %503 = vmatprep.subr.mxu0 0.0
        %504 = vmatpush1.msra.mxu0 0.0
        %505 = vmatprep.subr.mxu0 0.0
        %506 = vmatpush1.msra.mxu0 0.0
        %507 = vmatprep.subr.mxu0 0.0
        %508 = vmatpush1.msra.mxu0 0.0
        %509 = vmatprep.subr.mxu0 0.0
        %510 = vmatpush1.msra.mxu0 0.0
        %511 = vmatprep.subr.mxu0 0.0
        %512 = vmatpush1.msra.mxu0 0.0
        %513 = vmatprep.subr.mxu0 0.0
        %514 = vmatpush1.msra.mxu0 0.0
        %515 = vmatprep.subr.mxu0 0.0
        %516 = vmatpush1.msra.mxu0 0.0
        %517 = vmatprep.subr.mxu0 0.0
        %518 = vmatpush1.msra.mxu0 0.0
        %519 = vmatprep.subr.mxu0 0.0
        %520 = vmatpush1.msra.mxu0 0.0
        %521 = vmatprep.subr.mxu0 0.0
        %522 = vmatpush1.msra.mxu0 0.0
        %523 = vmatprep.subr.mxu0 0.0
        %524 = vmatpush1.msra.mxu0 0.0
        %525 = vmatprep.mubr.f32.mxu0 0.0
        %526 = vmatmul.mubr.f32.gmra.mrb[0].mxu0 %v446
        %v527 = vpop.f32.mrb[0].mxu0
        %v528 = vadd.f32 0.0, %v527
        %v529 = vpop.f32.mrb[0].mxu0
        %v530 = vadd.f32 0.0, %v529
        %531 = vmatprep.mubr.f32.mxu0 0.0
        %532 = vmatmul.mubr.f32.gmra.mrb[0].mxu0 %v448
        %v533 = vpop.f32.mrb[0].mxu0
        %v534 = vadd.f32 0.0, %v533
        %v535 = vpop.f32.mrb[0].mxu0
        %v536 = vadd.f32 0.0, %v535
        %537 = vmatprep.mubr.f32.mxu0 0.0
        %538 = vmatmul.mubr.f32.gmra.mrb[0].mxu0 %v450
        %v539 = vpop.f32.mrb[0].mxu0
        %v540 = vadd.f32 0.0, %v539
        %v541 = vpop.f32.mrb[0].mxu0
        %v542 = vadd.f32 0.0, %v541
        %543 = vmatprep.mubr.f32.mxu0 0.0
        %544 = vmatmul.mubr.f32.gmra.mrb[0].mxu0 %v452
        %v545 = vpop.f32.mrb[0].mxu0
        %v546 = vadd.f32 0.0, %v545
        %v547 = vpop.f32.mrb[0].mxu0
        %v548 = vadd.f32 0.0, %v547
        %549 = vdwg.mxu0
        %v550 = vsel %vm445, %v384, 0
        %v552 = vsel %vm445, %v385, 0
        %v554 = vsel %vm445, %v386, 0
        %v556 = vsel %vm445, %v387, 0
        %v559 = vsel %vm454, %v408, 0
        %v562 = vsel %vm454, %v409, 0
        %564 = vmatprep.subr.mxu0 %v389
        %565 = vmatpush1.msra.mxu0 %v388
        %566 = vmatprep.subr.mxu0 %v391
        %567 = vmatpush1.msra.mxu0 %v390
        %568 = vmatprep.subr.mxu0 %v393
        %569 = vmatpush1.msra.mxu0 %v392
        %570 = vmatprep.subr.mxu0 %v395
        %571 = vmatpush1.msra.mxu0 %v394
        %572 = vmatprep.subr.mxu0 %v397
        %573 = vmatpush1.msra.mxu0 %v396
        %574 = vmatprep.subr.mxu0 %v399
        %575 = vmatpush1.msra.mxu0 %v398
        %576 = vmatprep.subr.mxu0 %v401
        %577 = vmatpush1.msra.mxu0 %v400
        %578 = vmatprep.subr.mxu0 %v403
        %579 = vmatpush1.msra.mxu0 %v402
        %580 = vmatprep.subr.mxu0 %v405
        %581 = vmatpush1.msra.mxu0 %v404
        %582 = vmatprep.subr.mxu0 %v407
        %583 = vmatpush1.msra.mxu0 %v406
        %584 = vmatprep.subr.mxu0 %v562
        %585 = vmatpush1.msra.mxu0 %v559
        %586 = vmatprep.subr.mxu0 0.0
        %587 = vmatpush1.msra.mxu0 0.0
        %588 = vmatprep.subr.mxu0 0.0
        %589 = vmatpush1.msra.mxu0 0.0
        %590 = vmatprep.subr.mxu0 0.0
        %591 = vmatpush1.msra.mxu0 0.0
        %592 = vmatprep.subr.mxu0 0.0
        %593 = vmatpush1.msra.mxu0 0.0
        %594 = vmatprep.subr.mxu0 0.0
        %595 = vmatpush1.msra.mxu0 0.0
        %596 = vmatprep.subr.mxu0 0.0
        %597 = vmatpush1.msra.mxu0 0.0
        %598 = vmatprep.subr.mxu0 0.0
        %599 = vmatpush1.msra.mxu0 0.0
        %600 = vmatprep.subr.mxu0 0.0
        %601 = vmatpush1.msra.mxu0 0.0
        %602 = vmatprep.subr.mxu0 0.0
        %603 = vmatpush1.msra.mxu0 0.0
        %604 = vmatprep.subr.mxu0 0.0
        %605 = vmatpush1.msra.mxu0 0.0
        %606 = vmatprep.subr.mxu0 0.0
        %607 = vmatpush1.msra.mxu0 0.0
        %608 = vmatprep.subr.mxu0 0.0
        %609 = vmatpush1.msra.mxu0 0.0
        %610 = vmatprep.subr.mxu0 0.0
        %611 = vmatpush1.msra.mxu0 0.0
        %612 = vmatprep.subr.mxu0 0.0
        %613 = vmatpush1.msra.mxu0 0.0
        %614 = vmatprep.subr.mxu0 0.0
        %615 = vmatpush1.msra.mxu0 0.0
        %616 = vmatprep.subr.mxu0 0.0
        %617 = vmatpush1.msra.mxu0 0.0
        %618 = vmatprep.subr.mxu0 0.0
        %619 = vmatpush1.msra.mxu0 0.0
        %620 = vmatprep.subr.mxu0 0.0
        %621 = vmatpush1.msra.mxu0 0.0
        %622 = vmatprep.subr.mxu0 0.0
        %623 = vmatpush1.msra.mxu0 0.0
        %624 = vmatprep.subr.mxu0 0.0
        %625 = vmatpush1.msra.mxu0 0.0
        %626 = vmatprep.subr.mxu0 0.0
        %627 = vmatpush1.msra.mxu0 0.0
        %628 = vmatprep.mubr.f32.mxu0 0.0
        %629 = vmatmul.mubr.f32.gmra.mrb[0].mxu0 %v550
        %v630 = vpop.f32.mrb[0].mxu0
        %v631 = vadd.f32 %v528, %v630
        %v632 = vpop.f32.mrb[0].mxu0
        %v633 = vadd.f32 %v530, %v632
        %634 = vmatprep.mubr.f32.mxu0 0.0
        %635 = vmatmul.mubr.f32.gmra.mrb[0].mxu0 %v552
        %v636 = vpop.f32.mrb[0].mxu0
        %v637 = vadd.f32 %v534, %v636
        %v638 = vpop.f32.mrb[0].mxu0
        %v639 = vadd.f32 %v536, %v638
        %640 = vmatprep.mubr.f32.mxu0 0.0
        %641 = vmatmul.mubr.f32.gmra.mrb[0].mxu0 %v554
        %v642 = vpop.f32.mrb[0].mxu0
        %v643 = vadd.f32 %v540, %v642
        %v644 = vpop.f32.mrb[0].mxu0
        %v645 = vadd.f32 %v542, %v644
        %646 = vmatprep.mubr.f32.mxu0 0.0
        %647 = vmatmul.mubr.f32.gmra.mrb[0].mxu0 %v556
        %v648 = vpop.f32.mrb[0].mxu0
        %v649 = vadd.f32 %v546, %v648
        %v650 = vpop.f32.mrb[0].mxu0
        %v651 = vadd.f32 %v548, %v650
        %652 = vdwg.mxu0
        %s653 = scalar_lea.vmem %s1, 352
        %v654 = vld [vmem:[%s653] sm:$0xff]
        %v655 = vld [vmem:[%s653 + $0x8] sm:$0xff]
        %v656 = vld [vmem:[%s653 + $0x10] sm:$0xff]
        %v657 = vld [vmem:[%s653 + $0x18] sm:$0xff]
        %v658 = vld [vmem:[%s653 + $0x20] sm:$0xff]
        %v659 = vld [vmem:[%s653 + $0x28] sm:$0xff]
        %v660 = vld [vmem:[%s653 + $0x30] sm:$0xff]
        %v661 = vld [vmem:[%s653 + $0x38] sm:$0xff]
        %v662 = vld [vmem:[%s653 + $0x40] sm:$0xff]
        %v663 = vld [vmem:[%s653 + $0x48] sm:$0xff]
        %v664 = vld [vmem:[%s653 + $0x50] sm:$0xff]
        %v665 = vld [vmem:[%s653 + $0x58] sm:$0xff]
        %v666 = vld [vmem:[%s653 + $0x60] sm:$0xff]
        %v667 = vld [vmem:[%s653 + $0x68] sm:$0xff]
        %v668 = vld [vmem:[%s653 + $0x70] sm:$0xff]
        %v669 = vld [vmem:[%s653 + $0x78] sm:$0xff]
        %v670 = vld [vmem:[%s653 + $0x80] sm:$0xff]
        %v671 = vld [vmem:[%s653 + $0x88] sm:$0xff]
        %v672 = vld [vmem:[%s653 + $0x90] sm:$0xff]
        %v673 = vld [vmem:[%s653 + $0x98] sm:$0xff]
        %v674 = vld [vmem:[%s653 + $0xa0] sm:$0xf]
        %v675 = vld [vmem:[%s653 + $0xa8] sm:$0xf]
        %676 = vrot.lane.b32.xlu0 %v384, 122
        %v677 = vpop.permute.xlu0 %676
        %678 = vrot.lane.b32.xlu0 %v385, 122
        %v679 = vpop.permute.xlu0 %678
        %680 = vrot.lane.b32.xlu0 %v386, 122
        %v681 = vpop.permute.xlu0 %680
        %682 = vrot.lane.b32.xlu0 %v387, 122
        %v683 = vpop.permute.xlu0 %682
        %v684 = vsel %vm445, %v677, 0
        %v686 = vsel %vm445, %v679, 0
        %v688 = vsel %vm445, %v681, 0
        %v690 = vsel %vm445, %v683, 0
        %v693 = vsel %vm454, %v674, 0
        %v696 = vsel %vm454, %v675, 0
        %698 = vmatprep.subr.mxu0 %v655
        %699 = vmatpush1.msra.mxu0 %v654
        %700 = vmatprep.subr.mxu0 %v657
        %701 = vmatpush1.msra.mxu0 %v656
        %702 = vmatprep.subr.mxu0 %v659
        %703 = vmatpush1.msra.mxu0 %v658
        %704 = vmatprep.subr.mxu0 %v661
        %705 = vmatpush1.msra.mxu0 %v660
        %706 = vmatprep.subr.mxu0 %v663
        %707 = vmatpush1.msra.mxu0 %v662
        %708 = vmatprep.subr.mxu0 %v665
        %709 = vmatpush1.msra.mxu0 %v664
        %710 = vmatprep.subr.mxu0 %v667
        %711 = vmatpush1.msra.mxu0 %v666
        %712 = vmatprep.subr.mxu0 %v669
        %713 = vmatpush1.msra.mxu0 %v668
        %714 = vmatprep.subr.mxu0 %v671
        %715 = vmatpush1.msra.mxu0 %v670
        %716 = vmatprep.subr.mxu0 %v673
        %717 = vmatpush1.msra.mxu0 %v672
        %718 = vmatprep.subr.mxu0 %v696
        %719 = vmatpush1.msra.mxu0 %v693
        %720 = vmatprep.subr.mxu0 0.0
        %721 = vmatpush1.msra.mxu0 0.0
        %722 = vmatprep.subr.mxu0 0.0
        %723 = vmatpush1.msra.mxu0 0.0
        %724 = vmatprep.subr.mxu0 0.0
        %725 = vmatpush1.msra.mxu0 0.0
        %726 = vmatprep.subr.mxu0 0.0
        %727 = vmatpush1.msra.mxu0 0.0
        %728 = vmatprep.subr.mxu0 0.0
        %729 = vmatpush1.msra.mxu0 0.0
        %730 = vmatprep.subr.mxu0 0.0
        %731 = vmatpush1.msra.mxu0 0.0
        %732 = vmatprep.subr.mxu0 0.0
        %733 = vmatpush1.msra.mxu0 0.0
        %734 = vmatprep.subr.mxu0 0.0
        %735 = vmatpush1.msra.mxu0 0.0
        %736 = vmatprep.subr.mxu0 0.0
        %737 = vmatpush1.msra.mxu0 0.0
        %738 = vmatprep.subr.mxu0 0.0
        %739 = vmatpush1.msra.mxu0 0.0
        %740 = vmatprep.subr.mxu0 0.0
        %741 = vmatpush1.msra.mxu0 0.0
        %742 = vmatprep.subr.mxu0 0.0
        %743 = vmatpush1.msra.mxu0 0.0
        %744 = vmatprep.subr.mxu0 0.0
        %745 = vmatpush1.msra.mxu0 0.0
        %746 = vmatprep.subr.mxu0 0.0
        %747 = vmatpush1.msra.mxu0 0.0
        %748 = vmatprep.subr.mxu0 0.0
        %749 = vmatpush1.msra.mxu0 0.0
        %750 = vmatprep.subr.mxu0 0.0
        %751 = vmatpush1.msra.mxu0 0.0
        %752 = vmatprep.subr.mxu0 0.0
        %753 = vmatpush1.msra.mxu0 0.0
        %754 = vmatprep.subr.mxu0 0.0
        %755 = vmatpush1.msra.mxu0 0.0
        %756 = vmatprep.subr.mxu0 0.0
        %757 = vmatpush1.msra.mxu0 0.0
        %758 = vmatprep.subr.mxu0 0.0
        %759 = vmatpush1.msra.mxu0 0.0
        %760 = vmatprep.subr.mxu0 0.0
        %761 = vmatpush1.msra.mxu0 0.0
        %762 = vmatprep.mubr.f32.mxu0 0.0
        %763 = vmatmul.mubr.f32.gmra.mrb[0].mxu0 %v684
        %v764 = vpop.f32.mrb[0].mxu0
        %v765 = vadd.f32 0.0, %v764
        %v766 = vpop.f32.mrb[0].mxu0
        %v767 = vadd.f32 0.0, %v766
        %768 = vmatprep.mubr.f32.mxu0 0.0
        %769 = vmatmul.mubr.f32.gmra.mrb[0].mxu0 %v686
        %v770 = vpop.f32.mrb[0].mxu0
        %v771 = vadd.f32 0.0, %v770
        %v772 = vpop.f32.mrb[0].mxu0
        %v773 = vadd.f32 0.0, %v772
        %774 = vmatprep.mubr.f32.mxu0 0.0
        %775 = vmatmul.mubr.f32.gmra.mrb[0].mxu0 %v688
        %v776 = vpop.f32.mrb[0].mxu0
        %v777 = vadd.f32 0.0, %v776
        %v778 = vpop.f32.mrb[0].mxu0
        %v779 = vadd.f32 0.0, %v778
        %780 = vmatprep.mubr.f32.mxu0 0.0
        %781 = vmatmul.mubr.f32.gmra.mrb[0].mxu0 %v690
        %v782 = vpop.f32.mrb[0].mxu0
        %v783 = vadd.f32 0.0, %v782
        %v784 = vpop.f32.mrb[0].mxu0
        %v785 = vadd.f32 0.0, %v784
        %786 = vdwg.mxu0
        %v787 = vadd.f32 %v631, %v765
        %v788 = vadd.f32 %v633, %v767
        %v789 = vadd.f32 %v637, %v771
        %v790 = vadd.f32 %v639, %v773
        %v791 = vadd.f32 %v643, %v777
        %v792 = vadd.f32 %v645, %v779
        %v793 = vadd.f32 %v649, %v783
        %v794 = vadd.f32 %v651, %v785
        %v795 = vld [vmem:[%s383 + $0x1] sm:$0xff]
        %v796 = vld [vmem:[%s383 + $0x9] sm:$0xff]
        %v797 = vld [vmem:[%s383 + $0x11] sm:$0xff]
        %v798 = vld [vmem:[%s383 + $0x19] sm:$0xf]
        %s799 = scalar_lea.vmem %s1, 528
        %v800 = vld [vmem:[%s799] sm:$0xff]
        %v801 = vld [vmem:[%s799 + $0x8] sm:$0xff]
        %v802 = vld [vmem:[%s799 + $0x10] sm:$0xff]
        %v803 = vld [vmem:[%s799 + $0x18] sm:$0xff]
        %v804 = vld [vmem:[%s799 + $0x20] sm:$0xff]
        %v805 = vld [vmem:[%s799 + $0x28] sm:$0xff]
        %v806 = vld [vmem:[%s799 + $0x30] sm:$0xff]
        %v807 = vld [vmem:[%s799 + $0x38] sm:$0xff]
        %v808 = vld [vmem:[%s799 + $0x40] sm:$0xff]
        %v809 = vld [vmem:[%s799 + $0x48] sm:$0xff]
        %v810 = vld [vmem:[%s799 + $0x50] sm:$0xff]
        %v811 = vld [vmem:[%s799 + $0x58] sm:$0xff]
        %v812 = vld [vmem:[%s799 + $0x60] sm:$0xff]
        %v813 = vld [vmem:[%s799 + $0x68] sm:$0xff]
        %v814 = vld [vmem:[%s799 + $0x70] sm:$0xff]
        %v815 = vld [vmem:[%s799 + $0x78] sm:$0xff]
        %v816 = vld [vmem:[%s799 + $0x80] sm:$0xff]
        %v817 = vld [vmem:[%s799 + $0x88] sm:$0xff]
        %v818 = vld [vmem:[%s799 + $0x90] sm:$0xff]
        %v819 = vld [vmem:[%s799 + $0x98] sm:$0xff]
        %v820 = vld [vmem:[%s799 + $0xa0] sm:$0xf]
        %v821 = vld [vmem:[%s799 + $0xa8] sm:$0xf]
        %v823 = vsel %vm445, %v795, 0
        %v826 = vsel %vm445, %v796, 0
        %v829 = vsel %vm445, %v797, 0
        %v832 = vsel %vm445, %v798, 0
        %v835 = vsel %vm454, %v820, 0
        %v838 = vsel %vm454, %v821, 0
        %840 = vmatprep.subr.mxu0 %v801
        %841 = vmatpush1.msra.mxu0 %v800
        %842 = vmatprep.subr.mxu0 %v803
        %843 = vmatpush1.msra.mxu0 %v802
        %844 = vmatprep.subr.mxu0 %v805
        %845 = vmatpush1.msra.mxu0 %v804
        %846 = vmatprep.subr.mxu0 %v807
        %847 = vmatpush1.msra.mxu0 %v806
        %848 = vmatprep.subr.mxu0 %v809
        %849 = vmatpush1.msra.mxu0 %v808
        %850 = vmatprep.subr.mxu0 %v811
        %851 = vmatpush1.msra.mxu0 %v810
        %852 = vmatprep.subr.mxu0 %v813
        %853 = vmatpush1.msra.mxu0 %v812
        %854 = vmatprep.subr.mxu0 %v815
        %855 = vmatpush1.msra.mxu0 %v814
        %856 = vmatprep.subr.mxu0 %v817
        %857 = vmatpush1.msra.mxu0 %v816
        %858 = vmatprep.subr.mxu0 %v819
        %859 = vmatpush1.msra.mxu0 %v818
        %860 = vmatprep.subr.mxu0 %v838
        %861 = vmatpush1.msra.mxu0 %v835
        %862 = vmatprep.subr.mxu0 0.0
        %863 = vmatpush1.msra.mxu0 0.0
        %864 = vmatprep.subr.mxu0 0.0
        %865 = vmatpush1.msra.mxu0 0.0
        %866 = vmatprep.subr.mxu0 0.0
        %867 = vmatpush1.msra.mxu0 0.0
        %868 = vmatprep.subr.mxu0 0.0
        %869 = vmatpush1.msra.mxu0 0.0
        %870 = vmatprep.subr.mxu0 0.0
        %871 = vmatpush1.msra.mxu0 0.0
        %872 = vmatprep.subr.mxu0 0.0
        %873 = vmatpush1.msra.mxu0 0.0
        %874 = vmatprep.subr.mxu0 0.0
        %875 = vmatpush1.msra.mxu0 0.0
        %876 = vmatprep.subr.mxu0 0.0
        %877 = vmatpush1.msra.mxu0 0.0
        %878 = vmatprep.subr.mxu0 0.0
        %879 = vmatpush1.msra.mxu0 0.0
        %880 = vmatprep.subr.mxu0 0.0
        %881 = vmatpush1.msra.mxu0 0.0
        %882 = vmatprep.subr.mxu0 0.0
        %883 = vmatpush1.msra.mxu0 0.0
        %884 = vmatprep.subr.mxu0 0.0
        %885 = vmatpush1.msra.mxu0 0.0
        %886 = vmatprep.subr.mxu0 0.0
        %887 = vmatpush1.msra.mxu0 0.0
        %888 = vmatprep.subr.mxu0 0.0
        %889 = vmatpush1.msra.mxu0 0.0
        %890 = vmatprep.subr.mxu0 0.0
        %891 = vmatpush1.msra.mxu0 0.0
        %892 = vmatprep.subr.mxu0 0.0
        %893 = vmatpush1.msra.mxu0 0.0
        %894 = vmatprep.subr.mxu0 0.0
        %895 = vmatpush1.msra.mxu0 0.0
        %896 = vmatprep.subr.mxu0 0.0
        %897 = vmatpush1.msra.mxu0 0.0
        %898 = vmatprep.subr.mxu0 0.0
        %899 = vmatpush1.msra.mxu0 0.0
        %900 = vmatprep.subr.mxu0 0.0
        %901 = vmatpush1.msra.mxu0 0.0
        %902 = vmatprep.subr.mxu0 0.0
        %903 = vmatpush1.msra.mxu0 0.0
        %904 = vmatprep.mubr.f32.mxu0 0.0
        %905 = vmatmul.mubr.f32.gmra.mrb[0].mxu0 %v823
        %v906 = vpop.f32.mrb[0].mxu0
        %v907 = vadd.f32 0.0, %v906
        %v908 = vpop.f32.mrb[0].mxu0
        %v909 = vadd.f32 0.0, %v908
        %910 = vmatprep.mubr.f32.mxu0 0.0
        %911 = vmatmul.mubr.f32.gmra.mrb[0].mxu0 %v826
        %v912 = vpop.f32.mrb[0].mxu0
        %v913 = vadd.f32 0.0, %v912
        %v914 = vpop.f32.mrb[0].mxu0
        %v915 = vadd.f32 0.0, %v914
        %916 = vmatprep.mubr.f32.mxu0 0.0
        %917 = vmatmul.mubr.f32.gmra.mrb[0].mxu0 %v829
        %v918 = vpop.f32.mrb[0].mxu0
        %v919 = vadd.f32 0.0, %v918
        %v920 = vpop.f32.mrb[0].mxu0
        %v921 = vadd.f32 0.0, %v920
        %922 = vmatprep.mubr.f32.mxu0 0.0
        %923 = vmatmul.mubr.f32.gmra.mrb[0].mxu0 %v832
        %v924 = vpop.f32.mrb[0].mxu0
        %v925 = vadd.f32 0.0, %v924
        %v926 = vpop.f32.mrb[0].mxu0
        %v927 = vadd.f32 0.0, %v926
        %928 = vdwg.mxu0
        %v929 = vadd.f32 %v787, %v907
        %v930 = vadd.f32 %v788, %v909
        %v931 = vadd.f32 %v789, %v913
        %v932 = vadd.f32 %v790, %v915
        %v933 = vadd.f32 %v791, %v919
        %v934 = vadd.f32 %v792, %v921
        %v935 = vadd.f32 %v793, %v925
        %v936 = vadd.f32 %v794, %v927
        %s937 = scalar_lea.vmem %s1, 704
        %v938 = vld [vmem:[%s937] sm:$0xff]
        %v939 = vld [vmem:[%s937 + $0x8] sm:$0xff]
        %v940 = vld [vmem:[%s937 + $0x10] sm:$0xff]
        %v941 = vld [vmem:[%s937 + $0x18] sm:$0xff]
        %v942 = vld [vmem:[%s937 + $0x20] sm:$0xff]
        %v943 = vld [vmem:[%s937 + $0x28] sm:$0xff]
        %v944 = vld [vmem:[%s937 + $0x30] sm:$0xff]
        %v945 = vld [vmem:[%s937 + $0x38] sm:$0xff]
        %v946 = vld [vmem:[%s937 + $0x40] sm:$0xff]
        %v947 = vld [vmem:[%s937 + $0x48] sm:$0xff]
        %v948 = vld [vmem:[%s937 + $0x50] sm:$0xff]
        %v949 = vld [vmem:[%s937 + $0x58] sm:$0xff]
        %v950 = vld [vmem:[%s937 + $0x60] sm:$0xff]
        %v951 = vld [vmem:[%s937 + $0x68] sm:$0xff]
        %v952 = vld [vmem:[%s937 + $0x70] sm:$0xff]
        %v953 = vld [vmem:[%s937 + $0x78] sm:$0xff]
        %v954 = vld [vmem:[%s937 + $0x80] sm:$0xff]
        %v955 = vld [vmem:[%s937 + $0x88] sm:$0xff]
        %v956 = vld [vmem:[%s937 + $0x90] sm:$0xff]
        %v957 = vld [vmem:[%s937 + $0x98] sm:$0xff]
        %v958 = vld [vmem:[%s937 + $0xa0] sm:$0xf]
        %v959 = vld [vmem:[%s937 + $0xa8] sm:$0xf]
        %960 = vrot.lane.b32.xlu0 %v795, 125
        %v961 = vpop.permute.xlu0 %960
        %962 = vrot.lane.b32.xlu0 %v796, 125
        %v963 = vpop.permute.xlu0 %962
        %964 = vrot.lane.b32.xlu0 %v797, 125
        %v965 = vpop.permute.xlu0 %964
        %966 = vrot.lane.b32.xlu0 %v798, 125
        %v967 = vpop.permute.xlu0 %966
        %v968 = vsel %vm445, %v961, 0
        %v970 = vsel %vm445, %v963, 0
        %v972 = vsel %vm445, %v965, 0
        %v974 = vsel %vm445, %v967, 0
        %v977 = vsel %vm454, %v958, 0
        %v980 = vsel %vm454, %v959, 0
        %982 = vmatprep.subr.mxu0 %v939
        %983 = vmatpush1.msra.mxu0 %v938
        %984 = vmatprep.subr.mxu0 %v941
        %985 = vmatpush1.msra.mxu0 %v940
        %986 = vmatprep.subr.mxu0 %v943
        %987 = vmatpush1.msra.mxu0 %v942
        %988 = vmatprep.subr.mxu0 %v945
        %989 = vmatpush1.msra.mxu0 %v944
        %990 = vmatprep.subr.mxu0 %v947
        %991 = vmatpush1.msra.mxu0 %v946
        %992 = vmatprep.subr.mxu0 %v949
        %993 = vmatpush1.msra.mxu0 %v948
        %994 = vmatprep.subr.mxu0 %v951
        %995 = vmatpush1.msra.mxu0 %v950
        %996 = vmatprep.subr.mxu0 %v953
        %997 = vmatpush1.msra.mxu0 %v952
        %998 = vmatprep.subr.mxu0 %v955
        %999 = vmatpush1.msra.mxu0 %v954
        %1000 = vmatprep.subr.mxu0 %v957
        %1001 = vmatpush1.msra.mxu0 %v956
        %1002 = vmatprep.subr.mxu0 %v980
        %1003 = vmatpush1.msra.mxu0 %v977
        %1004 = vmatprep.subr.mxu0 0.0
        %1005 = vmatpush1.msra.mxu0 0.0
        %1006 = vmatprep.subr.mxu0 0.0
        %1007 = vmatpush1.msra.mxu0 0.0
        %1008 = vmatprep.subr.mxu0 0.0
        %1009 = vmatpush1.msra.mxu0 0.0
        %1010 = vmatprep.subr.mxu0 0.0
        %1011 = vmatpush1.msra.mxu0 0.0
        %1012 = vmatprep.subr.mxu0 0.0
        %1013 = vmatpush1.msra.mxu0 0.0
        %1014 = vmatprep.subr.mxu0 0.0
        %1015 = vmatpush1.msra.mxu0 0.0
        %1016 = vmatprep.subr.mxu0 0.0
        %1017 = vmatpush1.msra.mxu0 0.0
        %1018 = vmatprep.subr.mxu0 0.0
        %1019 = vmatpush1.msra.mxu0 0.0
        %1020 = vmatprep.subr.mxu0 0.0
        %1021 = vmatpush1.msra.mxu0 0.0
        %1022 = vmatprep.subr.mxu0 0.0
        %1023 = vmatpush1.msra.mxu0 0.0
        %1024 = vmatprep.subr.mxu0 0.0
        %1025 = vmatpush1.msra.mxu0 0.0
        %1026 = vmatprep.subr.mxu0 0.0
        %1027 = vmatpush1.msra.mxu0 0.0
        %1028 = vmatprep.subr.mxu0 0.0
        %1029 = vmatpush1.msra.mxu0 0.0
        %1030 = vmatprep.subr.mxu0 0.0
        %1031 = vmatpush1.msra.mxu0 0.0
        %1032 = vmatprep.subr.mxu0 0.0
        %1033 = vmatpush1.msra.mxu0 0.0
        %1034 = vmatprep.subr.mxu0 0.0
        %1035 = vmatpush1.msra.mxu0 0.0
        %1036 = vmatprep.subr.mxu0 0.0
        %1037 = vmatpush1.msra.mxu0 0.0
        %1038 = vmatprep.subr.mxu0 0.0
        %1039 = vmatpush1.msra.mxu0 0.0
        %1040 = vmatprep.subr.mxu0 0.0
        %1041 = vmatpush1.msra.mxu0 0.0
        %1042 = vmatprep.subr.mxu0 0.0
        %1043 = vmatpush1.msra.mxu0 0.0
        %1044 = vmatprep.subr.mxu0 0.0
        %1045 = vmatpush1.msra.mxu0 0.0
        %1046 = vmatprep.mubr.f32.mxu0 0.0
        %1047 = vmatmul.mubr.f32.gmra.mrb[0].mxu0 %v968
        %v1048 = vpop.f32.mrb[0].mxu0
        %v1049 = vadd.f32 0.0, %v1048
        %v1050 = vpop.f32.mrb[0].mxu0
        %v1051 = vadd.f32 0.0, %v1050
        %1052 = vmatprep.mubr.f32.mxu0 0.0
        %1053 = vmatmul.mubr.f32.gmra.mrb[0].mxu0 %v970
        %v1054 = vpop.f32.mrb[0].mxu0
        %v1055 = vadd.f32 0.0, %v1054
        %v1056 = vpop.f32.mrb[0].mxu0
        %v1057 = vadd.f32 0.0, %v1056
        %1058 = vmatprep.mubr.f32.mxu0 0.0
        %1059 = vmatmul.mubr.f32.gmra.mrb[0].mxu0 %v972
        %v1060 = vpop.f32.mrb[0].mxu0
        %v1061 = vadd.f32 0.0, %v1060
        %v1062 = vpop.f32.mrb[0].mxu0
        %v1063 = vadd.f32 0.0, %v1062
        %1064 = vmatprep.mubr.f32.mxu0 0.0
        %1065 = vmatmul.mubr.f32.gmra.mrb[0].mxu0 %v974
        %v1066 = vpop.f32.mrb[0].mxu0
        %v1067 = vadd.f32 0.0, %v1066
        %v1068 = vpop.f32.mrb[0].mxu0
        %v1069 = vadd.f32 0.0, %v1068
        %1070 = vdwg.mxu0
        %v1071 = vadd.f32 %v929, %v1049
        %v1072 = vadd.f32 %v930, %v1051
        %v1073 = vadd.f32 %v931, %v1055
        %v1074 = vadd.f32 %v932, %v1057
        %v1075 = vadd.f32 %v933, %v1061
        %v1076 = vadd.f32 %v934, %v1063
        %v1077 = vadd.f32 %v935, %v1067
        %v1078 = vadd.f32 %v936, %v1069
        %s1079 = scalar_lea.vmem %s1, 880
        %v1080 = vld [vmem:[%s1079] sm:$0xff]
        %v1081 = vld [vmem:[%s1079 + $0x8] sm:$0xff]
        %v1082 = vld [vmem:[%s1079 + $0x10] sm:$0xff]
        %v1083 = vld [vmem:[%s1079 + $0x18] sm:$0xff]
        %v1084 = vld [vmem:[%s1079 + $0x20] sm:$0xff]
        %v1085 = vld [vmem:[%s1079 + $0x28] sm:$0xff]
        %v1086 = vld [vmem:[%s1079 + $0x30] sm:$0xff]
        %v1087 = vld [vmem:[%s1079 + $0x38] sm:$0xff]
        %v1088 = vld [vmem:[%s1079 + $0x40] sm:$0xff]
        %v1089 = vld [vmem:[%s1079 + $0x48] sm:$0xff]
        %v1090 = vld [vmem:[%s1079 + $0x50] sm:$0xff]
        %v1091 = vld [vmem:[%s1079 + $0x58] sm:$0xff]
        %v1092 = vld [vmem:[%s1079 + $0x60] sm:$0xff]
        %v1093 = vld [vmem:[%s1079 + $0x68] sm:$0xff]
        %v1094 = vld [vmem:[%s1079 + $0x70] sm:$0xff]
        %v1095 = vld [vmem:[%s1079 + $0x78] sm:$0xff]
        %v1096 = vld [vmem:[%s1079 + $0x80] sm:$0xff]
        %v1097 = vld [vmem:[%s1079 + $0x88] sm:$0xff]
        %v1098 = vld [vmem:[%s1079 + $0x90] sm:$0xff]
        %v1099 = vld [vmem:[%s1079 + $0x98] sm:$0xff]
        %v1100 = vld [vmem:[%s1079 + $0xa0] sm:$0xf]
        %v1101 = vld [vmem:[%s1079 + $0xa8] sm:$0xf]
        %1102 = vrot.lane.b32.xlu0 %v795, 122
        %v1103 = vpop.permute.xlu0 %1102
        %1104 = vrot.lane.b32.xlu0 %v796, 122
        %v1105 = vpop.permute.xlu0 %1104
        %1106 = vrot.lane.b32.xlu0 %v797, 122
        %v1107 = vpop.permute.xlu0 %1106
        %1108 = vrot.lane.b32.xlu0 %v798, 122
        %v1109 = vpop.permute.xlu0 %1108
        %v1110 = vsel %vm445, %v1103, 0
        %v1112 = vsel %vm445, %v1105, 0
        %v1114 = vsel %vm445, %v1107, 0
        %v1116 = vsel %vm445, %v1109, 0
        %v1119 = vsel %vm454, %v1100, 0
        %v1122 = vsel %vm454, %v1101, 0
        %1124 = vmatprep.subr.mxu0 %v1081
        %1125 = vmatpush1.msra.mxu0 %v1080
        %1126 = vmatprep.subr.mxu0 %v1083
        %1127 = vmatpush1.msra.mxu0 %v1082
        %1128 = vmatprep.subr.mxu0 %v1085
        %1129 = vmatpush1.msra.mxu0 %v1084
        %1130 = vmatprep.subr.mxu0 %v1087
        %1131 = vmatpush1.msra.mxu0 %v1086
        %1132 = vmatprep.subr.mxu0 %v1089
        %1133 = vmatpush1.msra.mxu0 %v1088
        %1134 = vmatprep.subr.mxu0 %v1091
        %1135 = vmatpush1.msra.mxu0 %v1090
        %1136 = vmatprep.subr.mxu0 %v1093
        %1137 = vmatpush1.msra.mxu0 %v1092
        %1138 = vmatprep.subr.mxu0 %v1095
        %1139 = vmatpush1.msra.mxu0 %v1094
        %1140 = vmatprep.subr.mxu0 %v1097
        %1141 = vmatpush1.msra.mxu0 %v1096
        %1142 = vmatprep.subr.mxu0 %v1099
        %1143 = vmatpush1.msra.mxu0 %v1098
        %1144 = vmatprep.subr.mxu0 %v1122
        %1145 = vmatpush1.msra.mxu0 %v1119
        %1146 = vmatprep.subr.mxu0 0.0
        %1147 = vmatpush1.msra.mxu0 0.0
        %1148 = vmatprep.subr.mxu0 0.0
        %1149 = vmatpush1.msra.mxu0 0.0
        %1150 = vmatprep.subr.mxu0 0.0
        %1151 = vmatpush1.msra.mxu0 0.0
        %1152 = vmatprep.subr.mxu0 0.0
        %1153 = vmatpush1.msra.mxu0 0.0
        %1154 = vmatprep.subr.mxu0 0.0
        %1155 = vmatpush1.msra.mxu0 0.0
        %1156 = vmatprep.subr.mxu0 0.0
        %1157 = vmatpush1.msra.mxu0 0.0
        %1158 = vmatprep.subr.mxu0 0.0
        %1159 = vmatpush1.msra.mxu0 0.0
        %1160 = vmatprep.subr.mxu0 0.0
        %1161 = vmatpush1.msra.mxu0 0.0
        %1162 = vmatprep.subr.mxu0 0.0
        %1163 = vmatpush1.msra.mxu0 0.0
        %1164 = vmatprep.subr.mxu0 0.0
        %1165 = vmatpush1.msra.mxu0 0.0
        %1166 = vmatprep.subr.mxu0 0.0
        %1167 = vmatpush1.msra.mxu0 0.0
        %1168 = vmatprep.subr.mxu0 0.0
        %1169 = vmatpush1.msra.mxu0 0.0
        %1170 = vmatprep.subr.mxu0 0.0
        %1171 = vmatpush1.msra.mxu0 0.0
        %1172 = vmatprep.subr.mxu0 0.0
        %1173 = vmatpush1.msra.mxu0 0.0
        %1174 = vmatprep.subr.mxu0 0.0
        %1175 = vmatpush1.msra.mxu0 0.0
        %1176 = vmatprep.subr.mxu0 0.0
        %1177 = vmatpush1.msra.mxu0 0.0
        %1178 = vmatprep.subr.mxu0 0.0
        %1179 = vmatpush1.msra.mxu0 0.0
        %1180 = vmatprep.subr.mxu0 0.0
        %1181 = vmatpush1.msra.mxu0 0.0
        %1182 = vmatprep.subr.mxu0 0.0
        %1183 = vmatpush1.msra.mxu0 0.0
        %1184 = vmatprep.subr.mxu0 0.0
        %1185 = vmatpush1.msra.mxu0 0.0
        %1186 = vmatprep.subr.mxu0 0.0
        %1187 = vmatpush1.msra.mxu0 0.0
        %1188 = vmatprep.mubr.f32.mxu0 0.0
        %1189 = vmatmul.mubr.f32.gmra.mrb[0].mxu0 %v1110
        %v1190 = vpop.f32.mrb[0].mxu0
        %v1191 = vadd.f32 0.0, %v1190
        %v1192 = vpop.f32.mrb[0].mxu0
        %v1193 = vadd.f32 0.0, %v1192
        %1194 = vmatprep.mubr.f32.mxu0 0.0
        %1195 = vmatmul.mubr.f32.gmra.mrb[0].mxu0 %v1112
        %v1196 = vpop.f32.mrb[0].mxu0
        %v1197 = vadd.f32 0.0, %v1196
        %v1198 = vpop.f32.mrb[0].mxu0
        %v1199 = vadd.f32 0.0, %v1198
        %1200 = vmatprep.mubr.f32.mxu0 0.0
        %1201 = vmatmul.mubr.f32.gmra.mrb[0].mxu0 %v1114
        %v1202 = vpop.f32.mrb[0].mxu0
        %v1203 = vadd.f32 0.0, %v1202
        %v1204 = vpop.f32.mrb[0].mxu0
        %v1205 = vadd.f32 0.0, %v1204
        %1206 = vmatprep.mubr.f32.mxu0 0.0
        %1207 = vmatmul.mubr.f32.gmra.mrb[0].mxu0 %v1116
        %v1208 = vpop.f32.mrb[0].mxu0
        %v1209 = vadd.f32 0.0, %v1208
        %v1210 = vpop.f32.mrb[0].mxu0
        %v1211 = vadd.f32 0.0, %v1210
        %1212 = vdwg.mxu0
        %v1213 = vadd.f32 %v1071, %v1191
        %v1214 = vadd.f32 %v1072, %v1193
        %v1215 = vadd.f32 %v1073, %v1197
        %v1216 = vadd.f32 %v1074, %v1199
        %v1217 = vadd.f32 %v1075, %v1203
        %v1218 = vadd.f32 %v1076, %v1205
        %v1219 = vadd.f32 %v1077, %v1209
        %v1220 = vadd.f32 %v1078, %v1211
        %v1221 = vld [vmem:[%s383 + $0x2] sm:$0xff]
        %v1222 = vld [vmem:[%s383 + $0xa] sm:$0xff]
        %v1223 = vld [vmem:[%s383 + $0x12] sm:$0xff]
        %v1224 = vld [vmem:[%s383 + $0x1a] sm:$0xf]
        %s1225 = scalar_lea.vmem %s1, 1056
        %v1226 = vld [vmem:[%s1225] sm:$0xff]
        %v1227 = vld [vmem:[%s1225 + $0x8] sm:$0xff]
        %v1228 = vld [vmem:[%s1225 + $0x10] sm:$0xff]
        %v1229 = vld [vmem:[%s1225 + $0x18] sm:$0xff]
        %v1230 = vld [vmem:[%s1225 + $0x20] sm:$0xff]
        %v1231 = vld [vmem:[%s1225 + $0x28] sm:$0xff]
        %v1232 = vld [vmem:[%s1225 + $0x30] sm:$0xff]
        %v1233 = vld [vmem:[%s1225 + $0x38] sm:$0xff]
        %v1234 = vld [vmem:[%s1225 + $0x40] sm:$0xff]
        %v1235 = vld [vmem:[%s1225 + $0x48] sm:$0xff]
        %v1236 = vld [vmem:[%s1225 + $0x50] sm:$0xff]
        %v1237 = vld [vmem:[%s1225 + $0x58] sm:$0xff]
        %v1238 = vld [vmem:[%s1225 + $0x60] sm:$0xff]
        %v1239 = vld [vmem:[%s1225 + $0x68] sm:$0xff]
        %v1240 = vld [vmem:[%s1225 + $0x70] sm:$0xff]
        %v1241 = vld [vmem:[%s1225 + $0x78] sm:$0xff]
        %v1242 = vld [vmem:[%s1225 + $0x80] sm:$0xff]
        %v1243 = vld [vmem:[%s1225 + $0x88] sm:$0xff]
        %v1244 = vld [vmem:[%s1225 + $0x90] sm:$0xff]
        %v1245 = vld [vmem:[%s1225 + $0x98] sm:$0xff]
        %v1246 = vld [vmem:[%s1225 + $0xa0] sm:$0xf]
        %v1247 = vld [vmem:[%s1225 + $0xa8] sm:$0xf]
        %v1249 = vsel %vm445, %v1221, 0
        %v1252 = vsel %vm445, %v1222, 0
        %v1255 = vsel %vm445, %v1223, 0
        %v1258 = vsel %vm445, %v1224, 0
        %v1261 = vsel %vm454, %v1246, 0
        %v1264 = vsel %vm454, %v1247, 0
        %1266 = vmatprep.subr.mxu0 %v1227
        %1267 = vmatpush1.msra.mxu0 %v1226
        %1268 = vmatprep.subr.mxu0 %v1229
        %1269 = vmatpush1.msra.mxu0 %v1228
        %1270 = vmatprep.subr.mxu0 %v1231
        %1271 = vmatpush1.msra.mxu0 %v1230
        %1272 = vmatprep.subr.mxu0 %v1233
        %1273 = vmatpush1.msra.mxu0 %v1232
        %1274 = vmatprep.subr.mxu0 %v1235
        %1275 = vmatpush1.msra.mxu0 %v1234
        %1276 = vmatprep.subr.mxu0 %v1237
        %1277 = vmatpush1.msra.mxu0 %v1236
        %1278 = vmatprep.subr.mxu0 %v1239
        %1279 = vmatpush1.msra.mxu0 %v1238
        %1280 = vmatprep.subr.mxu0 %v1241
        %1281 = vmatpush1.msra.mxu0 %v1240
        %1282 = vmatprep.subr.mxu0 %v1243
        %1283 = vmatpush1.msra.mxu0 %v1242
        %1284 = vmatprep.subr.mxu0 %v1245
        %1285 = vmatpush1.msra.mxu0 %v1244
        %1286 = vmatprep.subr.mxu0 %v1264
        %1287 = vmatpush1.msra.mxu0 %v1261
        %1288 = vmatprep.subr.mxu0 0.0
        %1289 = vmatpush1.msra.mxu0 0.0
        %1290 = vmatprep.subr.mxu0 0.0
        %1291 = vmatpush1.msra.mxu0 0.0
        %1292 = vmatprep.subr.mxu0 0.0
        %1293 = vmatpush1.msra.mxu0 0.0
        %1294 = vmatprep.subr.mxu0 0.0
        %1295 = vmatpush1.msra.mxu0 0.0
        %1296 = vmatprep.subr.mxu0 0.0
        %1297 = vmatpush1.msra.mxu0 0.0
        %1298 = vmatprep.subr.mxu0 0.0
        %1299 = vmatpush1.msra.mxu0 0.0
        %1300 = vmatprep.subr.mxu0 0.0
        %1301 = vmatpush1.msra.mxu0 0.0
        %1302 = vmatprep.subr.mxu0 0.0
        %1303 = vmatpush1.msra.mxu0 0.0
        %1304 = vmatprep.subr.mxu0 0.0
        %1305 = vmatpush1.msra.mxu0 0.0
        %1306 = vmatprep.subr.mxu0 0.0
        %1307 = vmatpush1.msra.mxu0 0.0
        %1308 = vmatprep.subr.mxu0 0.0
        %1309 = vmatpush1.msra.mxu0 0.0
        %1310 = vmatprep.subr.mxu0 0.0
        %1311 = vmatpush1.msra.mxu0 0.0
        %1312 = vmatprep.subr.mxu0 0.0
        %1313 = vmatpush1.msra.mxu0 0.0
        %1314 = vmatprep.subr.mxu0 0.0
        %1315 = vmatpush1.msra.mxu0 0.0
        %1316 = vmatprep.subr.mxu0 0.0
        %1317 = vmatpush1.msra.mxu0 0.0
        %1318 = vmatprep.subr.mxu0 0.0
        %1319 = vmatpush1.msra.mxu0 0.0
        %1320 = vmatprep.subr.mxu0 0.0
        %1321 = vmatpush1.msra.mxu0 0.0
        %1322 = vmatprep.subr.mxu0 0.0
        %1323 = vmatpush1.msra.mxu0 0.0
        %1324 = vmatprep.subr.mxu0 0.0
        %1325 = vmatpush1.msra.mxu0 0.0
        %1326 = vmatprep.subr.mxu0 0.0
        %1327 = vmatpush1.msra.mxu0 0.0
        %1328 = vmatprep.subr.mxu0 0.0
        %1329 = vmatpush1.msra.mxu0 0.0
        %1330 = vmatprep.mubr.f32.mxu0 0.0
        %1331 = vmatmul.mubr.f32.gmra.mrb[0].mxu0 %v1249
        %v1332 = vpop.f32.mrb[0].mxu0
        %v1333 = vadd.f32 0.0, %v1332
        %v1334 = vpop.f32.mrb[0].mxu0
        %v1335 = vadd.f32 0.0, %v1334
        %1336 = vmatprep.mubr.f32.mxu0 0.0
        %1337 = vmatmul.mubr.f32.gmra.mrb[0].mxu0 %v1252
        %v1338 = vpop.f32.mrb[0].mxu0
        %v1339 = vadd.f32 0.0, %v1338
        %v1340 = vpop.f32.mrb[0].mxu0
        %v1341 = vadd.f32 0.0, %v1340
        %1342 = vmatprep.mubr.f32.mxu0 0.0
        %1343 = vmatmul.mubr.f32.gmra.mrb[0].mxu0 %v1255
        %v1344 = vpop.f32.mrb[0].mxu0
        %v1345 = vadd.f32 0.0, %v1344
        %v1346 = vpop.f32.mrb[0].mxu0
        %v1347 = vadd.f32 0.0, %v1346
        %1348 = vmatprep.mubr.f32.mxu0 0.0
        %1349 = vmatmul.mubr.f32.gmra.mrb[0].mxu0 %v1258
        %v1350 = vpop.f32.mrb[0].mxu0
        %v1351 = vadd.f32 0.0, %v1350
        %v1352 = vpop.f32.mrb[0].mxu0
        %v1353 = vadd.f32 0.0, %v1352
        %1354 = vdwg.mxu0
        %v1355 = vadd.f32 %v1213, %v1333
        %v1356 = vadd.f32 %v1214, %v1335
        %v1357 = vadd.f32 %v1215, %v1339
        %v1358 = vadd.f32 %v1216, %v1341
        %v1359 = vadd.f32 %v1217, %v1345
        %v1360 = vadd.f32 %v1218, %v1347
        %v1361 = vadd.f32 %v1219, %v1351
        %v1362 = vadd.f32 %v1220, %v1353
        %s1363 = scalar_lea.vmem %s1, 1232
        %v1364 = vld [vmem:[%s1363] sm:$0xff]
        %v1365 = vld [vmem:[%s1363 + $0x8] sm:$0xff]
        %v1366 = vld [vmem:[%s1363 + $0x10] sm:$0xff]
        %v1367 = vld [vmem:[%s1363 + $0x18] sm:$0xff]
        %v1368 = vld [vmem:[%s1363 + $0x20] sm:$0xff]
        %v1369 = vld [vmem:[%s1363 + $0x28] sm:$0xff]
        %v1370 = vld [vmem:[%s1363 + $0x30] sm:$0xff]
        %v1371 = vld [vmem:[%s1363 + $0x38] sm:$0xff]
        %v1372 = vld [vmem:[%s1363 + $0x40] sm:$0xff]
        %v1373 = vld [vmem:[%s1363 + $0x48] sm:$0xff]
        %v1374 = vld [vmem:[%s1363 + $0x50] sm:$0xff]
        %v1375 = vld [vmem:[%s1363 + $0x58] sm:$0xff]
        %v1376 = vld [vmem:[%s1363 + $0x60] sm:$0xff]
        %v1377 = vld [vmem:[%s1363 + $0x68] sm:$0xff]
        %v1378 = vld [vmem:[%s1363 + $0x70] sm:$0xff]
        %v1379 = vld [vmem:[%s1363 + $0x78] sm:$0xff]
        %v1380 = vld [vmem:[%s1363 + $0x80] sm:$0xff]
        %v1381 = vld [vmem:[%s1363 + $0x88] sm:$0xff]
        %v1382 = vld [vmem:[%s1363 + $0x90] sm:$0xff]
        %v1383 = vld [vmem:[%s1363 + $0x98] sm:$0xff]
        %v1384 = vld [vmem:[%s1363 + $0xa0] sm:$0xf]
        %v1385 = vld [vmem:[%s1363 + $0xa8] sm:$0xf]
        %1386 = vrot.lane.b32.xlu0 %v1221, 125
        %v1387 = vpop.permute.xlu0 %1386
        %1388 = vrot.lane.b32.xlu0 %v1222, 125
        %v1389 = vpop.permute.xlu0 %1388
        %1390 = vrot.lane.b32.xlu0 %v1223, 125
        %v1391 = vpop.permute.xlu0 %1390
        %1392 = vrot.lane.b32.xlu0 %v1224, 125
        %v1393 = vpop.permute.xlu0 %1392
        %v1394 = vsel %vm445, %v1387, 0
        %v1396 = vsel %vm445, %v1389, 0
        %v1398 = vsel %vm445, %v1391, 0
        %v1400 = vsel %vm445, %v1393, 0
        %v1403 = vsel %vm454, %v1384, 0
        %v1406 = vsel %vm454, %v1385, 0
        %1408 = vmatprep.subr.mxu0 %v1365
        %1409 = vmatpush1.msra.mxu0 %v1364
        %1410 = vmatprep.subr.mxu0 %v1367
        %1411 = vmatpush1.msra.mxu0 %v1366
        %1412 = vmatprep.subr.mxu0 %v1369
        %1413 = vmatpush1.msra.mxu0 %v1368
        %1414 = vmatprep.subr.mxu0 %v1371
        %1415 = vmatpush1.msra.mxu0 %v1370
        %1416 = vmatprep.subr.mxu0 %v1373
        %1417 = vmatpush1.msra.mxu0 %v1372
        %1418 = vmatprep.subr.mxu0 %v1375
        %1419 = vmatpush1.msra.mxu0 %v1374
        %1420 = vmatprep.subr.mxu0 %v1377
        %1421 = vmatpush1.msra.mxu0 %v1376
        %1422 = vmatprep.subr.mxu0 %v1379
        %1423 = vmatpush1.msra.mxu0 %v1378
        %1424 = vmatprep.subr.mxu0 %v1381
        %1425 = vmatpush1.msra.mxu0 %v1380
        %1426 = vmatprep.subr.mxu0 %v1383
        %1427 = vmatpush1.msra.mxu0 %v1382
        %1428 = vmatprep.subr.mxu0 %v1406
        %1429 = vmatpush1.msra.mxu0 %v1403
        %1430 = vmatprep.subr.mxu0 0.0
        %1431 = vmatpush1.msra.mxu0 0.0
        %1432 = vmatprep.subr.mxu0 0.0
        %1433 = vmatpush1.msra.mxu0 0.0
        %1434 = vmatprep.subr.mxu0 0.0
        %1435 = vmatpush1.msra.mxu0 0.0
        %1436 = vmatprep.subr.mxu0 0.0
        %1437 = vmatpush1.msra.mxu0 0.0
        %1438 = vmatprep.subr.mxu0 0.0
        %1439 = vmatpush1.msra.mxu0 0.0
        %1440 = vmatprep.subr.mxu0 0.0
        %1441 = vmatpush1.msra.mxu0 0.0
        %1442 = vmatprep.subr.mxu0 0.0
        %1443 = vmatpush1.msra.mxu0 0.0
        %1444 = vmatprep.subr.mxu0 0.0
        %1445 = vmatpush1.msra.mxu0 0.0
        %1446 = vmatprep.subr.mxu0 0.0
        %1447 = vmatpush1.msra.mxu0 0.0
        %1448 = vmatprep.subr.mxu0 0.0
        %1449 = vmatpush1.msra.mxu0 0.0
        %1450 = vmatprep.subr.mxu0 0.0
        %1451 = vmatpush1.msra.mxu0 0.0
        %1452 = vmatprep.subr.mxu0 0.0
        %1453 = vmatpush1.msra.mxu0 0.0
        %1454 = vmatprep.subr.mxu0 0.0
        %1455 = vmatpush1.msra.mxu0 0.0
        %1456 = vmatprep.subr.mxu0 0.0
        %1457 = vmatpush1.msra.mxu0 0.0
        %1458 = vmatprep.subr.mxu0 0.0
        %1459 = vmatpush1.msra.mxu0 0.0
        %1460 = vmatprep.subr.mxu0 0.0
        %1461 = vmatpush1.msra.mxu0 0.0
        %1462 = vmatprep.subr.mxu0 0.0
        %1463 = vmatpush1.msra.mxu0 0.0
        %1464 = vmatprep.subr.mxu0 0.0
        %1465 = vmatpush1.msra.mxu0 0.0
        %1466 = vmatprep.subr.mxu0 0.0
        %1467 = vmatpush1.msra.mxu0 0.0
        %1468 = vmatprep.subr.mxu0 0.0
        %1469 = vmatpush1.msra.mxu0 0.0
        %1470 = vmatprep.subr.mxu0 0.0
        %1471 = vmatpush1.msra.mxu0 0.0
        %1472 = vmatprep.mubr.f32.mxu0 0.0
        %1473 = vmatmul.mubr.f32.gmra.mrb[0].mxu0 %v1394
        %v1474 = vpop.f32.mrb[0].mxu0
        %v1475 = vadd.f32 0.0, %v1474
        %v1476 = vpop.f32.mrb[0].mxu0
        %v1477 = vadd.f32 0.0, %v1476
        %1478 = vmatprep.mubr.f32.mxu0 0.0
        %1479 = vmatmul.mubr.f32.gmra.mrb[0].mxu0 %v1396
        %v1480 = vpop.f32.mrb[0].mxu0
        %v1481 = vadd.f32 0.0, %v1480
        %v1482 = vpop.f32.mrb[0].mxu0
        %v1483 = vadd.f32 0.0, %v1482
        %1484 = vmatprep.mubr.f32.mxu0 0.0
        %1485 = vmatmul.mubr.f32.gmra.mrb[0].mxu0 %v1398
        %v1486 = vpop.f32.mrb[0].mxu0
        %v1487 = vadd.f32 0.0, %v1486
        %v1488 = vpop.f32.mrb[0].mxu0
        %v1489 = vadd.f32 0.0, %v1488
        %1490 = vmatprep.mubr.f32.mxu0 0.0
        %1491 = vmatmul.mubr.f32.gmra.mrb[0].mxu0 %v1400
        %v1492 = vpop.f32.mrb[0].mxu0
        %v1493 = vadd.f32 0.0, %v1492
        %v1494 = vpop.f32.mrb[0].mxu0
        %v1495 = vadd.f32 0.0, %v1494
        %1496 = vdwg.mxu0
        %v1497 = vadd.f32 %v1355, %v1475
        %v1498 = vadd.f32 %v1356, %v1477
        %v1499 = vadd.f32 %v1357, %v1481
        %v1500 = vadd.f32 %v1358, %v1483
        %v1501 = vadd.f32 %v1359, %v1487
        %v1502 = vadd.f32 %v1360, %v1489
        %v1503 = vadd.f32 %v1361, %v1493
        %v1504 = vadd.f32 %v1362, %v1495
        %s1505 = scalar_lea.vmem %s1, 1408
        %v1506 = vld [vmem:[%s1505] sm:$0xff]
        %v1507 = vld [vmem:[%s1505 + $0x8] sm:$0xff]
        %v1508 = vld [vmem:[%s1505 + $0x10] sm:$0xff]
        %v1509 = vld [vmem:[%s1505 + $0x18] sm:$0xff]
        %v1510 = vld [vmem:[%s1505 + $0x20] sm:$0xff]
        %v1511 = vld [vmem:[%s1505 + $0x28] sm:$0xff]
        %v1512 = vld [vmem:[%s1505 + $0x30] sm:$0xff]
        %v1513 = vld [vmem:[%s1505 + $0x38] sm:$0xff]
        %v1514 = vld [vmem:[%s1505 + $0x40] sm:$0xff]
        %v1515 = vld [vmem:[%s1505 + $0x48] sm:$0xff]
        %v1516 = vld [vmem:[%s1505 + $0x50] sm:$0xff]
        %v1517 = vld [vmem:[%s1505 + $0x58] sm:$0xff]
        %v1518 = vld [vmem:[%s1505 + $0x60] sm:$0xff]
        %v1519 = vld [vmem:[%s1505 + $0x68] sm:$0xff]
        %v1520 = vld [vmem:[%s1505 + $0x70] sm:$0xff]
        %v1521 = vld [vmem:[%s1505 + $0x78] sm:$0xff]
        %v1522 = vld [vmem:[%s1505 + $0x80] sm:$0xff]
        %v1523 = vld [vmem:[%s1505 + $0x88] sm:$0xff]
        %v1524 = vld [vmem:[%s1505 + $0x90] sm:$0xff]
        %v1525 = vld [vmem:[%s1505 + $0x98] sm:$0xff]
        %v1526 = vld [vmem:[%s1505 + $0xa0] sm:$0xf]
        %v1527 = vld [vmem:[%s1505 + $0xa8] sm:$0xf]
        %1528 = vrot.lane.b32.xlu0 %v1221, 122
        %v1529 = vpop.permute.xlu0 %1528
        %1530 = vrot.lane.b32.xlu0 %v1222, 122
        %v1531 = vpop.permute.xlu0 %1530
        %1532 = vrot.lane.b32.xlu0 %v1223, 122
        %v1533 = vpop.permute.xlu0 %1532
        %1534 = vrot.lane.b32.xlu0 %v1224, 122
        %v1535 = vpop.permute.xlu0 %1534
        %v1536 = vsel %vm445, %v1529, 0
        %v1538 = vsel %vm445, %v1531, 0
        %v1540 = vsel %vm445, %v1533, 0
        %v1542 = vsel %vm445, %v1535, 0
        %v1545 = vsel %vm454, %v1526, 0
        %v1548 = vsel %vm454, %v1527, 0
        %1550 = vmatprep.subr.mxu0 %v1507
        %1551 = vmatpush1.msra.mxu0 %v1506
        %1552 = vmatprep.subr.mxu0 %v1509
        %1553 = vmatpush1.msra.mxu0 %v1508
        %1554 = vmatprep.subr.mxu0 %v1511
        %1555 = vmatpush1.msra.mxu0 %v1510
        %1556 = vmatprep.subr.mxu0 %v1513
        %1557 = vmatpush1.msra.mxu0 %v1512
        %1558 = vmatprep.subr.mxu0 %v1515
        %1559 = vmatpush1.msra.mxu0 %v1514
        %1560 = vmatprep.subr.mxu0 %v1517
        %1561 = vmatpush1.msra.mxu0 %v1516
        %1562 = vmatprep.subr.mxu0 %v1519
        %1563 = vmatpush1.msra.mxu0 %v1518
        %1564 = vmatprep.subr.mxu0 %v1521
        %1565 = vmatpush1.msra.mxu0 %v1520
        %1566 = vmatprep.subr.mxu0 %v1523
        %1567 = vmatpush1.msra.mxu0 %v1522
        %1568 = vmatprep.subr.mxu0 %v1525
        %1569 = vmatpush1.msra.mxu0 %v1524
        %1570 = vmatprep.subr.mxu0 %v1548
        %1571 = vmatpush1.msra.mxu0 %v1545
        %1572 = vmatprep.subr.mxu0 0.0
        %1573 = vmatpush1.msra.mxu0 0.0
        %1574 = vmatprep.subr.mxu0 0.0
        %1575 = vmatpush1.msra.mxu0 0.0
        %1576 = vmatprep.subr.mxu0 0.0
        %1577 = vmatpush1.msra.mxu0 0.0
        %1578 = vmatprep.subr.mxu0 0.0
        %1579 = vmatpush1.msra.mxu0 0.0
        %1580 = vmatprep.subr.mxu0 0.0
        %1581 = vmatpush1.msra.mxu0 0.0
        %1582 = vmatprep.subr.mxu0 0.0
        %1583 = vmatpush1.msra.mxu0 0.0
        %1584 = vmatprep.subr.mxu0 0.0
        %1585 = vmatpush1.msra.mxu0 0.0
        %1586 = vmatprep.subr.mxu0 0.0
        %1587 = vmatpush1.msra.mxu0 0.0
        %1588 = vmatprep.subr.mxu0 0.0
        %1589 = vmatpush1.msra.mxu0 0.0
        %1590 = vmatprep.subr.mxu0 0.0
        %1591 = vmatpush1.msra.mxu0 0.0
        %1592 = vmatprep.subr.mxu0 0.0
        %1593 = vmatpush1.msra.mxu0 0.0
        %1594 = vmatprep.subr.mxu0 0.0
        %1595 = vmatpush1.msra.mxu0 0.0
        %1596 = vmatprep.subr.mxu0 0.0
        %1597 = vmatpush1.msra.mxu0 0.0
        %1598 = vmatprep.subr.mxu0 0.0
        %1599 = vmatpush1.msra.mxu0 0.0
        %1600 = vmatprep.subr.mxu0 0.0
        %1601 = vmatpush1.msra.mxu0 0.0
        %1602 = vmatprep.subr.mxu0 0.0
        %1603 = vmatpush1.msra.mxu0 0.0
        %1604 = vmatprep.subr.mxu0 0.0
        %1605 = vmatpush1.msra.mxu0 0.0
        %1606 = vmatprep.subr.mxu0 0.0
        %1607 = vmatpush1.msra.mxu0 0.0
        %1608 = vmatprep.subr.mxu0 0.0
        %1609 = vmatpush1.msra.mxu0 0.0
        %1610 = vmatprep.subr.mxu0 0.0
        %1611 = vmatpush1.msra.mxu0 0.0
        %1612 = vmatprep.subr.mxu0 0.0
        %1613 = vmatpush1.msra.mxu0 0.0
        %1614 = vmatprep.mubr.f32.mxu0 0.0
        %1615 = vmatmul.mubr.f32.gmra.mrb[0].mxu0 %v1536
        %v1616 = vpop.f32.mrb[0].mxu0
        %v1617 = vadd.f32 0.0, %v1616
        %v1618 = vpop.f32.mrb[0].mxu0
        %v1619 = vadd.f32 0.0, %v1618
        %1620 = vmatprep.mubr.f32.mxu0 0.0
        %1621 = vmatmul.mubr.f32.gmra.mrb[0].mxu0 %v1538
        %v1622 = vpop.f32.mrb[0].mxu0
        %v1623 = vadd.f32 0.0, %v1622
        %v1624 = vpop.f32.mrb[0].mxu0
        %v1625 = vadd.f32 0.0, %v1624
        %1626 = vmatprep.mubr.f32.mxu0 0.0
        %1627 = vmatmul.mubr.f32.gmra.mrb[0].mxu0 %v1540
        %v1628 = vpop.f32.mrb[0].mxu0
        %v1629 = vadd.f32 0.0, %v1628
        %v1630 = vpop.f32.mrb[0].mxu0
        %v1631 = vadd.f32 0.0, %v1630
        %1632 = vmatprep.mubr.f32.mxu0 0.0
        %1633 = vmatmul.mubr.f32.gmra.mrb[0].mxu0 %v1542
        %v1634 = vpop.f32.mrb[0].mxu0
        %v1635 = vadd.f32 0.0, %v1634
        %v1636 = vpop.f32.mrb[0].mxu0
        %v1637 = vadd.f32 0.0, %v1636
        %1638 = vdwg.mxu0
        %v1639 = vadd.f32 %v1497, %v1617
        %v1640 = vadd.f32 %v1498, %v1619
        %v1641 = vadd.f32 %v1499, %v1623
        %v1642 = vadd.f32 %v1500, %v1625
        %v1643 = vadd.f32 %v1501, %v1629
        %v1644 = vadd.f32 %v1502, %v1631
        %v1645 = vadd.f32 %v1503, %v1635
        %v1646 = vadd.f32 %v1504, %v1637
        %v1647 = vld [vmem:[%s2] sm:$0x3]
        %v1649 = vlaneseq
        %v1650 = vshrl.u32 %v1649, 7
        %v1651 = vsub.s32 0, %v1650
        %v1652 = vrot.slane %v1647, %v1651
        %v1653 = vlaneseq
        %v1654 = vshrl.u32 %v1653, 7
        %v1655 = vsub.s32 1, %v1654
        %v1656 = vrot.slane %v1647, %v1655
        %v1659 = vadd.f32 %v1639, %v1652
        %v1660 = vadd.f32 %v1640, %v1656
        %v1661 = vadd.f32 %v1641, %v1652
        %v1662 = vadd.f32 %v1642, %v1656
        %v1663 = vadd.f32 %v1643, %v1652
        %v1664 = vadd.f32 %v1644, %v1656
        %v1665 = vadd.f32 %v1645, %v1652
        %v1666 = vadd.f32 %v1646, %v1656
        %v1667 = vmax.f32 %v1659, 0.0
        %v1668 = vmax.f32 %v1660, 0.0
        %v1669 = vmax.f32 %v1661, 0.0
        %v1670 = vmax.f32 %v1662, 0.0
        %v1671 = vmax.f32 %v1663, 0.0
        %v1672 = vmax.f32 %v1664, 0.0
        %v1673 = vmax.f32 %v1665, 0.0
        %v1674 = vmax.f32 %v1666, 0.0
        %v1675 = vld [vmem:[%s3] sm:$0xff]
        %v1676 = vld [vmem:[%s3 + $0x8] sm:$0xff]
        %vm1677 = vcmask 228352
        %v1679 = vsel %vm1677, %v1675, 0
        %v1682 = vsel %vm1677, %v1676, 0
        %v1685 = vsel %vm454, %v1673, 0
        %v1688 = vsel %vm454, %v1674, 0
        %1690 = vmatprep.subr.mxu0 %v1668
        %1691 = vmatpush1.msra.mxu0 %v1667
        %1692 = vmatprep.subr.mxu0 %v1670
        %1693 = vmatpush1.msra.mxu0 %v1669
        %1694 = vmatprep.subr.mxu0 %v1672
        %1695 = vmatpush1.msra.mxu0 %v1671
        %1696 = vmatprep.subr.mxu0 %v1688
        %1697 = vmatpush1.msra.mxu0 %v1685
        %1698 = vmatprep.subr.mxu0 0.0
        %1699 = vmatpush1.msra.mxu0 0.0
        %1700 = vmatprep.subr.mxu0 0.0
        %1701 = vmatpush1.msra.mxu0 0.0
        %1702 = vmatprep.subr.mxu0 0.0
        %1703 = vmatpush1.msra.mxu0 0.0
        %1704 = vmatprep.subr.mxu0 0.0
        %1705 = vmatpush1.msra.mxu0 0.0
        %1706 = vmatprep.subr.mxu0 0.0
        %1707 = vmatpush1.msra.mxu0 0.0
        %1708 = vmatprep.subr.mxu0 0.0
        %1709 = vmatpush1.msra.mxu0 0.0
        %1710 = vmatprep.subr.mxu0 0.0
        %1711 = vmatpush1.msra.mxu0 0.0
        %1712 = vmatprep.subr.mxu0 0.0
        %1713 = vmatpush1.msra.mxu0 0.0
        %1714 = vmatprep.subr.mxu0 0.0
        %1715 = vmatpush1.msra.mxu0 0.0
        %1716 = vmatprep.subr.mxu0 0.0
        %1717 = vmatpush1.msra.mxu0 0.0
        %1718 = vmatprep.subr.mxu0 0.0
        %1719 = vmatpush1.msra.mxu0 0.0
        %1720 = vmatprep.subr.mxu0 0.0
        %1721 = vmatpush1.msra.mxu0 0.0
        %1722 = vmatprep.subr.mxu0 0.0
        %1723 = vmatpush1.msra.mxu0 0.0
        %1724 = vmatprep.subr.mxu0 0.0
        %1725 = vmatpush1.msra.mxu0 0.0
        %1726 = vmatprep.subr.mxu0 0.0
        %1727 = vmatpush1.msra.mxu0 0.0
        %1728 = vmatprep.subr.mxu0 0.0
        %1729 = vmatpush1.msra.mxu0 0.0
        %1730 = vmatprep.subr.mxu0 0.0
        %1731 = vmatpush1.msra.mxu0 0.0
        %1732 = vmatprep.subr.mxu0 0.0
        %1733 = vmatpush1.msra.mxu0 0.0
        %1734 = vmatprep.subr.mxu0 0.0
        %1735 = vmatpush1.msra.mxu0 0.0
        %1736 = vmatprep.subr.mxu0 0.0
        %1737 = vmatpush1.msra.mxu0 0.0
        %1738 = vmatprep.subr.mxu0 0.0
        %1739 = vmatpush1.msra.mxu0 0.0
        %1740 = vmatprep.subr.mxu0 0.0
        %1741 = vmatpush1.msra.mxu0 0.0
        %1742 = vmatprep.subr.mxu0 0.0
        %1743 = vmatpush1.msra.mxu0 0.0
        %1744 = vmatprep.subr.mxu0 0.0
        %1745 = vmatpush1.msra.mxu0 0.0
        %1746 = vmatprep.subr.mxu0 0.0
        %1747 = vmatpush1.msra.mxu0 0.0
        %1748 = vmatprep.subr.mxu0 0.0
        %1749 = vmatpush1.msra.mxu0 0.0
        %1750 = vmatprep.subr.mxu0 0.0
        %1751 = vmatpush1.msra.mxu0 0.0
        %1752 = vmatprep.subr.mxu0 0.0
        %1753 = vmatpush1.msra.mxu0 0.0
        %1754 = vmatprep.mubr.f32.mxu0 0.0
        %1755 = vmatmul.mubr.f32.gmra.mrb[0].mxu0 %v1679
        %v1756 = vpop.f32.mrb[0].mxu0
        %v1757 = vadd.f32 0.0, %v1756
        %v1758 = vpop.f32.mrb[0].mxu0
        %v1759 = vadd.f32 0.0, %v1758
        %1760 = vmatprep.mubr.f32.mxu0 0.0
        %1761 = vmatmul.mubr.f32.gmra.mrb[0].mxu0 %v1682
        %v1762 = vpop.f32.mrb[0].mxu0
        %v1763 = vadd.f32 0.0, %v1762
        %v1764 = vpop.f32.mrb[0].mxu0
        %v1765 = vadd.f32 0.0, %v1764
        %1766 = vdwg.mxu0
        %s1767 = scalar_lea.vmem %s3, 16
        %v1768 = vld [vmem:[%s1767] sm:$0xff]
        %v1769 = vld [vmem:[%s1767 + $0x8] sm:$0xff]
        %v1771 = vsel %vm1677, %v1768, 0
        %v1774 = vsel %vm1677, %v1769, 0
        %1776 = vmatprep.subr.mxu0 %v1668
        %1777 = vmatpush1.msra.mxu0 %v1667
        %1778 = vmatprep.subr.mxu0 %v1670
        %1779 = vmatpush1.msra.mxu0 %v1669
        %1780 = vmatprep.subr.mxu0 %v1672
        %1781 = vmatpush1.msra.mxu0 %v1671
        %1782 = vmatprep.subr.mxu0 %v1688
        %1783 = vmatpush1.msra.mxu0 %v1685
        %1784 = vmatprep.subr.mxu0 0.0
        %1785 = vmatpush1.msra.mxu0 0.0
        %1786 = vmatprep.subr.mxu0 0.0
        %1787 = vmatpush1.msra.mxu0 0.0
        %1788 = vmatprep.subr.mxu0 0.0
        %1789 = vmatpush1.msra.mxu0 0.0
        %1790 = vmatprep.subr.mxu0 0.0
        %1791 = vmatpush1.msra.mxu0 0.0
        %1792 = vmatprep.subr.mxu0 0.0
        %1793 = vmatpush1.msra.mxu0 0.0
        %1794 = vmatprep.subr.mxu0 0.0
        %1795 = vmatpush1.msra.mxu0 0.0
        %1796 = vmatprep.subr.mxu0 0.0
        %1797 = vmatpush1.msra.mxu0 0.0
        %1798 = vmatprep.subr.mxu0 0.0
        %1799 = vmatpush1.msra.mxu0 0.0
        %1800 = vmatprep.subr.mxu0 0.0
        %1801 = vmatpush1.msra.mxu0 0.0
        %1802 = vmatprep.subr.mxu0 0.0
        %1803 = vmatpush1.msra.mxu0 0.0
        %1804 = vmatprep.subr.mxu0 0.0
        %1805 = vmatpush1.msra.mxu0 0.0
        %1806 = vmatprep.subr.mxu0 0.0
        %1807 = vmatpush1.msra.mxu0 0.0
        %1808 = vmatprep.subr.mxu0 0.0
        %1809 = vmatpush1.msra.mxu0 0.0
        %1810 = vmatprep.subr.mxu0 0.0
        %1811 = vmatpush1.msra.mxu0 0.0
        %1812 = vmatprep.subr.mxu0 0.0
        %1813 = vmatpush1.msra.mxu0 0.0
        %1814 = vmatprep.subr.mxu0 0.0
        %1815 = vmatpush1.msra.mxu0 0.0
        %1816 = vmatprep.subr.mxu0 0.0
        %1817 = vmatpush1.msra.mxu0 0.0
        %1818 = vmatprep.subr.mxu0 0.0
        %1819 = vmatpush1.msra.mxu0 0.0
        %1820 = vmatprep.subr.mxu0 0.0
        %1821 = vmatpush1.msra.mxu0 0.0
        %1822 = vmatprep.subr.mxu0 0.0
        %1823 = vmatpush1.msra.mxu0 0.0
        %1824 = vmatprep.subr.mxu0 0.0
        %1825 = vmatpush1.msra.mxu0 0.0
        %1826 = vmatprep.subr.mxu0 0.0
        %1827 = vmatpush1.msra.mxu0 0.0
        %1828 = vmatprep.subr.mxu0 0.0
        %1829 = vmatpush1.msra.mxu0 0.0
        %1830 = vmatprep.subr.mxu0 0.0
        %1831 = vmatpush1.msra.mxu0 0.0
        %1832 = vmatprep.subr.mxu0 0.0
        %1833 = vmatpush1.msra.mxu0 0.0
        %1834 = vmatprep.subr.mxu0 0.0
        %1835 = vmatpush1.msra.mxu0 0.0
        %1836 = vmatprep.subr.mxu0 0.0
        %1837 = vmatpush1.msra.mxu0 0.0
        %1838 = vmatprep.subr.mxu0 0.0
        %1839 = vmatpush1.msra.mxu0 0.0
        %1840 = vmatprep.mubr.f32.mxu0 0.0
        %1841 = vmatmul.mubr.f32.gmra.mrb[0].mxu0 %v1771
        %v1842 = vpop.f32.mrb[0].mxu0
        %v1843 = vadd.f32 0.0, %v1842
        %v1844 = vpop.f32.mrb[0].mxu0
        %v1845 = vadd.f32 0.0, %v1844
        %1846 = vmatprep.mubr.f32.mxu0 0.0
        %1847 = vmatmul.mubr.f32.gmra.mrb[0].mxu0 %v1774
        %v1848 = vpop.f32.mrb[0].mxu0
        %v1849 = vadd.f32 0.0, %v1848
        %v1850 = vpop.f32.mrb[0].mxu0
        %v1851 = vadd.f32 0.0, %v1850
        %1852 = vdwg.mxu0
        %v1853 = vmax.f32 %v1757, %v1843
        %v1854 = vmax.f32 %v1759, %v1845
        %v1855 = vmax.f32 %v1763, %v1849
        %v1856 = vmax.f32 %v1765, %v1851
        %v1857 = vld [vmem:[%s4] sm:$0xff]
        %v1858 = vld [vmem:[%s4 + $0x8] sm:$0xff]
        %v1859 = vld [vmem:[%s4 + $0x10] sm:$0xff]
        %v1860 = vld [vmem:[%s4 + $0x18] sm:$0xff]
        %v1861 = vld [vmem:[%s4 + $0x20] sm:$0xff]
        %v1862 = vld [vmem:[%s4 + $0x28] sm:$0xff]
        %v1863 = vld [vmem:[%s4 + $0x30] sm:$0xff]
        %v1864 = vld [vmem:[%s4 + $0x38] sm:$0xff]
        %v1865 = vld [vmem:[%s4 + $0x40] sm:$0xff]
        %v1866 = vld [vmem:[%s4 + $0x48] sm:$0xff]
        %v1867 = vld [vmem:[%s4 + $0x50] sm:$0xff]
        %v1868 = vld [vmem:[%s4 + $0x58] sm:$0xff]
        %v1869 = vld [vmem:[%s4 + $0x60] sm:$0xff]
        %v1870 = vld [vmem:[%s4 + $0x68] sm:$0xff]
        %v1871 = vld [vmem:[%s4 + $0x70] sm:$0xff]
        %v1872 = vld [vmem:[%s4 + $0x78] sm:$0xff]
        %v1873 = vld [vmem:[%s4 + $0x80] sm:$0xff]
        %v1874 = vld [vmem:[%s4 + $0x88] sm:$0xff]
        %v1875 = vld [vmem:[%s4 + $0x90] sm:$0xff]
        %v1876 = vld [vmem:[%s4 + $0x98] sm:$0xff]
        %v1877 = vld [vmem:[%s4 + $0xa0] sm:$0xff]
        %vm1878 = vcmask 326656
        %v1880 = vsel %vm1878, %v1854, 0
        %v1883 = vsel %vm1878, %v1856, 0
        %1885 = vmatprep.subr.mxu0 0.0
        %1886 = vmatpush1.msra.mxu0 %v1857
        %1887 = vmatprep.subr.mxu0 0.0
        %1888 = vmatpush1.msra.mxu0 %v1858
        %1889 = vmatprep.subr.mxu0 0.0
        %1890 = vmatpush1.msra.mxu0 %v1859
        %1891 = vmatprep.subr.mxu0 0.0
        %1892 = vmatpush1.msra.mxu0 %v1860
        %1893 = vmatprep.subr.mxu0 0.0
        %1894 = vmatpush1.msra.mxu0 %v1861
        %1895 = vmatprep.subr.mxu0 0.0
        %1896 = vmatpush1.msra.mxu0 %v1862
        %1897 = vmatprep.subr.mxu0 0.0
        %1898 = vmatpush1.msra.mxu0 %v1863
        %1899 = vmatprep.subr.mxu0 0.0
        %1900 = vmatpush1.msra.mxu0 %v1864
        %1901 = vmatprep.subr.mxu0 0.0
        %1902 = vmatpush1.msra.mxu0 %v1865
        %1903 = vmatprep.subr.mxu0 0.0
        %1904 = vmatpush1.msra.mxu0 %v1866
        %1905 = vmatprep.subr.mxu0 0.0
        %1906 = vmatpush1.msra.mxu0 %v1867
        %1907 = vmatprep.subr.mxu0 0.0
        %1908 = vmatpush1.msra.mxu0 %v1868
        %1909 = vmatprep.subr.mxu0 0.0
        %1910 = vmatpush1.msra.mxu0 %v1869
        %1911 = vmatprep.subr.mxu0 0.0
        %1912 = vmatpush1.msra.mxu0 %v1870
        %1913 = vmatprep.subr.mxu0 0.0
        %1914 = vmatpush1.msra.mxu0 %v1871
        %1915 = vmatprep.subr.mxu0 0.0
        %1916 = vmatpush1.msra.mxu0 %v1872
        %1917 = vmatprep.subr.mxu0 0.0
        %1918 = vmatpush1.msra.mxu0 %v1873
        %1919 = vmatprep.subr.mxu0 0.0
        %1920 = vmatpush1.msra.mxu0 %v1874
        %1921 = vmatprep.subr.mxu0 0.0
        %1922 = vmatpush1.msra.mxu0 %v1875
        %1923 = vmatprep.subr.mxu0 0.0
        %1924 = vmatpush1.msra.mxu0 %v1876
        %1925 = vmatprep.subr.mxu0 0.0
        %1926 = vmatpush1.msra.mxu0 %v1877
        %1927 = vmatprep.subr.mxu0 0.0
        %1928 = vmatpush1.msra.mxu0 0.0
        %1929 = vmatprep.subr.mxu0 0.0
        %1930 = vmatpush1.msra.mxu0 0.0
        %1931 = vmatprep.subr.mxu0 0.0
        %1932 = vmatpush1.msra.mxu0 0.0
        %1933 = vmatprep.subr.mxu0 0.0
        %1934 = vmatpush1.msra.mxu0 0.0
        %1935 = vmatprep.subr.mxu0 0.0
        %1936 = vmatpush1.msra.mxu0 0.0
        %1937 = vmatprep.subr.mxu0 0.0
        %1938 = vmatpush1.msra.mxu0 0.0
        %1939 = vmatprep.subr.mxu0 0.0
        %1940 = vmatpush1.msra.mxu0 0.0
        %1941 = vmatprep.subr.mxu0 0.0
        %1942 = vmatpush1.msra.mxu0 0.0
        %1943 = vmatprep.subr.mxu0 0.0
        %1944 = vmatpush1.msra.mxu0 0.0
        %1945 = vmatprep.subr.mxu0 0.0
        %1946 = vmatpush1.msra.mxu0 0.0
        %1947 = vmatprep.subr.mxu0 0.0
        %1948 = vmatpush1.msra.mxu0 0.0
        %1949 = vmatprep.mubr.f32.mxu0 %v1880
        %1950 = vmatmul.mubr.f32.gmra.mrb[0].mxu0 %v1853
        %v1951 = vpop.f32.mrb[0].mxu0
        %v1952 = vadd.f32 0.0, %v1951
        %v1953 = vpop.f32.mrb[0].mxu0
        %1954 = vmatprep.mubr.f32.mxu0 %v1883
        %1955 = vmatmul.mubr.f32.gmra.mrb[0].mxu0 %v1855
        %v1956 = vpop.f32.mrb[0].mxu0
        %v1957 = vadd.f32 0.0, %v1956
        %v1958 = vpop.f32.mrb[0].mxu0
        %1959 = vdwg.mxu0
        %s1960 = scalar_lea.vmem %s4, 168
        %v1961 = vld [vmem:[%s1960] sm:$0xff]
        %v1962 = vld [vmem:[%s1960 + $0x8] sm:$0xff]
        %v1963 = vld [vmem:[%s1960 + $0x10] sm:$0xff]
        %v1964 = vld [vmem:[%s1960 + $0x18] sm:$0xff]
        %v1965 = vld [vmem:[%s1960 + $0x20] sm:$0xff]
        %v1966 = vld [vmem:[%s1960 + $0x28] sm:$0xff]
        %v1967 = vld [vmem:[%s1960 + $0x30] sm:$0xff]
        %v1968 = vld [vmem:[%s1960 + $0x38] sm:$0xff]
        %v1969 = vld [vmem:[%s1960 + $0x40] sm:$0xff]
        %v1970 = vld [vmem:[%s1960 + $0x48] sm:$0xff]
        %v1971 = vld [vmem:[%s1960 + $0x50] sm:$0xff]
        %v1972 = vld [vmem:[%s1960 + $0x58] sm:$0xff]
        %v1973 = vld [vmem:[%s1960 + $0x60] sm:$0xff]
        %v1974 = vld [vmem:[%s1960 + $0x68] sm:$0xff]
        %v1975 = vld [vmem:[%s1960 + $0x70] sm:$0xff]
        %v1976 = vld [vmem:[%s1960 + $0x78] sm:$0xff]
        %v1977 = vld [vmem:[%s1960 + $0x80] sm:$0xff]
        %v1978 = vld [vmem:[%s1960 + $0x88] sm:$0xff]
        %v1979 = vld [vmem:[%s1960 + $0x90] sm:$0xff]
        %v1980 = vld [vmem:[%s1960 + $0x98] sm:$0xff]
        %v1981 = vld [vmem:[%s1960 + $0xa0] sm:$0xff]
        %1982 = vmatprep.subr.mxu0 0.0
        %1983 = vmatpush1.msra.mxu0 %v1961
        %1984 = vmatprep.subr.mxu0 0.0
        %1985 = vmatpush1.msra.mxu0 %v1962
        %1986 = vmatprep.subr.mxu0 0.0
        %1987 = vmatpush1.msra.mxu0 %v1963
        %1988 = vmatprep.subr.mxu0 0.0
        %1989 = vmatpush1.msra.mxu0 %v1964
        %1990 = vmatprep.subr.mxu0 0.0
        %1991 = vmatpush1.msra.mxu0 %v1965
        %1992 = vmatprep.subr.mxu0 0.0
        %1993 = vmatpush1.msra.mxu0 %v1966
        %1994 = vmatprep.subr.mxu0 0.0
        %1995 = vmatpush1.msra.mxu0 %v1967
        %1996 = vmatprep.subr.mxu0 0.0
        %1997 = vmatpush1.msra.mxu0 %v1968
        %1998 = vmatprep.subr.mxu0 0.0
        %1999 = vmatpush1.msra.mxu0 %v1969
        %2000 = vmatprep.subr.mxu0 0.0
        %2001 = vmatpush1.msra.mxu0 %v1970
        %2002 = vmatprep.subr.mxu0 0.0
        %2003 = vmatpush1.msra.mxu0 %v1971
        %2004 = vmatprep.subr.mxu0 0.0
        %2005 = vmatpush1.msra.mxu0 %v1972
        %2006 = vmatprep.subr.mxu0 0.0
        %2007 = vmatpush1.msra.mxu0 %v1973
        %2008 = vmatprep.subr.mxu0 0.0
        %2009 = vmatpush1.msra.mxu0 %v1974
        %2010 = vmatprep.subr.mxu0 0.0
        %2011 = vmatpush1.msra.mxu0 %v1975
        %2012 = vmatprep.subr.mxu0 0.0
        %2013 = vmatpush1.msra.mxu0 %v1976
        %2014 = vmatprep.subr.mxu0 0.0
        %2015 = vmatpush1.msra.mxu0 %v1977
        %2016 = vmatprep.subr.mxu0 0.0
        %2017 = vmatpush1.msra.mxu0 %v1978
        %2018 = vmatprep.subr.mxu0 0.0
        %2019 = vmatpush1.msra.mxu0 %v1979
        %2020 = vmatprep.subr.mxu0 0.0
        %2021 = vmatpush1.msra.mxu0 %v1980
        %2022 = vmatprep.subr.mxu0 0.0
        %2023 = vmatpush1.msra.mxu0 %v1981
        %2024 = vmatprep.subr.mxu0 0.0
        %2025 = vmatpush1.msra.mxu0 0.0
        %2026 = vmatprep.subr.mxu0 0.0
        %2027 = vmatpush1.msra.mxu0 0.0
        %2028 = vmatprep.subr.mxu0 0.0
        %2029 = vmatpush1.msra.mxu0 0.0
        %2030 = vmatprep.subr.mxu0 0.0
        %2031 = vmatpush1.msra.mxu0 0.0
        %2032 = vmatprep.subr.mxu0 0.0
        %2033 = vmatpush1.msra.mxu0 0.0
        %2034 = vmatprep.subr.mxu0 0.0
        %2035 = vmatpush1.msra.mxu0 0.0
        %2036 = vmatprep.subr.mxu0 0.0
        %2037 = vmatpush1.msra.mxu0 0.0
        %2038 = vmatprep.subr.mxu0 0.0
        %2039 = vmatpush1.msra.mxu0 0.0
        %2040 = vmatprep.subr.mxu0 0.0
        %2041 = vmatpush1.msra.mxu0 0.0
        %2042 = vmatprep.subr.mxu0 0.0
        %2043 = vmatpush1.msra.mxu0 0.0
        %2044 = vmatprep.subr.mxu0 0.0
        %2045 = vmatpush1.msra.mxu0 0.0
        %2046 = vmatprep.mubr.f32.mxu0 %v1880
        %2047 = vmatmul.mubr.f32.gmra.mrb[0].mxu0 %v1853
        %v2048 = vpop.f32.mrb[0].mxu0
        %v2049 = vadd.f32 0.0, %v2048
        %v2050 = vpop.f32.mrb[0].mxu0
        %2051 = vmatprep.mubr.f32.mxu0 %v1883
        %2052 = vmatmul.mubr.f32.gmra.mrb[0].mxu0 %v1855
        %v2053 = vpop.f32.mrb[0].mxu0
        %v2054 = vadd.f32 0.0, %v2053
        %v2055 = vpop.f32.mrb[0].mxu0
        %2056 = vdwg.mxu0
        %v2057 = vmax.f32 %v1952, %v2049
        %v2058 = vmax.f32 %v1957, %v2054
        %vm2059 = vcmask 785408
        %2060 = vst.msk [vmem:[#allocation2] sm:$0xff] %vm2059, %v2057
        %2061 = vst.msk [vmem:[#allocation2 + $0x8] sm:$0xff] %vm2059, %v2058
        %v2062 = vld [vmem:[#allocation2] sm:$0xff]
        %v2063 = vld [vmem:[#allocation2 + $0x8] sm:$0x3f]
        %v2064 = vld [vmem:[%s5] sm:$0xff]
        %v2065 = vld [vmem:[%s5 + $0x8] sm:$0xff]
        %v2066 = vld [vmem:[%s5 + $0x10] sm:$0xff]
        %v2067 = vld [vmem:[%s5 + $0x18] sm:$0xff]
        %v2068 = vld [vmem:[%s5 + $0x20] sm:$0xff]
        %v2069 = vld [vmem:[%s5 + $0x28] sm:$0xff]
        %v2070 = vld [vmem:[%s5 + $0x30] sm:$0xff]
        %v2071 = vld [vmem:[%s5 + $0x38] sm:$0xff]
        %v2072 = vld [vmem:[%s5 + $0x40] sm:$0xff]
        %v2073 = vld [vmem:[%s5 + $0x48] sm:$0xff]
        %v2074 = vld [vmem:[%s5 + $0x50] sm:$0xff]
        %v2075 = vld [vmem:[%s5 + $0x58] sm:$0xff]
        %v2076 = vld [vmem:[%s5 + $0x60] sm:$0xff]
        %v2077 = vld [vmem:[%s5 + $0x68] sm:$0xff]
        %v2078 = vld [vmem:[%s5 + $0x70] sm:$0xff]
        %v2079 = vld [vmem:[%s5 + $0x78] sm:$0xff]
        %v2080 = vld [vmem:[%s5 + $0x80] sm:$0xff]
        %v2081 = vld [vmem:[%s5 + $0x88] sm:$0xff]
        %v2082 = vld [vmem:[%s5 + $0x90] sm:$0xff]
        %v2083 = vld [vmem:[%s5 + $0x98] sm:$0xff]
        %v2084 = vld [vmem:[%s5 + $0xa0] sm:$0xf]
        %v2085 = vld [vmem:[%s5 + $0xa8] sm:$0xf]
        %s2086 = scalar_lea.vmem %s5, 176
        %v2087 = vld [vmem:[%s2086] sm:$0xff]
        %v2088 = vld [vmem:[%s2086 + $0x8] sm:$0xff]
        %v2089 = vld [vmem:[%s2086 + $0x10] sm:$0xff]
        %v2090 = vld [vmem:[%s2086 + $0x18] sm:$0xff]
        %v2091 = vld [vmem:[%s2086 + $0x20] sm:$0xff]
        %v2092 = vld [vmem:[%s2086 + $0x28] sm:$0xff]
        %v2093 = vld [vmem:[%s2086 + $0x30] sm:$0xff]
        %v2094 = vld [vmem:[%s2086 + $0x38] sm:$0xff]
        %v2095 = vld [vmem:[%s2086 + $0x40] sm:$0xff]
        %v2096 = vld [vmem:[%s2086 + $0x48] sm:$0xff]
        %v2097 = vld [vmem:[%s2086 + $0x50] sm:$0xff]
        %v2098 = vld [vmem:[%s2086 + $0x58] sm:$0xff]
        %v2099 = vld [vmem:[%s2086 + $0x60] sm:$0xff]
        %v2100 = vld [vmem:[%s2086 + $0x68] sm:$0xff]
        %v2101 = vld [vmem:[%s2086 + $0x70] sm:$0xff]
        %v2102 = vld [vmem:[%s2086 + $0x78] sm:$0xff]
        %v2103 = vld [vmem:[%s2086 + $0x80] sm:$0xff]
        %v2104 = vld [vmem:[%s2086 + $0x88] sm:$0xff]
        %v2105 = vld [vmem:[%s2086 + $0x90] sm:$0xff]
        %v2106 = vld [vmem:[%s2086 + $0x98] sm:$0xff]
        %v2107 = vld [vmem:[%s2086 + $0xa0] sm:$0xf]
        %v2108 = vld [vmem:[%s2086 + $0xa8] sm:$0xf]
        %2111 = vrot.lane.b32.xlu0 %v2062, 122
        %v2112 = vpop.permute.xlu0 %2111
        %2113 = vrot.lane.b32.xlu0 %v2063, 122
        %v2114 = vpop.permute.xlu0 %2113
        %v2115 = vsel %vm445, %v2112, 0
        %v2117 = vsel %vm445, %v2114, 0
        %v2120 = vsel %vm454, %v2107, 0
        %v2123 = vsel %vm454, %v2108, 0
        %2125 = vmatprep.subr.mxu0 %v2088
        %2126 = vmatpush1.msra.mxu0 %v2087
        %2127 = vmatprep.subr.mxu0 %v2090
        %2128 = vmatpush1.msra.mxu0 %v2089
        %2129 = vmatprep.subr.mxu0 %v2092
        %2130 = vmatpush1.msra.mxu0 %v2091
        %2131 = vmatprep.subr.mxu0 %v2094
        %2132 = vmatpush1.msra.mxu0 %v2093
        %2133 = vmatprep.subr.mxu0 %v2096
        %2134 = vmatpush1.msra.mxu0 %v2095
        %2135 = vmatprep.subr.mxu0 %v2098
        %2136 = vmatpush1.msra.mxu0 %v2097
        %2137 = vmatprep.subr.mxu0 %v2100
        %2138 = vmatpush1.msra.mxu0 %v2099
        %2139 = vmatprep.subr.mxu0 %v2102
        %2140 = vmatpush1.msra.mxu0 %v2101
        %2141 = vmatprep.subr.mxu0 %v2104
        %2142 = vmatpush1.msra.mxu0 %v2103
        %2143 = vmatprep.subr.mxu0 %v2106
        %2144 = vmatpush1.msra.mxu0 %v2105
        %2145 = vmatprep.subr.mxu0 %v2123
        %2146 = vmatpush1.msra.mxu0 %v2120
        %2147 = vmatprep.subr.mxu0 0.0
        %2148 = vmatpush1.msra.mxu0 0.0
        %2149 = vmatprep.subr.mxu0 0.0
        %2150 = vmatpush1.msra.mxu0 0.0
        %2151 = vmatprep.subr.mxu0 0.0
        %2152 = vmatpush1.msra.mxu0 0.0
        %2153 = vmatprep.subr.mxu0 0.0
        %2154 = vmatpush1.msra.mxu0 0.0
        %2155 = vmatprep.subr.mxu0 0.0
        %2156 = vmatpush1.msra.mxu0 0.0
        %2157 = vmatprep.subr.mxu0 0.0
        %2158 = vmatpush1.msra.mxu0 0.0
        %2159 = vmatprep.subr.mxu0 0.0
        %2160 = vmatpush1.msra.mxu0 0.0
        %2161 = vmatprep.subr.mxu0 0.0
        %2162 = vmatpush1.msra.mxu0 0.0
        %2163 = vmatprep.subr.mxu0 0.0
        %2164 = vmatpush1.msra.mxu0 0.0
        %2165 = vmatprep.subr.mxu0 0.0
        %2166 = vmatpush1.msra.mxu0 0.0
        %2167 = vmatprep.subr.mxu0 0.0
        %2168 = vmatpush1.msra.mxu0 0.0
        %2169 = vmatprep.subr.mxu0 0.0
        %2170 = vmatpush1.msra.mxu0 0.0
        %2171 = vmatprep.subr.mxu0 0.0
        %2172 = vmatpush1.msra.mxu0 0.0
        %2173 = vmatprep.subr.mxu0 0.0
        %2174 = vmatpush1.msra.mxu0 0.0
        %2175 = vmatprep.subr.mxu0 0.0
        %2176 = vmatpush1.msra.mxu0 0.0
        %2177 = vmatprep.subr.mxu0 0.0
        %2178 = vmatpush1.msra.mxu0 0.0
        %2179 = vmatprep.subr.mxu0 0.0
        %2180 = vmatpush1.msra.mxu0 0.0
        %2181 = vmatprep.subr.mxu0 0.0
        %2182 = vmatpush1.msra.mxu0 0.0
        %2183 = vmatprep.subr.mxu0 0.0
        %2184 = vmatpush1.msra.mxu0 0.0
        %2185 = vmatprep.subr.mxu0 0.0
        %2186 = vmatpush1.msra.mxu0 0.0
        %2187 = vmatprep.subr.mxu0 0.0
        %2188 = vmatpush1.msra.mxu0 0.0
        %2189 = vmatprep.mubr.f32.mxu0 0.0
        %2190 = vmatmul.mubr.f32.gmra.mrb[0].mxu0 %v2115
        %v2191 = vpop.f32.mrb[0].mxu0
        %v2192 = vadd.f32 0.0, %v2191
        %v2193 = vpop.f32.mrb[0].mxu0
        %v2194 = vadd.f32 0.0, %v2193
        %2195 = vmatprep.mubr.f32.mxu0 0.0
        %2196 = vmatmul.mubr.f32.gmra.mrb[0].mxu0 %v2117
        %v2197 = vpop.f32.mrb[0].mxu0
        %v2198 = vadd.f32 0.0, %v2197
        %v2199 = vpop.f32.mrb[0].mxu0
        %v2200 = vadd.f32 0.0, %v2199
        %2201 = vdwg.mxu0
        %v2202 = vsel %vm445, %v2062, 0
        %v2204 = vsel %vm445, %v2063, 0
        %v2207 = vsel %vm454, %v2084, 0
        %v2210 = vsel %vm454, %v2085, 0
        %2212 = vmatprep.subr.mxu0 %v2065
        %2213 = vmatpush1.msra.mxu0 %v2064
        %2214 = vmatprep.subr.mxu0 %v2067
        %2215 = vmatpush1.msra.mxu0 %v2066
        %2216 = vmatprep.subr.mxu0 %v2069
        %2217 = vmatpush1.msra.mxu0 %v2068
        %2218 = vmatprep.subr.mxu0 %v2071
        %2219 = vmatpush1.msra.mxu0 %v2070
        %2220 = vmatprep.subr.mxu0 %v2073
        %2221 = vmatpush1.msra.mxu0 %v2072
        %2222 = vmatprep.subr.mxu0 %v2075
        %2223 = vmatpush1.msra.mxu0 %v2074
        %2224 = vmatprep.subr.mxu0 %v2077
        %2225 = vmatpush1.msra.mxu0 %v2076
        %2226 = vmatprep.subr.mxu0 %v2079
        %2227 = vmatpush1.msra.mxu0 %v2078
        %2228 = vmatprep.subr.mxu0 %v2081
        %2229 = vmatpush1.msra.mxu0 %v2080
        %2230 = vmatprep.subr.mxu0 %v2083
        %2231 = vmatpush1.msra.mxu0 %v2082
        %2232 = vmatprep.subr.mxu0 %v2210
        %2233 = vmatpush1.msra.mxu0 %v2207
        %2234 = vmatprep.subr.mxu0 0.0
        %2235 = vmatpush1.msra.mxu0 0.0
        %2236 = vmatprep.subr.mxu0 0.0
        %2237 = vmatpush1.msra.mxu0 0.0
        %2238 = vmatprep.subr.mxu0 0.0
        %2239 = vmatpush1.msra.mxu0 0.0
        %2240 = vmatprep.subr.mxu0 0.0
        %2241 = vmatpush1.msra.mxu0 0.0
        %2242 = vmatprep.subr.mxu0 0.0
        %2243 = vmatpush1.msra.mxu0 0.0
        %2244 = vmatprep.subr.mxu0 0.0
        %2245 = vmatpush1.msra.mxu0 0.0
        %2246 = vmatprep.subr.mxu0 0.0
        %2247 = vmatpush1.msra.mxu0 0.0
        %2248 = vmatprep.subr.mxu0 0.0
        %2249 = vmatpush1.msra.mxu0 0.0
        %2250 = vmatprep.subr.mxu0 0.0
        %2251 = vmatpush1.msra.mxu0 0.0
        %2252 = vmatprep.subr.mxu0 0.0
        %2253 = vmatpush1.msra.mxu0 0.0
        %2254 = vmatprep.subr.mxu0 0.0
        %2255 = vmatpush1.msra.mxu0 0.0
        %2256 = vmatprep.subr.mxu0 0.0
        %2257 = vmatpush1.msra.mxu0 0.0
        %2258 = vmatprep.subr.mxu0 0.0
        %2259 = vmatpush1.msra.mxu0 0.0
        %2260 = vmatprep.subr.mxu0 0.0
        %2261 = vmatpush1.msra.mxu0 0.0
        %2262 = vmatprep.subr.mxu0 0.0
        %2263 = vmatpush1.msra.mxu0 0.0
        %2264 = vmatprep.subr.mxu0 0.0
        %2265 = vmatpush1.msra.mxu0 0.0
        %2266 = vmatprep.subr.mxu0 0.0
        %2267 = vmatpush1.msra.mxu0 0.0
        %2268 = vmatprep.subr.mxu0 0.0
        %2269 = vmatpush1.msra.mxu0 0.0
        %2270 = vmatprep.subr.mxu0 0.0
        %2271 = vmatpush1.msra.mxu0 0.0
        %2272 = vmatprep.subr.mxu0 0.0
        %2273 = vmatpush1.msra.mxu0 0.0
        %2274 = vmatprep.subr.mxu0 0.0
        %2275 = vmatpush1.msra.mxu0 0.0
        %2276 = vmatprep.mubr.f32.mxu0 0.0
        %2277 = vmatmul.mubr.f32.gmra.mrb[0].mxu0 %v2202
        %v2278 = vpop.f32.mrb[0].mxu0
        %v2279 = vadd.f32 %v2192, %v2278
        %v2280 = vpop.f32.mrb[0].mxu0
        %v2281 = vadd.f32 %v2194, %v2280
        %2282 = vmatprep.mubr.f32.mxu0 0.0
        %2283 = vmatmul.mubr.f32.gmra.mrb[0].mxu0 %v2204
        %v2284 = vpop.f32.mrb[0].mxu0
        %v2285 = vadd.f32 %v2198, %v2284
        %v2286 = vpop.f32.mrb[0].mxu0
        %v2287 = vadd.f32 %v2200, %v2286
        %2288 = vdwg.mxu0
        %s2289 = scalar_lea.vmem %s5, 352
        %v2290 = vld [vmem:[%s2289] sm:$0xff]
        %v2291 = vld [vmem:[%s2289 + $0x8] sm:$0xff]
        %v2292 = vld [vmem:[%s2289 + $0x10] sm:$0xff]
        %v2293 = vld [vmem:[%s2289 + $0x18] sm:$0xff]
        %v2294 = vld [vmem:[%s2289 + $0x20] sm:$0xff]
        %v2295 = vld [vmem:[%s2289 + $0x28] sm:$0xff]
        %v2296 = vld [vmem:[%s2289 + $0x30] sm:$0xff]
        %v2297 = vld [vmem:[%s2289 + $0x38] sm:$0xff]
        %v2298 = vld [vmem:[%s2289 + $0x40] sm:$0xff]
        %v2299 = vld [vmem:[%s2289 + $0x48] sm:$0xff]
        %v2300 = vld [vmem:[%s2289 + $0x50] sm:$0xff]
        %v2301 = vld [vmem:[%s2289 + $0x58] sm:$0xff]
        %v2302 = vld [vmem:[%s2289 + $0x60] sm:$0xff]
        %v2303 = vld [vmem:[%s2289 + $0x68] sm:$0xff]
        %v2304 = vld [vmem:[%s2289 + $0x70] sm:$0xff]
        %v2305 = vld [vmem:[%s2289 + $0x78] sm:$0xff]
        %v2306 = vld [vmem:[%s2289 + $0x80] sm:$0xff]
        %v2307 = vld [vmem:[%s2289 + $0x88] sm:$0xff]
        %v2308 = vld [vmem:[%s2289 + $0x90] sm:$0xff]
        %v2309 = vld [vmem:[%s2289 + $0x98] sm:$0xff]
        %v2310 = vld [vmem:[%s2289 + $0xa0] sm:$0xf]
        %v2311 = vld [vmem:[%s2289 + $0xa8] sm:$0xf]
        %2312 = vrot.lane.b32.xlu0 %v2062, 116
        %v2313 = vpop.permute.xlu0 %2312
        %2314 = vrot.lane.b32.xlu0 %v2063, 116
        %v2315 = vpop.permute.xlu0 %2314
        %v2316 = vsel %vm445, %v2313, 0
        %v2318 = vsel %vm445, %v2315, 0
        %v2321 = vsel %vm454, %v2310, 0
        %v2324 = vsel %vm454, %v2311, 0
        %2326 = vmatprep.subr.mxu0 %v2291
        %2327 = vmatpush1.msra.mxu0 %v2290
        %2328 = vmatprep.subr.mxu0 %v2293
        %2329 = vmatpush1.msra.mxu0 %v2292
        %2330 = vmatprep.subr.mxu0 %v2295
        %2331 = vmatpush1.msra.mxu0 %v2294
        %2332 = vmatprep.subr.mxu0 %v2297
        %2333 = vmatpush1.msra.mxu0 %v2296
        %2334 = vmatprep.subr.mxu0 %v2299
        %2335 = vmatpush1.msra.mxu0 %v2298
        %2336 = vmatprep.subr.mxu0 %v2301
        %2337 = vmatpush1.msra.mxu0 %v2300
        %2338 = vmatprep.subr.mxu0 %v2303
        %2339 = vmatpush1.msra.mxu0 %v2302
        %2340 = vmatprep.subr.mxu0 %v2305
        %2341 = vmatpush1.msra.mxu0 %v2304
        %2342 = vmatprep.subr.mxu0 %v2307
        %2343 = vmatpush1.msra.mxu0 %v2306
        %2344 = vmatprep.subr.mxu0 %v2309
        %2345 = vmatpush1.msra.mxu0 %v2308
        %2346 = vmatprep.subr.mxu0 %v2324
        %2347 = vmatpush1.msra.mxu0 %v2321
        %2348 = vmatprep.subr.mxu0 0.0
        %2349 = vmatpush1.msra.mxu0 0.0
        %2350 = vmatprep.subr.mxu0 0.0
        %2351 = vmatpush1.msra.mxu0 0.0
        %2352 = vmatprep.subr.mxu0 0.0
        %2353 = vmatpush1.msra.mxu0 0.0
        %2354 = vmatprep.subr.mxu0 0.0
        %2355 = vmatpush1.msra.mxu0 0.0
        %2356 = vmatprep.subr.mxu0 0.0
        %2357 = vmatpush1.msra.mxu0 0.0
        %2358 = vmatprep.subr.mxu0 0.0
        %2359 = vmatpush1.msra.mxu0 0.0
        %2360 = vmatprep.subr.mxu0 0.0
        %2361 = vmatpush1.msra.mxu0 0.0
        %2362 = vmatprep.subr.mxu0 0.0
        %2363 = vmatpush1.msra.mxu0 0.0
        %2364 = vmatprep.subr.mxu0 0.0
        %2365 = vmatpush1.msra.mxu0 0.0
        %2366 = vmatprep.subr.mxu0 0.0
        %2367 = vmatpush1.msra.mxu0 0.0
        %2368 = vmatprep.subr.mxu0 0.0
        %2369 = vmatpush1.msra.mxu0 0.0
        %2370 = vmatprep.subr.mxu0 0.0
        %2371 = vmatpush1.msra.mxu0 0.0
        %2372 = vmatprep.subr.mxu0 0.0
        %2373 = vmatpush1.msra.mxu0 0.0
        %2374 = vmatprep.subr.mxu0 0.0
        %2375 = vmatpush1.msra.mxu0 0.0
        %2376 = vmatprep.subr.mxu0 0.0
        %2377 = vmatpush1.msra.mxu0 0.0
        %2378 = vmatprep.subr.mxu0 0.0
        %2379 = vmatpush1.msra.mxu0 0.0
        %2380 = vmatprep.subr.mxu0 0.0
        %2381 = vmatpush1.msra.mxu0 0.0
        %2382 = vmatprep.subr.mxu0 0.0
        %2383 = vmatpush1.msra.mxu0 0.0
        %2384 = vmatprep.subr.mxu0 0.0
        %2385 = vmatpush1.msra.mxu0 0.0
        %2386 = vmatprep.subr.mxu0 0.0
        %2387 = vmatpush1.msra.mxu0 0.0
        %2388 = vmatprep.subr.mxu0 0.0
        %2389 = vmatpush1.msra.mxu0 0.0
        %2390 = vmatprep.mubr.f32.mxu0 0.0
        %2391 = vmatmul.mubr.f32.gmra.mrb[0].mxu0 %v2316
        %v2392 = vpop.f32.mrb[0].mxu0
        %v2393 = vadd.f32 0.0, %v2392
        %v2394 = vpop.f32.mrb[0].mxu0
        %v2395 = vadd.f32 0.0, %v2394
        %2396 = vmatprep.mubr.f32.mxu0 0.0
        %2397 = vmatmul.mubr.f32.gmra.mrb[0].mxu0 %v2318
        %v2398 = vpop.f32.mrb[0].mxu0
        %v2399 = vadd.f32 0.0, %v2398
        %v2400 = vpop.f32.mrb[0].mxu0
        %v2401 = vadd.f32 0.0, %v2400
        %2402 = vdwg.mxu0
        %v2403 = vadd.f32 %v2279, %v2393
        %v2404 = vadd.f32 %v2281, %v2395
        %v2405 = vadd.f32 %v2285, %v2399
        %v2406 = vadd.f32 %v2287, %v2401
        %v2407 = vld [vmem:[#allocation2 + $0x1] sm:$0xff]
        %v2408 = vld [vmem:[#allocation2 + $0x9] sm:$0x3f]
        %s2409 = scalar_lea.vmem %s5, 528
        %v2410 = vld [vmem:[%s2409] sm:$0xff]
        %v2411 = vld [vmem:[%s2409 + $0x8] sm:$0xff]
        %v2412 = vld [vmem:[%s2409 + $0x10] sm:$0xff]
        %v2413 = vld [vmem:[%s2409 + $0x18] sm:$0xff]
        %v2414 = vld [vmem:[%s2409 + $0x20] sm:$0xff]
        %v2415 = vld [vmem:[%s2409 + $0x28] sm:$0xff]
        %v2416 = vld [vmem:[%s2409 + $0x30] sm:$0xff]
        %v2417 = vld [vmem:[%s2409 + $0x38] sm:$0xff]
        %v2418 = vld [vmem:[%s2409 + $0x40] sm:$0xff]
        %v2419 = vld [vmem:[%s2409 + $0x48] sm:$0xff]
        %v2420 = vld [vmem:[%s2409 + $0x50] sm:$0xff]
        %v2421 = vld [vmem:[%s2409 + $0x58] sm:$0xff]
        %v2422 = vld [vmem:[%s2409 + $0x60] sm:$0xff]
        %v2423 = vld [vmem:[%s2409 + $0x68] sm:$0xff]
        %v2424 = vld [vmem:[%s2409 + $0x70] sm:$0xff]
        %v2425 = vld [vmem:[%s2409 + $0x78] sm:$0xff]
        %v2426 = vld [vmem:[%s2409 + $0x80] sm:$0xff]
        %v2427 = vld [vmem:[%s2409 + $0x88] sm:$0xff]
        %v2428 = vld [vmem:[%s2409 + $0x90] sm:$0xff]
        %v2429 = vld [vmem:[%s2409 + $0x98] sm:$0xff]
        %v2430 = vld [vmem:[%s2409 + $0xa0] sm:$0xf]
        %v2431 = vld [vmem:[%s2409 + $0xa8] sm:$0xf]
        %v2433 = vsel %vm445, %v2407, 0
        %v2436 = vsel %vm445, %v2408, 0
        %v2439 = vsel %vm454, %v2430, 0
        %v2442 = vsel %vm454, %v2431, 0
        %2444 = vmatprep.subr.mxu0 %v2411
        %2445 = vmatpush1.msra.mxu0 %v2410
        %2446 = vmatprep.subr.mxu0 %v2413
        %2447 = vmatpush1.msra.mxu0 %v2412
        %2448 = vmatprep.subr.mxu0 %v2415
        %2449 = vmatpush1.msra.mxu0 %v2414
        %2450 = vmatprep.subr.mxu0 %v2417
        %2451 = vmatpush1.msra.mxu0 %v2416
        %2452 = vmatprep.subr.mxu0 %v2419
        %2453 = vmatpush1.msra.mxu0 %v2418
        %2454 = vmatprep.subr.mxu0 %v2421
        %2455 = vmatpush1.msra.mxu0 %v2420
        %2456 = vmatprep.subr.mxu0 %v2423
        %2457 = vmatpush1.msra.mxu0 %v2422
        %2458 = vmatprep.subr.mxu0 %v2425
        %2459 = vmatpush1.msra.mxu0 %v2424
        %2460 = vmatprep.subr.mxu0 %v2427
        %2461 = vmatpush1.msra.mxu0 %v2426
        %2462 = vmatprep.subr.mxu0 %v2429
        %2463 = vmatpush1.msra.mxu0 %v2428
        %2464 = vmatprep.subr.mxu0 %v2442
        %2465 = vmatpush1.msra.mxu0 %v2439
        %2466 = vmatprep.subr.mxu0 0.0
        %2467 = vmatpush1.msra.mxu0 0.0
        %2468 = vmatprep.subr.mxu0 0.0
        %2469 = vmatpush1.msra.mxu0 0.0
        %2470 = vmatprep.subr.mxu0 0.0
        %2471 = vmatpush1.msra.mxu0 0.0
        %2472 = vmatprep.subr.mxu0 0.0
        %2473 = vmatpush1.msra.mxu0 0.0
        %2474 = vmatprep.subr.mxu0 0.0
        %2475 = vmatpush1.msra.mxu0 0.0
        %2476 = vmatprep.subr.mxu0 0.0
        %2477 = vmatpush1.msra.mxu0 0.0
        %2478 = vmatprep.subr.mxu0 0.0
        %2479 = vmatpush1.msra.mxu0 0.0
        %2480 = vmatprep.subr.mxu0 0.0
        %2481 = vmatpush1.msra.mxu0 0.0
        %2482 = vmatprep.subr.mxu0 0.0
        %2483 = vmatpush1.msra.mxu0 0.0
        %2484 = vmatprep.subr.mxu0 0.0
        %2485 = vmatpush1.msra.mxu0 0.0
        %2486 = vmatprep.subr.mxu0 0.0
        %2487 = vmatpush1.msra.mxu0 0.0
        %2488 = vmatprep.subr.mxu0 0.0
        %2489 = vmatpush1.msra.mxu0 0.0
        %2490 = vmatprep.subr.mxu0 0.0
        %2491 = vmatpush1.msra.mxu0 0.0
        %2492 = vmatprep.subr.mxu0 0.0
        %2493 = vmatpush1.msra.mxu0 0.0
        %2494 = vmatprep.subr.mxu0 0.0
        %2495 = vmatpush1.msra.mxu0 0.0
        %2496 = vmatprep.subr.mxu0 0.0
        %2497 = vmatpush1.msra.mxu0 0.0
        %2498 = vmatprep.subr.mxu0 0.0
        %2499 = vmatpush1.msra.mxu0 0.0
        %2500 = vmatprep.subr.mxu0 0.0
        %2501 = vmatpush1.msra.mxu0 0.0
        %2502 = vmatprep.subr.mxu0 0.0
        %2503 = vmatpush1.msra.mxu0 0.0
        %2504 = vmatprep.subr.mxu0 0.0
        %2505 = vmatpush1.msra.mxu0 0.0
        %2506 = vmatprep.subr.mxu0 0.0
        %2507 = vmatpush1.msra.mxu0 0.0
        %2508 = vmatprep.mubr.f32.mxu0 0.0
        %2509 = vmatmul.mubr.f32.gmra.mrb[0].mxu0 %v2433
        %v2510 = vpop.f32.mrb[0].mxu0
        %v2511 = vadd.f32 0.0, %v2510
        %v2512 = vpop.f32.mrb[0].mxu0
        %v2513 = vadd.f32 0.0, %v2512
        %2514 = vmatprep.mubr.f32.mxu0 0.0
        %2515 = vmatmul.mubr.f32.gmra.mrb[0].mxu0 %v2436
        %v2516 = vpop.f32.mrb[0].mxu0
        %v2517 = vadd.f32 0.0, %v2516
        %v2518 = vpop.f32.mrb[0].mxu0
        %v2519 = vadd.f32 0.0, %v2518
        %2520 = vdwg.mxu0
        %v2521 = vadd.f32 %v2403, %v2511
        %v2522 = vadd.f32 %v2404, %v2513
        %v2523 = vadd.f32 %v2405, %v2517
        %v2524 = vadd.f32 %v2406, %v2519
        %s2525 = scalar_lea.vmem %s5, 704
        %v2526 = vld [vmem:[%s2525] sm:$0xff]
        %v2527 = vld [vmem:[%s2525 + $0x8] sm:$0xff]
        %v2528 = vld [vmem:[%s2525 + $0x10] sm:$0xff]
        %v2529 = vld [vmem:[%s2525 + $0x18] sm:$0xff]
        %v2530 = vld [vmem:[%s2525 + $0x20] sm:$0xff]
        %v2531 = vld [vmem:[%s2525 + $0x28] sm:$0xff]
        %v2532 = vld [vmem:[%s2525 + $0x30] sm:$0xff]
        %v2533 = vld [vmem:[%s2525 + $0x38] sm:$0xff]
        %v2534 = vld [vmem:[%s2525 + $0x40] sm:$0xff]
        %v2535 = vld [vmem:[%s2525 + $0x48] sm:$0xff]
        %v2536 = vld [vmem:[%s2525 + $0x50] sm:$0xff]
        %v2537 = vld [vmem:[%s2525 + $0x58] sm:$0xff]
        %v2538 = vld [vmem:[%s2525 + $0x60] sm:$0xff]
        %v2539 = vld [vmem:[%s2525 + $0x68] sm:$0xff]
        %v2540 = vld [vmem:[%s2525 + $0x70] sm:$0xff]
        %v2541 = vld [vmem:[%s2525 + $0x78] sm:$0xff]
        %v2542 = vld [vmem:[%s2525 + $0x80] sm:$0xff]
        %v2543 = vld [vmem:[%s2525 + $0x88] sm:$0xff]
        %v2544 = vld [vmem:[%s2525 + $0x90] sm:$0xff]
        %v2545 = vld [vmem:[%s2525 + $0x98] sm:$0xff]
        %v2546 = vld [vmem:[%s2525 + $0xa0] sm:$0xf]
        %v2547 = vld [vmem:[%s2525 + $0xa8] sm:$0xf]
        %2548 = vrot.lane.b32.xlu0 %v2407, 122
        %v2549 = vpop.permute.xlu0 %2548
        %2550 = vrot.lane.b32.xlu0 %v2408, 122
        %v2551 = vpop.permute.xlu0 %2550
        %v2552 = vsel %vm445, %v2549, 0
        %v2554 = vsel %vm445, %v2551, 0
        %v2557 = vsel %vm454, %v2546, 0
        %v2560 = vsel %vm454, %v2547, 0
        %2562 = vmatprep.subr.mxu0 %v2527
        %2563 = vmatpush1.msra.mxu0 %v2526
        %2564 = vmatprep.subr.mxu0 %v2529
        %2565 = vmatpush1.msra.mxu0 %v2528
        %2566 = vmatprep.subr.mxu0 %v2531
        %2567 = vmatpush1.msra.mxu0 %v2530
        %2568 = vmatprep.subr.mxu0 %v2533
        %2569 = vmatpush1.msra.mxu0 %v2532
        %2570 = vmatprep.subr.mxu0 %v2535
        %2571 = vmatpush1.msra.mxu0 %v2534
        %2572 = vmatprep.subr.mxu0 %v2537
        %2573 = vmatpush1.msra.mxu0 %v2536
        %2574 = vmatprep.subr.mxu0 %v2539
        %2575 = vmatpush1.msra.mxu0 %v2538
        %2576 = vmatprep.subr.mxu0 %v2541
        %2577 = vmatpush1.msra.mxu0 %v2540
        %2578 = vmatprep.subr.mxu0 %v2543
        %2579 = vmatpush1.msra.mxu0 %v2542
        %2580 = vmatprep.subr.mxu0 %v2545
        %2581 = vmatpush1.msra.mxu0 %v2544
        %2582 = vmatprep.subr.mxu0 %v2560
        %2583 = vmatpush1.msra.mxu0 %v2557
        %2584 = vmatprep.subr.mxu0 0.0
        %2585 = vmatpush1.msra.mxu0 0.0
        %2586 = vmatprep.subr.mxu0 0.0
        %2587 = vmatpush1.msra.mxu0 0.0
        %2588 = vmatprep.subr.mxu0 0.0
        %2589 = vmatpush1.msra.mxu0 0.0
        %2590 = vmatprep.subr.mxu0 0.0
        %2591 = vmatpush1.msra.mxu0 0.0
        %2592 = vmatprep.subr.mxu0 0.0
        %2593 = vmatpush1.msra.mxu0 0.0
        %2594 = vmatprep.subr.mxu0 0.0
        %2595 = vmatpush1.msra.mxu0 0.0
        %2596 = vmatprep.subr.mxu0 0.0
        %2597 = vmatpush1.msra.mxu0 0.0
        %2598 = vmatprep.subr.mxu0 0.0
        %2599 = vmatpush1.msra.mxu0 0.0
        %2600 = vmatprep.subr.mxu0 0.0
        %2601 = vmatpush1.msra.mxu0 0.0
        %2602 = vmatprep.subr.mxu0 0.0
        %2603 = vmatpush1.msra.mxu0 0.0
        %2604 = vmatprep.subr.mxu0 0.0
        %2605 = vmatpush1.msra.mxu0 0.0
        %2606 = vmatprep.subr.mxu0 0.0
        %2607 = vmatpush1.msra.mxu0 0.0
        %2608 = vmatprep.subr.mxu0 0.0
        %2609 = vmatpush1.msra.mxu0 0.0
        %2610 = vmatprep.subr.mxu0 0.0
        %2611 = vmatpush1.msra.mxu0 0.0
        %2612 = vmatprep.subr.mxu0 0.0
        %2613 = vmatpush1.msra.mxu0 0.0
        %2614 = vmatprep.subr.mxu0 0.0
        %2615 = vmatpush1.msra.mxu0 0.0
        %2616 = vmatprep.subr.mxu0 0.0
        %2617 = vmatpush1.msra.mxu0 0.0
        %2618 = vmatprep.subr.mxu0 0.0
        %2619 = vmatpush1.msra.mxu0 0.0
        %2620 = vmatprep.subr.mxu0 0.0
        %2621 = vmatpush1.msra.mxu0 0.0
        %2622 = vmatprep.subr.mxu0 0.0
        %2623 = vmatpush1.msra.mxu0 0.0
        %2624 = vmatprep.subr.mxu0 0.0
        %2625 = vmatpush1.msra.mxu0 0.0
        %2626 = vmatprep.mubr.f32.mxu0 0.0
        %2627 = vmatmul.mubr.f32.gmra.mrb[0].mxu0 %v2552
        %v2628 = vpop.f32.mrb[0].mxu0
        %v2629 = vadd.f32 0.0, %v2628
        %v2630 = vpop.f32.mrb[0].mxu0
        %v2631 = vadd.f32 0.0, %v2630
        %2632 = vmatprep.mubr.f32.mxu0 0.0
        %2633 = vmatmul.mubr.f32.gmra.mrb[0].mxu0 %v2554
        %v2634 = vpop.f32.mrb[0].mxu0
        %v2635 = vadd.f32 0.0, %v2634
        %v2636 = vpop.f32.mrb[0].mxu0
        %v2637 = vadd.f32 0.0, %v2636
        %2638 = vdwg.mxu0
        %v2639 = vadd.f32 %v2521, %v2629
        %v2640 = vadd.f32 %v2522, %v2631
        %v2641 = vadd.f32 %v2523, %v2635
        %v2642 = vadd.f32 %v2524, %v2637
        %s2643 = scalar_lea.vmem %s5, 880
        %v2644 = vld [vmem:[%s2643] sm:$0xff]
        %v2645 = vld [vmem:[%s2643 + $0x8] sm:$0xff]
        %v2646 = vld [vmem:[%s2643 + $0x10] sm:$0xff]
        %v2647 = vld [vmem:[%s2643 + $0x18] sm:$0xff]
        %v2648 = vld [vmem:[%s2643 + $0x20] sm:$0xff]
        %v2649 = vld [vmem:[%s2643 + $0x28] sm:$0xff]
        %v2650 = vld [vmem:[%s2643 + $0x30] sm:$0xff]
        %v2651 = vld [vmem:[%s2643 + $0x38] sm:$0xff]
        %v2652 = vld [vmem:[%s2643 + $0x40] sm:$0xff]
        %v2653 = vld [vmem:[%s2643 + $0x48] sm:$0xff]
        %v2654 = vld [vmem:[%s2643 + $0x50] sm:$0xff]
        %v2655 = vld [vmem:[%s2643 + $0x58] sm:$0xff]
        %v2656 = vld [vmem:[%s2643 + $0x60] sm:$0xff]
        %v2657 = vld [vmem:[%s2643 + $0x68] sm:$0xff]
        %v2658 = vld [vmem:[%s2643 + $0x70] sm:$0xff]
        %v2659 = vld [vmem:[%s2643 + $0x78] sm:$0xff]
        %v2660 = vld [vmem:[%s2643 + $0x80] sm:$0xff]
        %v2661 = vld [vmem:[%s2643 + $0x88] sm:$0xff]
        %v2662 = vld [vmem:[%s2643 + $0x90] sm:$0xff]
        %v2663 = vld [vmem:[%s2643 + $0x98] sm:$0xff]
        %v2664 = vld [vmem:[%s2643 + $0xa0] sm:$0xf]
        %v2665 = vld [vmem:[%s2643 + $0xa8] sm:$0xf]
        %2666 = vrot.lane.b32.xlu0 %v2407, 116
        %v2667 = vpop.permute.xlu0 %2666
        %2668 = vrot.lane.b32.xlu0 %v2408, 116
        %v2669 = vpop.permute.xlu0 %2668
        %v2670 = vsel %vm445, %v2667, 0
        %v2672 = vsel %vm445, %v2669, 0
        %v2675 = vsel %vm454, %v2664, 0
        %v2678 = vsel %vm454, %v2665, 0
        %2680 = vmatprep.subr.mxu0 %v2645
        %2681 = vmatpush1.msra.mxu0 %v2644
        %2682 = vmatprep.subr.mxu0 %v2647
        %2683 = vmatpush1.msra.mxu0 %v2646
        %2684 = vmatprep.subr.mxu0 %v2649
        %2685 = vmatpush1.msra.mxu0 %v2648
        %2686 = vmatprep.subr.mxu0 %v2651
        %2687 = vmatpush1.msra.mxu0 %v2650
        %2688 = vmatprep.subr.mxu0 %v2653
        %2689 = vmatpush1.msra.mxu0 %v2652
        %2690 = vmatprep.subr.mxu0 %v2655
        %2691 = vmatpush1.msra.mxu0 %v2654
        %2692 = vmatprep.subr.mxu0 %v2657
        %2693 = vmatpush1.msra.mxu0 %v2656
        %2694 = vmatprep.subr.mxu0 %v2659
        %2695 = vmatpush1.msra.mxu0 %v2658
        %2696 = vmatprep.subr.mxu0 %v2661
        %2697 = vmatpush1.msra.mxu0 %v2660
        %2698 = vmatprep.subr.mxu0 %v2663
        %2699 = vmatpush1.msra.mxu0 %v2662
        %2700 = vmatprep.subr.mxu0 %v2678
        %2701 = vmatpush1.msra.mxu0 %v2675
        %2702 = vmatprep.subr.mxu0 0.0
        %2703 = vmatpush1.msra.mxu0 0.0
        %2704 = vmatprep.subr.mxu0 0.0
        %2705 = vmatpush1.msra.mxu0 0.0
        %2706 = vmatprep.subr.mxu0 0.0
        %2707 = vmatpush1.msra.mxu0 0.0
        %2708 = vmatprep.subr.mxu0 0.0
        %2709 = vmatpush1.msra.mxu0 0.0
        %2710 = vmatprep.subr.mxu0 0.0
        %2711 = vmatpush1.msra.mxu0 0.0
        %2712 = vmatprep.subr.mxu0 0.0
        %2713 = vmatpush1.msra.mxu0 0.0
        %2714 = vmatprep.subr.mxu0 0.0
        %2715 = vmatpush1.msra.mxu0 0.0
        %2716 = vmatprep.subr.mxu0 0.0
        %2717 = vmatpush1.msra.mxu0 0.0
        %2718 = vmatprep.subr.mxu0 0.0
        %2719 = vmatpush1.msra.mxu0 0.0
        %2720 = vmatprep.subr.mxu0 0.0
        %2721 = vmatpush1.msra.mxu0 0.0
        %2722 = vmatprep.subr.mxu0 0.0
        %2723 = vmatpush1.msra.mxu0 0.0
        %2724 = vmatprep.subr.mxu0 0.0
        %2725 = vmatpush1.msra.mxu0 0.0
        %2726 = vmatprep.subr.mxu0 0.0
        %2727 = vmatpush1.msra.mxu0 0.0
        %2728 = vmatprep.subr.mxu0 0.0
        %2729 = vmatpush1.msra.mxu0 0.0
        %2730 = vmatprep.subr.mxu0 0.0
        %2731 = vmatpush1.msra.mxu0 0.0
        %2732 = vmatprep.subr.mxu0 0.0
        %2733 = vmatpush1.msra.mxu0 0.0
        %2734 = vmatprep.subr.mxu0 0.0
        %2735 = vmatpush1.msra.mxu0 0.0
        %2736 = vmatprep.subr.mxu0 0.0
        %2737 = vmatpush1.msra.mxu0 0.0
        %2738 = vmatprep.subr.mxu0 0.0
        %2739 = vmatpush1.msra.mxu0 0.0
        %2740 = vmatprep.subr.mxu0 0.0
        %2741 = vmatpush1.msra.mxu0 0.0
        %2742 = vmatprep.subr.mxu0 0.0
        %2743 = vmatpush1.msra.mxu0 0.0
        %2744 = vmatprep.mubr.f32.mxu0 0.0
        %2745 = vmatmul.mubr.f32.gmra.mrb[0].mxu0 %v2670
        %v2746 = vpop.f32.mrb[0].mxu0
        %v2747 = vadd.f32 0.0, %v2746
        %v2748 = vpop.f32.mrb[0].mxu0
        %v2749 = vadd.f32 0.0, %v2748
        %2750 = vmatprep.mubr.f32.mxu0 0.0
        %2751 = vmatmul.mubr.f32.gmra.mrb[0].mxu0 %v2672
        %v2752 = vpop.f32.mrb[0].mxu0
        %v2753 = vadd.f32 0.0, %v2752
        %v2754 = vpop.f32.mrb[0].mxu0
        %v2755 = vadd.f32 0.0, %v2754
        %2756 = vdwg.mxu0
        %v2757 = vadd.f32 %v2639, %v2747
        %v2758 = vadd.f32 %v2640, %v2749
        %v2759 = vadd.f32 %v2641, %v2753
        %v2760 = vadd.f32 %v2642, %v2755
        %v2761 = vld [vmem:[#allocation2 + $0x2] sm:$0xff]
        %v2762 = vld [vmem:[#allocation2 + $0xa] sm:$0x3f]
        %s2763 = scalar_lea.vmem %s5, 1056
        %v2764 = vld [vmem:[%s2763] sm:$0xff]
        %v2765 = vld [vmem:[%s2763 + $0x8] sm:$0xff]
        %v2766 = vld [vmem:[%s2763 + $0x10] sm:$0xff]
        %v2767 = vld [vmem:[%s2763 + $0x18] sm:$0xff]
        %v2768 = vld [vmem:[%s2763 + $0x20] sm:$0xff]
        %v2769 = vld [vmem:[%s2763 + $0x28] sm:$0xff]
        %v2770 = vld [vmem:[%s2763 + $0x30] sm:$0xff]
        %v2771 = vld [vmem:[%s2763 + $0x38] sm:$0xff]
        %v2772 = vld [vmem:[%s2763 + $0x40] sm:$0xff]
        %v2773 = vld [vmem:[%s2763 + $0x48] sm:$0xff]
        %v2774 = vld [vmem:[%s2763 + $0x50] sm:$0xff]
        %v2775 = vld [vmem:[%s2763 + $0x58] sm:$0xff]
        %v2776 = vld [vmem:[%s2763 + $0x60] sm:$0xff]
        %v2777 = vld [vmem:[%s2763 + $0x68] sm:$0xff]
        %v2778 = vld [vmem:[%s2763 + $0x70] sm:$0xff]
        %v2779 = vld [vmem:[%s2763 + $0x78] sm:$0xff]
        %v2780 = vld [vmem:[%s2763 + $0x80] sm:$0xff]
        %v2781 = vld [vmem:[%s2763 + $0x88] sm:$0xff]
        %v2782 = vld [vmem:[%s2763 + $0x90] sm:$0xff]
        %v2783 = vld [vmem:[%s2763 + $0x98] sm:$0xff]
        %v2784 = vld [vmem:[%s2763 + $0xa0] sm:$0xf]
        %v2785 = vld [vmem:[%s2763 + $0xa8] sm:$0xf]
        %v2787 = vsel %vm445, %v2761, 0
        %v2790 = vsel %vm445, %v2762, 0
        %v2793 = vsel %vm454, %v2784, 0
        %v2796 = vsel %vm454, %v2785, 0
        %2798 = vmatprep.subr.mxu0 %v2765
        %2799 = vmatpush1.msra.mxu0 %v2764
        %2800 = vmatprep.subr.mxu0 %v2767
        %2801 = vmatpush1.msra.mxu0 %v2766
        %2802 = vmatprep.subr.mxu0 %v2769
        %2803 = vmatpush1.msra.mxu0 %v2768
        %2804 = vmatprep.subr.mxu0 %v2771
        %2805 = vmatpush1.msra.mxu0 %v2770
        %2806 = vmatprep.subr.mxu0 %v2773
        %2807 = vmatpush1.msra.mxu0 %v2772
        %2808 = vmatprep.subr.mxu0 %v2775
        %2809 = vmatpush1.msra.mxu0 %v2774
        %2810 = vmatprep.subr.mxu0 %v2777
        %2811 = vmatpush1.msra.mxu0 %v2776
        %2812 = vmatprep.subr.mxu0 %v2779
        %2813 = vmatpush1.msra.mxu0 %v2778
        %2814 = vmatprep.subr.mxu0 %v2781
        %2815 = vmatpush1.msra.mxu0 %v2780
        %2816 = vmatprep.subr.mxu0 %v2783
        %2817 = vmatpush1.msra.mxu0 %v2782
        %2818 = vmatprep.subr.mxu0 %v2796
        %2819 = vmatpush1.msra.mxu0 %v2793
        %2820 = vmatprep.subr.mxu0 0.0
        %2821 = vmatpush1.msra.mxu0 0.0
        %2822 = vmatprep.subr.mxu0 0.0
        %2823 = vmatpush1.msra.mxu0 0.0
        %2824 = vmatprep.subr.mxu0 0.0
        %2825 = vmatpush1.msra.mxu0 0.0
        %2826 = vmatprep.subr.mxu0 0.0
        %2827 = vmatpush1.msra.mxu0 0.0
        %2828 = vmatprep.subr.mxu0 0.0
        %2829 = vmatpush1.msra.mxu0 0.0
        %2830 = vmatprep.subr.mxu0 0.0
        %2831 = vmatpush1.msra.mxu0 0.0
        %2832 = vmatprep.subr.mxu0 0.0
        %2833 = vmatpush1.msra.mxu0 0.0
        %2834 = vmatprep.subr.mxu0 0.0
        %2835 = vmatpush1.msra.mxu0 0.0
        %2836 = vmatprep.subr.mxu0 0.0
        %2837 = vmatpush1.msra.mxu0 0.0
        %2838 = vmatprep.subr.mxu0 0.0
        %2839 = vmatpush1.msra.mxu0 0.0
        %2840 = vmatprep.subr.mxu0 0.0
        %2841 = vmatpush1.msra.mxu0 0.0
        %2842 = vmatprep.subr.mxu0 0.0
        %2843 = vmatpush1.msra.mxu0 0.0
        %2844 = vmatprep.subr.mxu0 0.0
        %2845 = vmatpush1.msra.mxu0 0.0
        %2846 = vmatprep.subr.mxu0 0.0
        %2847 = vmatpush1.msra.mxu0 0.0
        %2848 = vmatprep.subr.mxu0 0.0
        %2849 = vmatpush1.msra.mxu0 0.0
        %2850 = vmatprep.subr.mxu0 0.0
        %2851 = vmatpush1.msra.mxu0 0.0
        %2852 = vmatprep.subr.mxu0 0.0
        %2853 = vmatpush1.msra.mxu0 0.0
        %2854 = vmatprep.subr.mxu0 0.0
        %2855 = vmatpush1.msra.mxu0 0.0
        %2856 = vmatprep.subr.mxu0 0.0
        %2857 = vmatpush1.msra.mxu0 0.0
        %2858 = vmatprep.subr.mxu0 0.0
        %2859 = vmatpush1.msra.mxu0 0.0
        %2860 = vmatprep.subr.mxu0 0.0
        %2861 = vmatpush1.msra.mxu0 0.0
        %2862 = vmatprep.mubr.f32.mxu0 0.0
        %2863 = vmatmul.mubr.f32.gmra.mrb[0].mxu0 %v2787
        %v2864 = vpop.f32.mrb[0].mxu0
        %v2865 = vadd.f32 0.0, %v2864
        %v2866 = vpop.f32.mrb[0].mxu0
        %v2867 = vadd.f32 0.0, %v2866
        %2868 = vmatprep.mubr.f32.mxu0 0.0
        %2869 = vmatmul.mubr.f32.gmra.mrb[0].mxu0 %v2790
        %v2870 = vpop.f32.mrb[0].mxu0
        %v2871 = vadd.f32 0.0, %v2870
        %v2872 = vpop.f32.mrb[0].mxu0
        %v2873 = vadd.f32 0.0, %v2872
        %2874 = vdwg.mxu0
        %v2875 = vadd.f32 %v2757, %v2865
        %v2876 = vadd.f32 %v2758, %v2867
        %v2877 = vadd.f32 %v2759, %v2871
        %v2878 = vadd.f32 %v2760, %v2873
        %s2879 = scalar_lea.vmem %s5, 1232
        %v2880 = vld [vmem:[%s2879] sm:$0xff]
        %v2881 = vld [vmem:[%s2879 + $0x8] sm:$0xff]
        %v2882 = vld [vmem:[%s2879 + $0x10] sm:$0xff]
        %v2883 = vld [vmem:[%s2879 + $0x18] sm:$0xff]
        %v2884 = vld [vmem:[%s2879 + $0x20] sm:$0xff]
        %v2885 = vld [vmem:[%s2879 + $0x28] sm:$0xff]
        %v2886 = vld [vmem:[%s2879 + $0x30] sm:$0xff]
        %v2887 = vld [vmem:[%s2879 + $0x38] sm:$0xff]
        %v2888 = vld [vmem:[%s2879 + $0x40] sm:$0xff]
        %v2889 = vld [vmem:[%s2879 + $0x48] sm:$0xff]
        %v2890 = vld [vmem:[%s2879 + $0x50] sm:$0xff]
        %v2891 = vld [vmem:[%s2879 + $0x58] sm:$0xff]
        %v2892 = vld [vmem:[%s2879 + $0x60] sm:$0xff]
        %v2893 = vld [vmem:[%s2879 + $0x68] sm:$0xff]
        %v2894 = vld [vmem:[%s2879 + $0x70] sm:$0xff]
        %v2895 = vld [vmem:[%s2879 + $0x78] sm:$0xff]
        %v2896 = vld [vmem:[%s2879 + $0x80] sm:$0xff]
        %v2897 = vld [vmem:[%s2879 + $0x88] sm:$0xff]
        %v2898 = vld [vmem:[%s2879 + $0x90] sm:$0xff]
        %v2899 = vld [vmem:[%s2879 + $0x98] sm:$0xff]
        %v2900 = vld [vmem:[%s2879 + $0xa0] sm:$0xf]
        %v2901 = vld [vmem:[%s2879 + $0xa8] sm:$0xf]
        %2902 = vrot.lane.b32.xlu0 %v2761, 122
        %v2903 = vpop.permute.xlu0 %2902
        %2904 = vrot.lane.b32.xlu0 %v2762, 122
        %v2905 = vpop.permute.xlu0 %2904
        %v2906 = vsel %vm445, %v2903, 0
        %v2908 = vsel %vm445, %v2905, 0
        %v2911 = vsel %vm454, %v2900, 0
        %v2914 = vsel %vm454, %v2901, 0
        %2916 = vmatprep.subr.mxu0 %v2881
        %2917 = vmatpush1.msra.mxu0 %v2880
        %2918 = vmatprep.subr.mxu0 %v2883
        %2919 = vmatpush1.msra.mxu0 %v2882
        %2920 = vmatprep.subr.mxu0 %v2885
        %2921 = vmatpush1.msra.mxu0 %v2884
        %2922 = vmatprep.subr.mxu0 %v2887
        %2923 = vmatpush1.msra.mxu0 %v2886
        %2924 = vmatprep.subr.mxu0 %v2889
        %2925 = vmatpush1.msra.mxu0 %v2888
        %2926 = vmatprep.subr.mxu0 %v2891
        %2927 = vmatpush1.msra.mxu0 %v2890
        %2928 = vmatprep.subr.mxu0 %v2893
        %2929 = vmatpush1.msra.mxu0 %v2892
        %2930 = vmatprep.subr.mxu0 %v2895
        %2931 = vmatpush1.msra.mxu0 %v2894
        %2932 = vmatprep.subr.mxu0 %v2897
        %2933 = vmatpush1.msra.mxu0 %v2896
        %2934 = vmatprep.subr.mxu0 %v2899
        %2935 = vmatpush1.msra.mxu0 %v2898
        %2936 = vmatprep.subr.mxu0 %v2914
        %2937 = vmatpush1.msra.mxu0 %v2911
        %2938 = vmatprep.subr.mxu0 0.0
        %2939 = vmatpush1.msra.mxu0 0.0
        %2940 = vmatprep.subr.mxu0 0.0
        %2941 = vmatpush1.msra.mxu0 0.0
        %2942 = vmatprep.subr.mxu0 0.0
        %2943 = vmatpush1.msra.mxu0 0.0
        %2944 = vmatprep.subr.mxu0 0.0
        %2945 = vmatpush1.msra.mxu0 0.0
        %2946 = vmatprep.subr.mxu0 0.0
        %2947 = vmatpush1.msra.mxu0 0.0
        %2948 = vmatprep.subr.mxu0 0.0
        %2949 = vmatpush1.msra.mxu0 0.0
        %2950 = vmatprep.subr.mxu0 0.0
        %2951 = vmatpush1.msra.mxu0 0.0
        %2952 = vmatprep.subr.mxu0 0.0
        %2953 = vmatpush1.msra.mxu0 0.0
        %2954 = vmatprep.subr.mxu0 0.0
        %2955 = vmatpush1.msra.mxu0 0.0
        %2956 = vmatprep.subr.mxu0 0.0
        %2957 = vmatpush1.msra.mxu0 0.0
        %2958 = vmatprep.subr.mxu0 0.0
        %2959 = vmatpush1.msra.mxu0 0.0
        %2960 = vmatprep.subr.mxu0 0.0
        %2961 = vmatpush1.msra.mxu0 0.0
        %2962 = vmatprep.subr.mxu0 0.0
        %2963 = vmatpush1.msra.mxu0 0.0
        %2964 = vmatprep.subr.mxu0 0.0
        %2965 = vmatpush1.msra.mxu0 0.0
        %2966 = vmatprep.subr.mxu0 0.0
        %2967 = vmatpush1.msra.mxu0 0.0
        %2968 = vmatprep.subr.mxu0 0.0
        %2969 = vmatpush1.msra.mxu0 0.0
        %2970 = vmatprep.subr.mxu0 0.0
        %2971 = vmatpush1.msra.mxu0 0.0
        %2972 = vmatprep.subr.mxu0 0.0
        %2973 = vmatpush1.msra.mxu0 0.0
        %2974 = vmatprep.subr.mxu0 0.0
        %2975 = vmatpush1.msra.mxu0 0.0
        %2976 = vmatprep.subr.mxu0 0.0
        %2977 = vmatpush1.msra.mxu0 0.0
        %2978 = vmatprep.subr.mxu0 0.0
        %2979 = vmatpush1.msra.mxu0 0.0
        %2980 = vmatprep.mubr.f32.mxu0 0.0
        %2981 = vmatmul.mubr.f32.gmra.mrb[0].mxu0 %v2906
        %v2982 = vpop.f32.mrb[0].mxu0
        %v2983 = vadd.f32 0.0, %v2982
        %v2984 = vpop.f32.mrb[0].mxu0
        %v2985 = vadd.f32 0.0, %v2984
        %2986 = vmatprep.mubr.f32.mxu0 0.0
        %2987 = vmatmul.mubr.f32.gmra.mrb[0].mxu0 %v2908
        %v2988 = vpop.f32.mrb[0].mxu0
        %v2989 = vadd.f32 0.0, %v2988
        %v2990 = vpop.f32.mrb[0].mxu0
        %v2991 = vadd.f32 0.0, %v2990
        %2992 = vdwg.mxu0
        %v2993 = vadd.f32 %v2875, %v2983
        %v2994 = vadd.f32 %v2876, %v2985
        %v2995 = vadd.f32 %v2877, %v2989
        %v2996 = vadd.f32 %v2878, %v2991
        %s2997 = scalar_lea.vmem %s5, 1408
        %v2998 = vld [vmem:[%s2997] sm:$0xff]
        %v2999 = vld [vmem:[%s2997 + $0x8] sm:$0xff]
        %v3000 = vld [vmem:[%s2997 + $0x10] sm:$0xff]
        %v3001 = vld [vmem:[%s2997 + $0x18] sm:$0xff]
        %v3002 = vld [vmem:[%s2997 + $0x20] sm:$0xff]
        %v3003 = vld [vmem:[%s2997 + $0x28] sm:$0xff]
        %v3004 = vld [vmem:[%s2997 + $0x30] sm:$0xff]
        %v3005 = vld [vmem:[%s2997 + $0x38] sm:$0xff]
        %v3006 = vld [vmem:[%s2997 + $0x40] sm:$0xff]
        %v3007 = vld [vmem:[%s2997 + $0x48] sm:$0xff]
        %v3008 = vld [vmem:[%s2997 + $0x50] sm:$0xff]
        %v3009 = vld [vmem:[%s2997 + $0x58] sm:$0xff]
        %v3010 = vld [vmem:[%s2997 + $0x60] sm:$0xff]
        %v3011 = vld [vmem:[%s2997 + $0x68] sm:$0xff]
        %v3012 = vld [vmem:[%s2997 + $0x70] sm:$0xff]
        %v3013 = vld [vmem:[%s2997 + $0x78] sm:$0xff]
        %v3014 = vld [vmem:[%s2997 + $0x80] sm:$0xff]
        %v3015 = vld [vmem:[%s2997 + $0x88] sm:$0xff]
        %v3016 = vld [vmem:[%s2997 + $0x90] sm:$0xff]
        %v3017 = vld [vmem:[%s2997 + $0x98] sm:$0xff]
        %v3018 = vld [vmem:[%s2997 + $0xa0] sm:$0xf]
        %v3019 = vld [vmem:[%s2997 + $0xa8] sm:$0xf]
        %3020 = vrot.lane.b32.xlu0 %v2761, 116
        %v3021 = vpop.permute.xlu0 %3020
        %3022 = vrot.lane.b32.xlu0 %v2762, 116
        %v3023 = vpop.permute.xlu0 %3022
        %v3024 = vsel %vm445, %v3021, 0
        %v3026 = vsel %vm445, %v3023, 0
        %v3029 = vsel %vm454, %v3018, 0
        %v3032 = vsel %vm454, %v3019, 0
        %3034 = vmatprep.subr.mxu0 %v2999
        %3035 = vmatpush1.msra.mxu0 %v2998
        %3036 = vmatprep.subr.mxu0 %v3001
        %3037 = vmatpush1.msra.mxu0 %v3000
        %3038 = vmatprep.subr.mxu0 %v3003
        %3039 = vmatpush1.msra.mxu0 %v3002
        %3040 = vmatprep.subr.mxu0 %v3005
        %3041 = vmatpush1.msra.mxu0 %v3004
        %3042 = vmatprep.subr.mxu0 %v3007
        %3043 = vmatpush1.msra.mxu0 %v3006
        %3044 = vmatprep.subr.mxu0 %v3009
        %3045 = vmatpush1.msra.mxu0 %v3008
        %3046 = vmatprep.subr.mxu0 %v3011
        %3047 = vmatpush1.msra.mxu0 %v3010
        %3048 = vmatprep.subr.mxu0 %v3013
        %3049 = vmatpush1.msra.mxu0 %v3012
        %3050 = vmatprep.subr.mxu0 %v3015
        %3051 = vmatpush1.msra.mxu0 %v3014
        %3052 = vmatprep.subr.mxu0 %v3017
        %3053 = vmatpush1.msra.mxu0 %v3016
        %3054 = vmatprep.subr.mxu0 %v3032
        %3055 = vmatpush1.msra.mxu0 %v3029
        %3056 = vmatprep.subr.mxu0 0.0
        %3057 = vmatpush1.msra.mxu0 0.0
        %3058 = vmatprep.subr.mxu0 0.0
        %3059 = vmatpush1.msra.mxu0 0.0
        %3060 = vmatprep.subr.mxu0 0.0
        %3061 = vmatpush1.msra.mxu0 0.0
        %3062 = vmatprep.subr.mxu0 0.0
        %3063 = vmatpush1.msra.mxu0 0.0
        %3064 = vmatprep.subr.mxu0 0.0
        %3065 = vmatpush1.msra.mxu0 0.0
        %3066 = vmatprep.subr.mxu0 0.0
        %3067 = vmatpush1.msra.mxu0 0.0
        %3068 = vmatprep.subr.mxu0 0.0
        %3069 = vmatpush1.msra.mxu0 0.0
        %3070 = vmatprep.subr.mxu0 0.0
        %3071 = vmatpush1.msra.mxu0 0.0
        %3072 = vmatprep.subr.mxu0 0.0
        %3073 = vmatpush1.msra.mxu0 0.0
        %3074 = vmatprep.subr.mxu0 0.0
        %3075 = vmatpush1.msra.mxu0 0.0
        %3076 = vmatprep.subr.mxu0 0.0
        %3077 = vmatpush1.msra.mxu0 0.0
        %3078 = vmatprep.subr.mxu0 0.0
        %3079 = vmatpush1.msra.mxu0 0.0
        %3080 = vmatprep.subr.mxu0 0.0
        %3081 = vmatpush1.msra.mxu0 0.0
        %3082 = vmatprep.subr.mxu0 0.0
        %3083 = vmatpush1.msra.mxu0 0.0
        %3084 = vmatprep.subr.mxu0 0.0
        %3085 = vmatpush1.msra.mxu0 0.0
        %3086 = vmatprep.subr.mxu0 0.0
        %3087 = vmatpush1.msra.mxu0 0.0
        %3088 = vmatprep.subr.mxu0 0.0
        %3089 = vmatpush1.msra.mxu0 0.0
        %3090 = vmatprep.subr.mxu0 0.0
        %3091 = vmatpush1.msra.mxu0 0.0
        %3092 = vmatprep.subr.mxu0 0.0
        %3093 = vmatpush1.msra.mxu0 0.0
        %3094 = vmatprep.subr.mxu0 0.0
        %3095 = vmatpush1.msra.mxu0 0.0
        %3096 = vmatprep.subr.mxu0 0.0
        %3097 = vmatpush1.msra.mxu0 0.0
        %3098 = vmatprep.mubr.f32.mxu0 0.0
        %3099 = vmatmul.mubr.f32.gmra.mrb[0].mxu0 %v3024
        %v3100 = vpop.f32.mrb[0].mxu0
        %v3101 = vadd.f32 0.0, %v3100
        %v3102 = vpop.f32.mrb[0].mxu0
        %v3103 = vadd.f32 0.0, %v3102
        %3104 = vmatprep.mubr.f32.mxu0 0.0
        %3105 = vmatmul.mubr.f32.gmra.mrb[0].mxu0 %v3026
        %v3106 = vpop.f32.mrb[0].mxu0
        %v3107 = vadd.f32 0.0, %v3106
        %v3108 = vpop.f32.mrb[0].mxu0
        %v3109 = vadd.f32 0.0, %v3108
        %3110 = vdwg.mxu0
        %v3111 = vadd.f32 %v2993, %v3101
        %v3112 = vadd.f32 %v2994, %v3103
        %v3113 = vadd.f32 %v2995, %v3107
        %v3114 = vadd.f32 %v2996, %v3109
        %v3115 = vld [vmem:[%s6] sm:$0x3]
        %v3117 = vlaneseq
        %v3118 = vshrl.u32 %v3117, 7
        %v3119 = vsub.s32 0, %v3118
        %v3120 = vrot.slane %v3115, %v3119
        %v3121 = vlaneseq
        %v3122 = vshrl.u32 %v3121, 7
        %v3123 = vsub.s32 1, %v3122
        %v3124 = vrot.slane %v3115, %v3123
        %v3127 = vadd.f32 %v3111, %v3120
        %v3128 = vadd.f32 %v3112, %v3124
        %v3129 = vadd.f32 %v3113, %v3120
        %v3130 = vadd.f32 %v3114, %v3124
        %v3131 = vmax.f32 %v3127, 0.0
        %v3132 = vmax.f32 %v3128, 0.0
        %v3133 = vmax.f32 %v3129, 0.0
        %v3134 = vmax.f32 %v3130, 0.0
        %v3135 = vld [vmem:[%s7] sm:$0x7f]
        %vm3136 = vcmask 113664
        %v3138 = vsel %vm3136, %v3135, 0
        %vm3140 = vcmask 1045504
        %v3142 = vsel %vm3140, %v3133, 0
        %v3145 = vsel %vm3140, %v3134, 0
        %3147 = vmatprep.subr.mxu0 %v3132
        %3148 = vmatpush1.msra.mxu0 %v3131
        %3149 = vmatprep.subr.mxu0 %v3145
        %3150 = vmatpush1.msra.mxu0 %v3142
        %3151 = vmatprep.subr.mxu0 0.0
        %3152 = vmatpush1.msra.mxu0 0.0
        %3153 = vmatprep.subr.mxu0 0.0
        %3154 = vmatpush1.msra.mxu0 0.0
        %3155 = vmatprep.subr.mxu0 0.0
        %3156 = vmatpush1.msra.mxu0 0.0
        %3157 = vmatprep.subr.mxu0 0.0
        %3158 = vmatpush1.msra.mxu0 0.0
        %3159 = vmatprep.subr.mxu0 0.0
        %3160 = vmatpush1.msra.mxu0 0.0
        %3161 = vmatprep.subr.mxu0 0.0
        %3162 = vmatpush1.msra.mxu0 0.0
        %3163 = vmatprep.subr.mxu0 0.0
        %3164 = vmatpush1.msra.mxu0 0.0
        %3165 = vmatprep.subr.mxu0 0.0
        %3166 = vmatpush1.msra.mxu0 0.0
        %3167 = vmatprep.subr.mxu0 0.0
        %3168 = vmatpush1.msra.mxu0 0.0
        %3169 = vmatprep.subr.mxu0 0.0
        %3170 = vmatpush1.msra.mxu0 0.0
        %3171 = vmatprep.subr.mxu0 0.0
        %3172 = vmatpush1.msra.mxu0 0.0
        %3173 = vmatprep.subr.mxu0 0.0
        %3174 = vmatpush1.msra.mxu0 0.0
        %3175 = vmatprep.subr.mxu0 0.0
        %3176 = vmatpush1.msra.mxu0 0.0
        %3177 = vmatprep.subr.mxu0 0.0
        %3178 = vmatpush1.msra.mxu0 0.0
        %3179 = vmatprep.subr.mxu0 0.0
        %3180 = vmatpush1.msra.mxu0 0.0
        %3181 = vmatprep.subr.mxu0 0.0
        %3182 = vmatpush1.msra.mxu0 0.0
        %3183 = vmatprep.subr.mxu0 0.0
        %3184 = vmatpush1.msra.mxu0 0.0
        %3185 = vmatprep.subr.mxu0 0.0
        %3186 = vmatpush1.msra.mxu0 0.0
        %3187 = vmatprep.subr.mxu0 0.0
        %3188 = vmatpush1.msra.mxu0 0.0
        %3189 = vmatprep.subr.mxu0 0.0
        %3190 = vmatpush1.msra.mxu0 0.0
        %3191 = vmatprep.subr.mxu0 0.0
        %3192 = vmatpush1.msra.mxu0 0.0
        %3193 = vmatprep.subr.mxu0 0.0
        %3194 = vmatpush1.msra.mxu0 0.0
        %3195 = vmatprep.subr.mxu0 0.0
        %3196 = vmatpush1.msra.mxu0 0.0
        %3197 = vmatprep.subr.mxu0 0.0
        %3198 = vmatpush1.msra.mxu0 0.0
        %3199 = vmatprep.subr.mxu0 0.0
        %3200 = vmatpush1.msra.mxu0 0.0
        %3201 = vmatprep.subr.mxu0 0.0
        %3202 = vmatpush1.msra.mxu0 0.0
        %3203 = vmatprep.subr.mxu0 0.0
        %3204 = vmatpush1.msra.mxu0 0.0
        %3205 = vmatprep.subr.mxu0 0.0
        %3206 = vmatpush1.msra.mxu0 0.0
        %3207 = vmatprep.subr.mxu0 0.0
        %3208 = vmatpush1.msra.mxu0 0.0
        %3209 = vmatprep.subr.mxu0 0.0
        %3210 = vmatpush1.msra.mxu0 0.0
        %3211 = vmatprep.mubr.f32.mxu0 0.0
        %3212 = vmatmul.mubr.f32.gmra.mrb[0].mxu0 %v3138
        %v3213 = vpop.f32.mrb[0].mxu0
        %v3214 = vadd.f32 0.0, %v3213
        %v3215 = vpop.f32.mrb[0].mxu0
        %v3216 = vadd.f32 0.0, %v3215
        %3217 = vdwg.mxu0
        %s3218 = scalar_lea.vmem %s7, 8
        %v3219 = vld [vmem:[%s3218] sm:$0x7f]
        %v3221 = vsel %vm3136, %v3219, 0
        %3223 = vmatprep.subr.mxu0 %v3132
        %3224 = vmatpush1.msra.mxu0 %v3131
        %3225 = vmatprep.subr.mxu0 %v3145
        %3226 = vmatpush1.msra.mxu0 %v3142
        %3227 = vmatprep.subr.mxu0 0.0
        %3228 = vmatpush1.msra.mxu0 0.0
        %3229 = vmatprep.subr.mxu0 0.0
        %3230 = vmatpush1.msra.mxu0 0.0
        %3231 = vmatprep.subr.mxu0 0.0
        %3232 = vmatpush1.msra.mxu0 0.0
        %3233 = vmatprep.subr.mxu0 0.0
        %3234 = vmatpush1.msra.mxu0 0.0
        %3235 = vmatprep.subr.mxu0 0.0
        %3236 = vmatpush1.msra.mxu0 0.0
        %3237 = vmatprep.subr.mxu0 0.0
        %3238 = vmatpush1.msra.mxu0 0.0
        %3239 = vmatprep.subr.mxu0 0.0
        %3240 = vmatpush1.msra.mxu0 0.0
        %3241 = vmatprep.subr.mxu0 0.0
        %3242 = vmatpush1.msra.mxu0 0.0
        %3243 = vmatprep.subr.mxu0 0.0
        %3244 = vmatpush1.msra.mxu0 0.0
        %3245 = vmatprep.subr.mxu0 0.0
        %3246 = vmatpush1.msra.mxu0 0.0
        %3247 = vmatprep.subr.mxu0 0.0
        %3248 = vmatpush1.msra.mxu0 0.0
        %3249 = vmatprep.subr.mxu0 0.0
        %3250 = vmatpush1.msra.mxu0 0.0
        %3251 = vmatprep.subr.mxu0 0.0
        %3252 = vmatpush1.msra.mxu0 0.0
        %3253 = vmatprep.subr.mxu0 0.0
        %3254 = vmatpush1.msra.mxu0 0.0
        %3255 = vmatprep.subr.mxu0 0.0
        %3256 = vmatpush1.msra.mxu0 0.0
        %3257 = vmatprep.subr.mxu0 0.0
        %3258 = vmatpush1.msra.mxu0 0.0
        %3259 = vmatprep.subr.mxu0 0.0
        %3260 = vmatpush1.msra.mxu0 0.0
        %3261 = vmatprep.subr.mxu0 0.0
        %3262 = vmatpush1.msra.mxu0 0.0
        %3263 = vmatprep.subr.mxu0 0.0
        %3264 = vmatpush1.msra.mxu0 0.0
        %3265 = vmatprep.subr.mxu0 0.0
        %3266 = vmatpush1.msra.mxu0 0.0
        %3267 = vmatprep.subr.mxu0 0.0
        %3268 = vmatpush1.msra.mxu0 0.0
        %3269 = vmatprep.subr.mxu0 0.0
        %3270 = vmatpush1.msra.mxu0 0.0
        %3271 = vmatprep.subr.mxu0 0.0
        %3272 = vmatpush1.msra.mxu0 0.0
        %3273 = vmatprep.subr.mxu0 0.0
        %3274 = vmatpush1.msra.mxu0 0.0
        %3275 = vmatprep.subr.mxu0 0.0
        %3276 = vmatpush1.msra.mxu0 0.0
        %3277 = vmatprep.subr.mxu0 0.0
        %3278 = vmatpush1.msra.mxu0 0.0
        %3279 = vmatprep.subr.mxu0 0.0
        %3280 = vmatpush1.msra.mxu0 0.0
        %3281 = vmatprep.subr.mxu0 0.0
        %3282 = vmatpush1.msra.mxu0 0.0
        %3283 = vmatprep.subr.mxu0 0.0
        %3284 = vmatpush1.msra.mxu0 0.0
        %3285 = vmatprep.subr.mxu0 0.0
        %3286 = vmatpush1.msra.mxu0 0.0
        %3287 = vmatprep.mubr.f32.mxu0 0.0
        %3288 = vmatmul.mubr.f32.gmra.mrb[0].mxu0 %v3221
        %v3289 = vpop.f32.mrb[0].mxu0
        %v3290 = vadd.f32 0.0, %v3289
        %v3291 = vpop.f32.mrb[0].mxu0
        %v3292 = vadd.f32 0.0, %v3291
        %3293 = vdwg.mxu0
        %v3294 = vmax.f32 %v3214, %v3290
        %v3295 = vmax.f32 %v3216, %v3292
        %v3296 = vld [vmem:[%s8] sm:$0xff]
        %v3297 = vld [vmem:[%s8 + $0x8] sm:$0xff]
        %v3298 = vld [vmem:[%s8 + $0x10] sm:$0xff]
        %v3299 = vld [vmem:[%s8 + $0x18] sm:$0xff]
        %v3300 = vld [vmem:[%s8 + $0x20] sm:$0xff]
        %v3301 = vld [vmem:[%s8 + $0x28] sm:$0xff]
        %v3302 = vld [vmem:[%s8 + $0x30] sm:$0xff]
        %v3303 = vld [vmem:[%s8 + $0x38] sm:$0xff]
        %v3304 = vld [vmem:[%s8 + $0x40] sm:$0xff]
        %v3305 = vld [vmem:[%s8 + $0x48] sm:$0xff]
        %v3306 = vld [vmem:[%s8 + $0x50] sm:$0xff]
        %v3307 = vld [vmem:[%s8 + $0x58] sm:$0xff]
        %v3308 = vld [vmem:[%s8 + $0x60] sm:$0xff]
        %v3309 = vld [vmem:[%s8 + $0x68] sm:$0xff]
        %v3310 = vld [vmem:[%s8 + $0x70] sm:$0xff]
        %v3311 = vld [vmem:[%s8 + $0x78] sm:$0xff]
        %v3312 = vld [vmem:[%s8 + $0x80] sm:$0xff]
        %v3313 = vld [vmem:[%s8 + $0x88] sm:$0xff]
        %v3314 = vld [vmem:[%s8 + $0x90] sm:$0xff]
        %v3315 = vld [vmem:[%s8 + $0x98] sm:$0xff]
        %v3316 = vld [vmem:[%s8 + $0xa0] sm:$0xff]
        %v3317 = vld [vmem:[%s8 + $0xa8] sm:$0xff]
        %v3318 = vld [vmem:[%s8 + $0xb0] sm:$0xff]
        %v3319 = vld [vmem:[%s8 + $0xb8] sm:$0xff]
        %v3320 = vld [vmem:[%s8 + $0xc0] sm:$0xff]
        %v3321 = vld [vmem:[%s8 + $0xc8] sm:$0xff]
        %v3322 = vld [vmem:[%s8 + $0xd0] sm:$0xff]
        %v3323 = vld [vmem:[%s8 + $0xd8] sm:$0xff]
        %v3325 = vsel %vm2059, %v3295, 0
        %3327 = vmatprep.subr.mxu0 0.0
        %3328 = vmatpush1.msra.mxu0 %v3296
        %3329 = vmatprep.subr.mxu0 0.0
        %3330 = vmatpush1.msra.mxu0 %v3297
        %3331 = vmatprep.subr.mxu0 0.0
        %3332 = vmatpush1.msra.mxu0 %v3298
        %3333 = vmatprep.subr.mxu0 0.0
        %3334 = vmatpush1.msra.mxu0 %v3299
        %3335 = vmatprep.subr.mxu0 0.0
        %3336 = vmatpush1.msra.mxu0 %v3300
        %3337 = vmatprep.subr.mxu0 0.0
        %3338 = vmatpush1.msra.mxu0 %v3301
        %3339 = vmatprep.subr.mxu0 0.0
        %3340 = vmatpush1.msra.mxu0 %v3302
        %3341 = vmatprep.subr.mxu0 0.0
        %3342 = vmatpush1.msra.mxu0 %v3303
        %3343 = vmatprep.subr.mxu0 0.0
        %3344 = vmatpush1.msra.mxu0 %v3304
        %3345 = vmatprep.subr.mxu0 0.0
        %3346 = vmatpush1.msra.mxu0 %v3305
        %3347 = vmatprep.subr.mxu0 0.0
        %3348 = vmatpush1.msra.mxu0 %v3306
        %3349 = vmatprep.subr.mxu0 0.0
        %3350 = vmatpush1.msra.mxu0 %v3307
        %3351 = vmatprep.subr.mxu0 0.0
        %3352 = vmatpush1.msra.mxu0 %v3308
        %3353 = vmatprep.subr.mxu0 0.0
        %3354 = vmatpush1.msra.mxu0 %v3309
        %3355 = vmatprep.subr.mxu0 0.0
        %3356 = vmatpush1.msra.mxu0 %v3310
        %3357 = vmatprep.subr.mxu0 0.0
        %3358 = vmatpush1.msra.mxu0 %v3311
        %3359 = vmatprep.subr.mxu0 0.0
        %3360 = vmatpush1.msra.mxu0 %v3312
        %3361 = vmatprep.subr.mxu0 0.0
        %3362 = vmatpush1.msra.mxu0 %v3313
        %3363 = vmatprep.subr.mxu0 0.0
        %3364 = vmatpush1.msra.mxu0 %v3314
        %3365 = vmatprep.subr.mxu0 0.0
        %3366 = vmatpush1.msra.mxu0 %v3315
        %3367 = vmatprep.subr.mxu0 0.0
        %3368 = vmatpush1.msra.mxu0 %v3316
        %3369 = vmatprep.subr.mxu0 0.0
        %3370 = vmatpush1.msra.mxu0 %v3317
        %3371 = vmatprep.subr.mxu0 0.0
        %3372 = vmatpush1.msra.mxu0 %v3318
        %3373 = vmatprep.subr.mxu0 0.0
        %3374 = vmatpush1.msra.mxu0 %v3319
        %3375 = vmatprep.subr.mxu0 0.0
        %3376 = vmatpush1.msra.mxu0 %v3320
        %3377 = vmatprep.subr.mxu0 0.0
        %3378 = vmatpush1.msra.mxu0 %v3321
        %3379 = vmatprep.subr.mxu0 0.0
        %3380 = vmatpush1.msra.mxu0 %v3322
        %3381 = vmatprep.subr.mxu0 0.0
        %3382 = vmatpush1.msra.mxu0 %v3323
        %3383 = vmatprep.subr.mxu0 0.0
        %3384 = vmatpush1.msra.mxu0 0.0
        %3385 = vmatprep.subr.mxu0 0.0
        %3386 = vmatpush1.msra.mxu0 0.0
        %3387 = vmatprep.subr.mxu0 0.0
        %3388 = vmatpush1.msra.mxu0 0.0
        %3389 = vmatprep.subr.mxu0 0.0
        %3390 = vmatpush1.msra.mxu0 0.0
        %3391 = vmatprep.mubr.f32.mxu0 %v3325
        %3392 = vmatmul.mubr.f32.gmra.mrb[0].mxu0 %v3294
        %v3393 = vpop.f32.mrb[0].mxu0
        %v3394 = vadd.f32 0.0, %v3393
        %v3395 = vpop.f32.mrb[0].mxu0
        %3396 = vdwg.mxu0
        %s3397 = scalar_lea.vmem %s8, 224
        %v3398 = vld [vmem:[%s3397] sm:$0xff]
        %v3399 = vld [vmem:[%s3397 + $0x8] sm:$0xff]
        %v3400 = vld [vmem:[%s3397 + $0x10] sm:$0xff]
        %v3401 = vld [vmem:[%s3397 + $0x18] sm:$0xff]
        %v3402 = vld [vmem:[%s3397 + $0x20] sm:$0xff]
        %v3403 = vld [vmem:[%s3397 + $0x28] sm:$0xff]
        %v3404 = vld [vmem:[%s3397 + $0x30] sm:$0xff]
        %v3405 = vld [vmem:[%s3397 + $0x38] sm:$0xff]
        %v3406 = vld [vmem:[%s3397 + $0x40] sm:$0xff]
        %v3407 = vld [vmem:[%s3397 + $0x48] sm:$0xff]
        %v3408 = vld [vmem:[%s3397 + $0x50] sm:$0xff]
        %v3409 = vld [vmem:[%s3397 + $0x58] sm:$0xff]
        %v3410 = vld [vmem:[%s3397 + $0x60] sm:$0xff]
        %v3411 = vld [vmem:[%s3397 + $0x68] sm:$0xff]
        %v3412 = vld [vmem:[%s3397 + $0x70] sm:$0xff]
        %v3413 = vld [vmem:[%s3397 + $0x78] sm:$0xff]
        %v3414 = vld [vmem:[%s3397 + $0x80] sm:$0xff]
        %v3415 = vld [vmem:[%s3397 + $0x88] sm:$0xff]
        %v3416 = vld [vmem:[%s3397 + $0x90] sm:$0xff]
        %v3417 = vld [vmem:[%s3397 + $0x98] sm:$0xff]
        %v3418 = vld [vmem:[%s3397 + $0xa0] sm:$0xff]
        %v3419 = vld [vmem:[%s3397 + $0xa8] sm:$0xff]
        %v3420 = vld [vmem:[%s3397 + $0xb0] sm:$0xff]
        %v3421 = vld [vmem:[%s3397 + $0xb8] sm:$0xff]
        %v3422 = vld [vmem:[%s3397 + $0xc0] sm:$0xff]
        %v3423 = vld [vmem:[%s3397 + $0xc8] sm:$0xff]
        %v3424 = vld [vmem:[%s3397 + $0xd0] sm:$0xff]
        %v3425 = vld [vmem:[%s3397 + $0xd8] sm:$0xff]
        %3426 = vmatprep.subr.mxu0 0.0
        %3427 = vmatpush1.msra.mxu0 %v3398
        %3428 = vmatprep.subr.mxu0 0.0
        %3429 = vmatpush1.msra.mxu0 %v3399
        %3430 = vmatprep.subr.mxu0 0.0
        %3431 = vmatpush1.msra.mxu0 %v3400
        %3432 = vmatprep.subr.mxu0 0.0
        %3433 = vmatpush1.msra.mxu0 %v3401
        %3434 = vmatprep.subr.mxu0 0.0
        %3435 = vmatpush1.msra.mxu0 %v3402
        %3436 = vmatprep.subr.mxu0 0.0
        %3437 = vmatpush1.msra.mxu0 %v3403
        %3438 = vmatprep.subr.mxu0 0.0
        %3439 = vmatpush1.msra.mxu0 %v3404
        %3440 = vmatprep.subr.mxu0 0.0
        %3441 = vmatpush1.msra.mxu0 %v3405
        %3442 = vmatprep.subr.mxu0 0.0
        %3443 = vmatpush1.msra.mxu0 %v3406
        %3444 = vmatprep.subr.mxu0 0.0
        %3445 = vmatpush1.msra.mxu0 %v3407
        %3446 = vmatprep.subr.mxu0 0.0
        %3447 = vmatpush1.msra.mxu0 %v3408
        %3448 = vmatprep.subr.mxu0 0.0
        %3449 = vmatpush1.msra.mxu0 %v3409
        %3450 = vmatprep.subr.mxu0 0.0
        %3451 = vmatpush1.msra.mxu0 %v3410
        %3452 = vmatprep.subr.mxu0 0.0
        %3453 = vmatpush1.msra.mxu0 %v3411
        %3454 = vmatprep.subr.mxu0 0.0
        %3455 = vmatpush1.msra.mxu0 %v3412
        %3456 = vmatprep.subr.mxu0 0.0
        %3457 = vmatpush1.msra.mxu0 %v3413
        %3458 = vmatprep.subr.mxu0 0.0
        %3459 = vmatpush1.msra.mxu0 %v3414
        %3460 = vmatprep.subr.mxu0 0.0
        %3461 = vmatpush1.msra.mxu0 %v3415
        %3462 = vmatprep.subr.mxu0 0.0
        %3463 = vmatpush1.msra.mxu0 %v3416
        %3464 = vmatprep.subr.mxu0 0.0
        %3465 = vmatpush1.msra.mxu0 %v3417
        %3466 = vmatprep.subr.mxu0 0.0
        %3467 = vmatpush1.msra.mxu0 %v3418
        %3468 = vmatprep.subr.mxu0 0.0
        %3469 = vmatpush1.msra.mxu0 %v3419
        %3470 = vmatprep.subr.mxu0 0.0
        %3471 = vmatpush1.msra.mxu0 %v3420
        %3472 = vmatprep.subr.mxu0 0.0
        %3473 = vmatpush1.msra.mxu0 %v3421
        %3474 = vmatprep.subr.mxu0 0.0
        %3475 = vmatpush1.msra.mxu0 %v3422
        %3476 = vmatprep.subr.mxu0 0.0
        %3477 = vmatpush1.msra.mxu0 %v3423
        %3478 = vmatprep.subr.mxu0 0.0
        %3479 = vmatpush1.msra.mxu0 %v3424
        %3480 = vmatprep.subr.mxu0 0.0
        %3481 = vmatpush1.msra.mxu0 %v3425
        %3482 = vmatprep.subr.mxu0 0.0
        %3483 = vmatpush1.msra.mxu0 0.0
        %3484 = vmatprep.subr.mxu0 0.0
        %3485 = vmatpush1.msra.mxu0 0.0
        %3486 = vmatprep.subr.mxu0 0.0
        %3487 = vmatpush1.msra.mxu0 0.0
        %3488 = vmatprep.subr.mxu0 0.0
        %3489 = vmatpush1.msra.mxu0 0.0
        %3490 = vmatprep.mubr.f32.mxu0 %v3325
        %3491 = vmatmul.mubr.f32.gmra.mrb[0].mxu0 %v3294
        %v3492 = vpop.f32.mrb[0].mxu0
        %v3493 = vadd.f32 0.0, %v3492
        %v3494 = vpop.f32.mrb[0].mxu0
        %3495 = vdwg.mxu0
        %v3496 = vmax.f32 %v3394, %v3493
        %vm3497 = vcmask 915456
        %3498 = vst.msk [vmem:[#allocation3] sm:$0x7f] %vm3497, %v3496
        %v3499 = vld [vmem:[#allocation3] sm:$0x1]
        %v3500 = vld [vmem:[%s9] sm:$0xff]
        %v3501 = vld [vmem:[%s9 + $0x8] sm:$0xff]
        %v3502 = vld [vmem:[%s9 + $0x10] sm:$0xff]
        %v3503 = vld [vmem:[%s9 + $0x18] sm:$0xff]
        %v3504 = vld [vmem:[%s9 + $0x20] sm:$0xff]
        %v3505 = vld [vmem:[%s9 + $0x28] sm:$0xff]
        %v3506 = vld [vmem:[%s9 + $0x30] sm:$0xff]
        %v3507 = vld [vmem:[%s9 + $0x38] sm:$0xff]
        %v3508 = vld [vmem:[%s9 + $0x40] sm:$0xff]
        %v3509 = vld [vmem:[%s9 + $0x48] sm:$0xff]
        %v3510 = vld [vmem:[%s9 + $0x50] sm:$0xff]
        %v3511 = vld [vmem:[%s9 + $0x58] sm:$0xff]
        %v3512 = vld [vmem:[%s9 + $0x60] sm:$0xff]
        %v3513 = vld [vmem:[%s9 + $0x68] sm:$0xff]
        %v3514 = vld [vmem:[#allocation3 + $0x1] sm:$0x1]
        %s3515 = scalar_lea.vmem %s9, 112
        %v3516 = vld [vmem:[%s3515] sm:$0xff]
        %v3517 = vld [vmem:[%s3515 + $0x8] sm:$0xff]
        %v3518 = vld [vmem:[%s3515 + $0x10] sm:$0xff]
        %v3519 = vld [vmem:[%s3515 + $0x18] sm:$0xff]
        %v3520 = vld [vmem:[%s3515 + $0x20] sm:$0xff]
        %v3521 = vld [vmem:[%s3515 + $0x28] sm:$0xff]
        %v3522 = vld [vmem:[%s3515 + $0x30] sm:$0xff]
        %v3523 = vld [vmem:[%s3515 + $0x38] sm:$0xff]
        %v3524 = vld [vmem:[%s3515 + $0x40] sm:$0xff]
        %v3525 = vld [vmem:[%s3515 + $0x48] sm:$0xff]
        %v3526 = vld [vmem:[%s3515 + $0x50] sm:$0xff]
        %v3527 = vld [vmem:[%s3515 + $0x58] sm:$0xff]
        %v3528 = vld [vmem:[%s3515 + $0x60] sm:$0xff]
        %v3529 = vld [vmem:[%s3515 + $0x68] sm:$0xff]
        %vm3530 = vcmask 916480
        %v3532 = vsel %vm3530, %v3514, 0
        %3534 = vmatprep.subr.mxu0 0.0
        %3535 = vmatpush1.msra.mxu0 %v3516
        %3536 = vmatprep.subr.mxu0 0.0
        %3537 = vmatpush1.msra.mxu0 %v3517
        %3538 = vmatprep.subr.mxu0 0.0
        %3539 = vmatpush1.msra.mxu0 %v3518
        %3540 = vmatprep.subr.mxu0 0.0
        %3541 = vmatpush1.msra.mxu0 %v3519
        %3542 = vmatprep.subr.mxu0 0.0
        %3543 = vmatpush1.msra.mxu0 %v3520
        %3544 = vmatprep.subr.mxu0 0.0
        %3545 = vmatpush1.msra.mxu0 %v3521
        %3546 = vmatprep.subr.mxu0 0.0
        %3547 = vmatpush1.msra.mxu0 %v3522
        %3548 = vmatprep.subr.mxu0 0.0
        %3549 = vmatpush1.msra.mxu0 %v3523
        %3550 = vmatprep.subr.mxu0 0.0
        %3551 = vmatpush1.msra.mxu0 %v3524
        %3552 = vmatprep.subr.mxu0 0.0
        %3553 = vmatpush1.msra.mxu0 %v3525
        %3554 = vmatprep.subr.mxu0 0.0
        %3555 = vmatpush1.msra.mxu0 %v3526
        %3556 = vmatprep.subr.mxu0 0.0
        %3557 = vmatpush1.msra.mxu0 %v3527
        %3558 = vmatprep.subr.mxu0 0.0
        %3559 = vmatpush1.msra.mxu0 %v3528
        %3560 = vmatprep.subr.mxu0 0.0
        %3561 = vmatpush1.msra.mxu0 %v3529
        %3562 = vmatprep.subr.mxu0 0.0
        %3563 = vmatpush1.msra.mxu0 0.0
        %3564 = vmatprep.subr.mxu0 0.0
        %3565 = vmatpush1.msra.mxu0 0.0
        %3566 = vmatprep.subr.mxu0 0.0
        %3567 = vmatpush1.msra.mxu0 0.0
        %3568 = vmatprep.subr.mxu0 0.0
        %3569 = vmatpush1.msra.mxu0 0.0
        %3570 = vmatprep.subr.mxu0 0.0
        %3571 = vmatpush1.msra.mxu0 0.0
        %3572 = vmatprep.subr.mxu0 0.0
        %3573 = vmatpush1.msra.mxu0 0.0
        %3574 = vmatprep.subr.mxu0 0.0
        %3575 = vmatpush1.msra.mxu0 0.0
        %3576 = vmatprep.subr.mxu0 0.0
        %3577 = vmatpush1.msra.mxu0 0.0
        %3578 = vmatprep.subr.mxu0 0.0
        %3579 = vmatpush1.msra.mxu0 0.0
        %3580 = vmatprep.subr.mxu0 0.0
        %3581 = vmatpush1.msra.mxu0 0.0
        %3582 = vmatprep.subr.mxu0 0.0
        %3583 = vmatpush1.msra.mxu0 0.0
        %3584 = vmatprep.subr.mxu0 0.0
        %3585 = vmatpush1.msra.mxu0 0.0
        %3586 = vmatprep.subr.mxu0 0.0
        %3587 = vmatpush1.msra.mxu0 0.0
        %3588 = vmatprep.subr.mxu0 0.0
        %3589 = vmatpush1.msra.mxu0 0.0
        %3590 = vmatprep.subr.mxu0 0.0
        %3591 = vmatpush1.msra.mxu0 0.0
        %3592 = vmatprep.subr.mxu0 0.0
        %3593 = vmatpush1.msra.mxu0 0.0
        %3594 = vmatprep.subr.mxu0 0.0
        %3595 = vmatpush1.msra.mxu0 0.0
        %3596 = vmatprep.subr.mxu0 0.0
        %3597 = vmatpush1.msra.mxu0 0.0
        %3598 = vmatprep.mubr.f32.mxu0 0.0
        %3599 = vmatmul.mubr.f32.gmra.mrb[0].mxu0 %v3532
        %v3600 = vpop.f32.mrb[0].mxu0
        %v3601 = vadd.f32 0.0, %v3600
        %v3602 = vpop.f32.mrb[0].mxu0
        %3603 = vdwg.mxu0
        %v3605 = vsel %vm3530, %v3499, 0
        %3607 = vmatprep.subr.mxu0 0.0
        %3608 = vmatpush1.msra.mxu0 %v3500
        %3609 = vmatprep.subr.mxu0 0.0
        %3610 = vmatpush1.msra.mxu0 %v3501
        %3611 = vmatprep.subr.mxu0 0.0
        %3612 = vmatpush1.msra.mxu0 %v3502
        %3613 = vmatprep.subr.mxu0 0.0
        %3614 = vmatpush1.msra.mxu0 %v3503
        %3615 = vmatprep.subr.mxu0 0.0
        %3616 = vmatpush1.msra.mxu0 %v3504
        %3617 = vmatprep.subr.mxu0 0.0
        %3618 = vmatpush1.msra.mxu0 %v3505
        %3619 = vmatprep.subr.mxu0 0.0
        %3620 = vmatpush1.msra.mxu0 %v3506
        %3621 = vmatprep.subr.mxu0 0.0
        %3622 = vmatpush1.msra.mxu0 %v3507
        %3623 = vmatprep.subr.mxu0 0.0
        %3624 = vmatpush1.msra.mxu0 %v3508
        %3625 = vmatprep.subr.mxu0 0.0
        %3626 = vmatpush1.msra.mxu0 %v3509
        %3627 = vmatprep.subr.mxu0 0.0
        %3628 = vmatpush1.msra.mxu0 %v3510
        %3629 = vmatprep.subr.mxu0 0.0
        %3630 = vmatpush1.msra.mxu0 %v3511
        %3631 = vmatprep.subr.mxu0 0.0
        %3632 = vmatpush1.msra.mxu0 %v3512
        %3633 = vmatprep.subr.mxu0 0.0
        %3634 = vmatpush1.msra.mxu0 %v3513
        %3635 = vmatprep.subr.mxu0 0.0
        %3636 = vmatpush1.msra.mxu0 0.0
        %3637 = vmatprep.subr.mxu0 0.0
        %3638 = vmatpush1.msra.mxu0 0.0
        %3639 = vmatprep.subr.mxu0 0.0
        %3640 = vmatpush1.msra.mxu0 0.0
        %3641 = vmatprep.subr.mxu0 0.0
        %3642 = vmatpush1.msra.mxu0 0.0
        %3643 = vmatprep.subr.mxu0 0.0
        %3644 = vmatpush1.msra.mxu0 0.0
        %3645 = vmatprep.subr.mxu0 0.0
        %3646 = vmatpush1.msra.mxu0 0.0
        %3647 = vmatprep.subr.mxu0 0.0
        %3648 = vmatpush1.msra.mxu0 0.0
        %3649 = vmatprep.subr.mxu0 0.0
        %3650 = vmatpush1.msra.mxu0 0.0
        %3651 = vmatprep.subr.mxu0 0.0
        %3652 = vmatpush1.msra.mxu0 0.0
        %3653 = vmatprep.subr.mxu0 0.0
        %3654 = vmatpush1.msra.mxu0 0.0
        %3655 = vmatprep.subr.mxu0 0.0
        %3656 = vmatpush1.msra.mxu0 0.0
        %3657 = vmatprep.subr.mxu0 0.0
        %3658 = vmatpush1.msra.mxu0 0.0
        %3659 = vmatprep.subr.mxu0 0.0
        %3660 = vmatpush1.msra.mxu0 0.0
        %3661 = vmatprep.subr.mxu0 0.0
        %3662 = vmatpush1.msra.mxu0 0.0
        %3663 = vmatprep.subr.mxu0 0.0
        %3664 = vmatpush1.msra.mxu0 0.0
        %3665 = vmatprep.subr.mxu0 0.0
        %3666 = vmatpush1.msra.mxu0 0.0
        %3667 = vmatprep.subr.mxu0 0.0
        %3668 = vmatpush1.msra.mxu0 0.0
        %3669 = vmatprep.subr.mxu0 0.0
        %3670 = vmatpush1.msra.mxu0 0.0
        %3671 = vmatprep.mubr.f32.mxu0 0.0
        %3672 = vmatmul.mubr.f32.gmra.mrb[0].mxu0 %v3605
        %v3673 = vpop.f32.mrb[0].mxu0
        %v3674 = vadd.f32 %v3601, %v3673
        %v3675 = vpop.f32.mrb[0].mxu0
        %3676 = vdwg.mxu0
        %v3677 = vld [vmem:[#allocation3 + $0x2] sm:$0x1]
        %s3678 = scalar_lea.vmem %s9, 224
        %v3679 = vld [vmem:[%s3678] sm:$0xff]
        %v3680 = vld [vmem:[%s3678 + $0x8] sm:$0xff]
        %v3681 = vld [vmem:[%s3678 + $0x10] sm:$0xff]
        %v3682 = vld [vmem:[%s3678 + $0x18] sm:$0xff]
        %v3683 = vld [vmem:[%s3678 + $0x20] sm:$0xff]
        %v3684 = vld [vmem:[%s3678 + $0x28] sm:$0xff]
        %v3685 = vld [vmem:[%s3678 + $0x30] sm:$0xff]
        %v3686 = vld [vmem:[%s3678 + $0x38] sm:$0xff]
        %v3687 = vld [vmem:[%s3678 + $0x40] sm:$0xff]
        %v3688 = vld [vmem:[%s3678 + $0x48] sm:$0xff]
        %v3689 = vld [vmem:[%s3678 + $0x50] sm:$0xff]
        %v3690 = vld [vmem:[%s3678 + $0x58] sm:$0xff]
        %v3691 = vld [vmem:[%s3678 + $0x60] sm:$0xff]
        %v3692 = vld [vmem:[%s3678 + $0x68] sm:$0xff]
        %v3694 = vsel %vm3530, %v3677, 0
        %3696 = vmatprep.subr.mxu0 0.0
        %3697 = vmatpush1.msra.mxu0 %v3679
        %3698 = vmatprep.subr.mxu0 0.0
        %3699 = vmatpush1.msra.mxu0 %v3680
        %3700 = vmatprep.subr.mxu0 0.0
        %3701 = vmatpush1.msra.mxu0 %v3681
        %3702 = vmatprep.subr.mxu0 0.0
        %3703 = vmatpush1.msra.mxu0 %v3682
        %3704 = vmatprep.subr.mxu0 0.0
        %3705 = vmatpush1.msra.mxu0 %v3683
        %3706 = vmatprep.subr.mxu0 0.0
        %3707 = vmatpush1.msra.mxu0 %v3684
        %3708 = vmatprep.subr.mxu0 0.0
        %3709 = vmatpush1.msra.mxu0 %v3685
        %3710 = vmatprep.subr.mxu0 0.0
        %3711 = vmatpush1.msra.mxu0 %v3686
        %3712 = vmatprep.subr.mxu0 0.0
        %3713 = vmatpush1.msra.mxu0 %v3687
        %3714 = vmatprep.subr.mxu0 0.0
        %3715 = vmatpush1.msra.mxu0 %v3688
        %3716 = vmatprep.subr.mxu0 0.0
        %3717 = vmatpush1.msra.mxu0 %v3689
        %3718 = vmatprep.subr.mxu0 0.0
        %3719 = vmatpush1.msra.mxu0 %v3690
        %3720 = vmatprep.subr.mxu0 0.0
        %3721 = vmatpush1.msra.mxu0 %v3691
        %3722 = vmatprep.subr.mxu0 0.0
        %3723 = vmatpush1.msra.mxu0 %v3692
        %3724 = vmatprep.subr.mxu0 0.0
        %3725 = vmatpush1.msra.mxu0 0.0
        %3726 = vmatprep.subr.mxu0 0.0
        %3727 = vmatpush1.msra.mxu0 0.0
        %3728 = vmatprep.subr.mxu0 0.0
        %3729 = vmatpush1.msra.mxu0 0.0
        %3730 = vmatprep.subr.mxu0 0.0
        %3731 = vmatpush1.msra.mxu0 0.0
        %3732 = vmatprep.subr.mxu0 0.0
        %3733 = vmatpush1.msra.mxu0 0.0
        %3734 = vmatprep.subr.mxu0 0.0
        %3735 = vmatpush1.msra.mxu0 0.0
        %3736 = vmatprep.subr.mxu0 0.0
        %3737 = vmatpush1.msra.mxu0 0.0
        %3738 = vmatprep.subr.mxu0 0.0
        %3739 = vmatpush1.msra.mxu0 0.0
        %3740 = vmatprep.subr.mxu0 0.0
        %3741 = vmatpush1.msra.mxu0 0.0
        %3742 = vmatprep.subr.mxu0 0.0
        %3743 = vmatpush1.msra.mxu0 0.0
        %3744 = vmatprep.subr.mxu0 0.0
        %3745 = vmatpush1.msra.mxu0 0.0
        %3746 = vmatprep.subr.mxu0 0.0
        %3747 = vmatpush1.msra.mxu0 0.0
        %3748 = vmatprep.subr.mxu0 0.0
        %3749 = vmatpush1.msra.mxu0 0.0
        %3750 = vmatprep.subr.mxu0 0.0
        %3751 = vmatpush1.msra.mxu0 0.0
        %3752 = vmatprep.subr.mxu0 0.0
        %3753 = vmatpush1.msra.mxu0 0.0
        %3754 = vmatprep.subr.mxu0 0.0
        %3755 = vmatpush1.msra.mxu0 0.0
        %3756 = vmatprep.subr.mxu0 0.0
        %3757 = vmatpush1.msra.mxu0 0.0
        %3758 = vmatprep.subr.mxu0 0.0
        %3759 = vmatpush1.msra.mxu0 0.0
        %3760 = vmatprep.mubr.f32.mxu0 0.0
        %3761 = vmatmul.mubr.f32.gmra.mrb[0].mxu0 %v3694
        %v3762 = vpop.f32.mrb[0].mxu0
        %v3763 = vadd.f32 0.0, %v3762
        %v3764 = vpop.f32.mrb[0].mxu0
        %3765 = vdwg.mxu0
        %v3766 = vadd.f32 %v3674, %v3763
        %v3767 = vld [vmem:[#allocation3 + $0x3] sm:$0x1]
        %s3768 = scalar_lea.vmem %s9, 336
        %v3769 = vld [vmem:[%s3768] sm:$0xff]
        %v3770 = vld [vmem:[%s3768 + $0x8] sm:$0xff]
        %v3771 = vld [vmem:[%s3768 + $0x10] sm:$0xff]
        %v3772 = vld [vmem:[%s3768 + $0x18] sm:$0xff]
        %v3773 = vld [vmem:[%s3768 + $0x20] sm:$0xff]
        %v3774 = vld [vmem:[%s3768 + $0x28] sm:$0xff]
        %v3775 = vld [vmem:[%s3768 + $0x30] sm:$0xff]
        %v3776 = vld [vmem:[%s3768 + $0x38] sm:$0xff]
        %v3777 = vld [vmem:[%s3768 + $0x40] sm:$0xff]
        %v3778 = vld [vmem:[%s3768 + $0x48] sm:$0xff]
        %v3779 = vld [vmem:[%s3768 + $0x50] sm:$0xff]
        %v3780 = vld [vmem:[%s3768 + $0x58] sm:$0xff]
        %v3781 = vld [vmem:[%s3768 + $0x60] sm:$0xff]
        %v3782 = vld [vmem:[%s3768 + $0x68] sm:$0xff]
        %v3784 = vsel %vm3530, %v3767, 0
        %3786 = vmatprep.subr.mxu0 0.0
        %3787 = vmatpush1.msra.mxu0 %v3769
        %3788 = vmatprep.subr.mxu0 0.0
        %3789 = vmatpush1.msra.mxu0 %v3770
        %3790 = vmatprep.subr.mxu0 0.0
        %3791 = vmatpush1.msra.mxu0 %v3771
        %3792 = vmatprep.subr.mxu0 0.0
        %3793 = vmatpush1.msra.mxu0 %v3772
        %3794 = vmatprep.subr.mxu0 0.0
        %3795 = vmatpush1.msra.mxu0 %v3773
        %3796 = vmatprep.subr.mxu0 0.0
        %3797 = vmatpush1.msra.mxu0 %v3774
        %3798 = vmatprep.subr.mxu0 0.0
        %3799 = vmatpush1.msra.mxu0 %v3775
        %3800 = vmatprep.subr.mxu0 0.0
        %3801 = vmatpush1.msra.mxu0 %v3776
        %3802 = vmatprep.subr.mxu0 0.0
        %3803 = vmatpush1.msra.mxu0 %v3777
        %3804 = vmatprep.subr.mxu0 0.0
        %3805 = vmatpush1.msra.mxu0 %v3778
        %3806 = vmatprep.subr.mxu0 0.0
        %3807 = vmatpush1.msra.mxu0 %v3779
        %3808 = vmatprep.subr.mxu0 0.0
        %3809 = vmatpush1.msra.mxu0 %v3780
        %3810 = vmatprep.subr.mxu0 0.0
        %3811 = vmatpush1.msra.mxu0 %v3781
        %3812 = vmatprep.subr.mxu0 0.0
        %3813 = vmatpush1.msra.mxu0 %v3782
        %3814 = vmatprep.subr.mxu0 0.0
        %3815 = vmatpush1.msra.mxu0 0.0
        %3816 = vmatprep.subr.mxu0 0.0
        %3817 = vmatpush1.msra.mxu0 0.0
        %3818 = vmatprep.subr.mxu0 0.0
        %3819 = vmatpush1.msra.mxu0 0.0
        %3820 = vmatprep.subr.mxu0 0.0
        %3821 = vmatpush1.msra.mxu0 0.0
        %3822 = vmatprep.subr.mxu0 0.0
        %3823 = vmatpush1.msra.mxu0 0.0
        %3824 = vmatprep.subr.mxu0 0.0
        %3825 = vmatpush1.msra.mxu0 0.0
        %3826 = vmatprep.subr.mxu0 0.0
        %3827 = vmatpush1.msra.mxu0 0.0
        %3828 = vmatprep.subr.mxu0 0.0
        %3829 = vmatpush1.msra.mxu0 0.0
        %3830 = vmatprep.subr.mxu0 0.0
        %3831 = vmatpush1.msra.mxu0 0.0
        %3832 = vmatprep.subr.mxu0 0.0
        %3833 = vmatpush1.msra.mxu0 0.0
        %3834 = vmatprep.subr.mxu0 0.0
        %3835 = vmatpush1.msra.mxu0 0.0
        %3836 = vmatprep.subr.mxu0 0.0
        %3837 = vmatpush1.msra.mxu0 0.0
        %3838 = vmatprep.subr.mxu0 0.0
        %3839 = vmatpush1.msra.mxu0 0.0
        %3840 = vmatprep.subr.mxu0 0.0
        %3841 = vmatpush1.msra.mxu0 0.0
        %3842 = vmatprep.subr.mxu0 0.0
        %3843 = vmatpush1.msra.mxu0 0.0
        %3844 = vmatprep.subr.mxu0 0.0
        %3845 = vmatpush1.msra.mxu0 0.0
        %3846 = vmatprep.subr.mxu0 0.0
        %3847 = vmatpush1.msra.mxu0 0.0
        %3848 = vmatprep.subr.mxu0 0.0
        %3849 = vmatpush1.msra.mxu0 0.0
        %3850 = vmatprep.mubr.f32.mxu0 0.0
        %3851 = vmatmul.mubr.f32.gmra.mrb[0].mxu0 %v3784
        %v3852 = vpop.f32.mrb[0].mxu0
        %v3853 = vadd.f32 0.0, %v3852
        %v3854 = vpop.f32.mrb[0].mxu0
        %3855 = vdwg.mxu0
        %v3856 = vadd.f32 %v3766, %v3853
        %v3857 = vld [vmem:[#allocation3 + $0x4] sm:$0x1]
        %s3858 = scalar_lea.vmem %s9, 448
        %v3859 = vld [vmem:[%s3858] sm:$0xff]
        %v3860 = vld [vmem:[%s3858 + $0x8] sm:$0xff]
        %v3861 = vld [vmem:[%s3858 + $0x10] sm:$0xff]
        %v3862 = vld [vmem:[%s3858 + $0x18] sm:$0xff]
        %v3863 = vld [vmem:[%s3858 + $0x20] sm:$0xff]
        %v3864 = vld [vmem:[%s3858 + $0x28] sm:$0xff]
        %v3865 = vld [vmem:[%s3858 + $0x30] sm:$0xff]
        %v3866 = vld [vmem:[%s3858 + $0x38] sm:$0xff]
        %v3867 = vld [vmem:[%s3858 + $0x40] sm:$0xff]
        %v3868 = vld [vmem:[%s3858 + $0x48] sm:$0xff]
        %v3869 = vld [vmem:[%s3858 + $0x50] sm:$0xff]
        %v3870 = vld [vmem:[%s3858 + $0x58] sm:$0xff]
        %v3871 = vld [vmem:[%s3858 + $0x60] sm:$0xff]
        %v3872 = vld [vmem:[%s3858 + $0x68] sm:$0xff]
        %v3874 = vsel %vm3530, %v3857, 0
        %3876 = vmatprep.subr.mxu0 0.0
        %3877 = vmatpush1.msra.mxu0 %v3859
        %3878 = vmatprep.subr.mxu0 0.0
        %3879 = vmatpush1.msra.mxu0 %v3860
        %3880 = vmatprep.subr.mxu0 0.0
        %3881 = vmatpush1.msra.mxu0 %v3861
        %3882 = vmatprep.subr.mxu0 0.0
        %3883 = vmatpush1.msra.mxu0 %v3862
        %3884 = vmatprep.subr.mxu0 0.0
        %3885 = vmatpush1.msra.mxu0 %v3863
        %3886 = vmatprep.subr.mxu0 0.0
        %3887 = vmatpush1.msra.mxu0 %v3864
        %3888 = vmatprep.subr.mxu0 0.0
        %3889 = vmatpush1.msra.mxu0 %v3865
        %3890 = vmatprep.subr.mxu0 0.0
        %3891 = vmatpush1.msra.mxu0 %v3866
        %3892 = vmatprep.subr.mxu0 0.0
        %3893 = vmatpush1.msra.mxu0 %v3867
        %3894 = vmatprep.subr.mxu0 0.0
        %3895 = vmatpush1.msra.mxu0 %v3868
        %3896 = vmatprep.subr.mxu0 0.0
        %3897 = vmatpush1.msra.mxu0 %v3869
        %3898 = vmatprep.subr.mxu0 0.0
        %3899 = vmatpush1.msra.mxu0 %v3870
        %3900 = vmatprep.subr.mxu0 0.0
        %3901 = vmatpush1.msra.mxu0 %v3871
        %3902 = vmatprep.subr.mxu0 0.0
        %3903 = vmatpush1.msra.mxu0 %v3872
        %3904 = vmatprep.subr.mxu0 0.0
        %3905 = vmatpush1.msra.mxu0 0.0
        %3906 = vmatprep.subr.mxu0 0.0
        %3907 = vmatpush1.msra.mxu0 0.0
        %3908 = vmatprep.subr.mxu0 0.0
        %3909 = vmatpush1.msra.mxu0 0.0
        %3910 = vmatprep.subr.mxu0 0.0
        %3911 = vmatpush1.msra.mxu0 0.0
        %3912 = vmatprep.subr.mxu0 0.0
        %3913 = vmatpush1.msra.mxu0 0.0
        %3914 = vmatprep.subr.mxu0 0.0
        %3915 = vmatpush1.msra.mxu0 0.0
        %3916 = vmatprep.subr.mxu0 0.0
        %3917 = vmatpush1.msra.mxu0 0.0
        %3918 = vmatprep.subr.mxu0 0.0
        %3919 = vmatpush1.msra.mxu0 0.0
        %3920 = vmatprep.subr.mxu0 0.0
        %3921 = vmatpush1.msra.mxu0 0.0
        %3922 = vmatprep.subr.mxu0 0.0
        %3923 = vmatpush1.msra.mxu0 0.0
        %3924 = vmatprep.subr.mxu0 0.0
        %3925 = vmatpush1.msra.mxu0 0.0
        %3926 = vmatprep.subr.mxu0 0.0
        %3927 = vmatpush1.msra.mxu0 0.0
        %3928 = vmatprep.subr.mxu0 0.0
        %3929 = vmatpush1.msra.mxu0 0.0
        %3930 = vmatprep.subr.mxu0 0.0
        %3931 = vmatpush1.msra.mxu0 0.0
        %3932 = vmatprep.subr.mxu0 0.0
        %3933 = vmatpush1.msra.mxu0 0.0
        %3934 = vmatprep.subr.mxu0 0.0
        %3935 = vmatpush1.msra.mxu0 0.0
        %3936 = vmatprep.subr.mxu0 0.0
        %3937 = vmatpush1.msra.mxu0 0.0
        %3938 = vmatprep.subr.mxu0 0.0
        %3939 = vmatpush1.msra.mxu0 0.0
        %3940 = vmatprep.mubr.f32.mxu0 0.0
        %3941 = vmatmul.mubr.f32.gmra.mrb[0].mxu0 %v3874
        %v3942 = vpop.f32.mrb[0].mxu0
        %v3943 = vadd.f32 0.0, %v3942
        %v3944 = vpop.f32.mrb[0].mxu0
        %3945 = vdwg.mxu0
        %v3946 = vadd.f32 %v3856, %v3943
        %v3947 = vld [vmem:[#allocation3 + $0x5] sm:$0x1]
        %s3948 = scalar_lea.vmem %s9, 560
        %v3949 = vld [vmem:[%s3948] sm:$0xff]
        %v3950 = vld [vmem:[%s3948 + $0x8] sm:$0xff]
        %v3951 = vld [vmem:[%s3948 + $0x10] sm:$0xff]
        %v3952 = vld [vmem:[%s3948 + $0x18] sm:$0xff]
        %v3953 = vld [vmem:[%s3948 + $0x20] sm:$0xff]
        %v3954 = vld [vmem:[%s3948 + $0x28] sm:$0xff]
        %v3955 = vld [vmem:[%s3948 + $0x30] sm:$0xff]
        %v3956 = vld [vmem:[%s3948 + $0x38] sm:$0xff]
        %v3957 = vld [vmem:[%s3948 + $0x40] sm:$0xff]
        %v3958 = vld [vmem:[%s3948 + $0x48] sm:$0xff]
        %v3959 = vld [vmem:[%s3948 + $0x50] sm:$0xff]
        %v3960 = vld [vmem:[%s3948 + $0x58] sm:$0xff]
        %v3961 = vld [vmem:[%s3948 + $0x60] sm:$0xff]
        %v3962 = vld [vmem:[%s3948 + $0x68] sm:$0xff]
        %v3964 = vsel %vm3530, %v3947, 0
        %3966 = vmatprep.subr.mxu0 0.0
        %3967 = vmatpush1.msra.mxu0 %v3949
        %3968 = vmatprep.subr.mxu0 0.0
        %3969 = vmatpush1.msra.mxu0 %v3950
        %3970 = vmatprep.subr.mxu0 0.0
        %3971 = vmatpush1.msra.mxu0 %v3951
        %3972 = vmatprep.subr.mxu0 0.0
        %3973 = vmatpush1.msra.mxu0 %v3952
        %3974 = vmatprep.subr.mxu0 0.0
        %3975 = vmatpush1.msra.mxu0 %v3953
        %3976 = vmatprep.subr.mxu0 0.0
        %3977 = vmatpush1.msra.mxu0 %v3954
        %3978 = vmatprep.subr.mxu0 0.0
        %3979 = vmatpush1.msra.mxu0 %v3955
        %3980 = vmatprep.subr.mxu0 0.0
        %3981 = vmatpush1.msra.mxu0 %v3956
        %3982 = vmatprep.subr.mxu0 0.0
        %3983 = vmatpush1.msra.mxu0 %v3957
        %3984 = vmatprep.subr.mxu0 0.0
        %3985 = vmatpush1.msra.mxu0 %v3958
        %3986 = vmatprep.subr.mxu0 0.0
        %3987 = vmatpush1.msra.mxu0 %v3959
        %3988 = vmatprep.subr.mxu0 0.0
        %3989 = vmatpush1.msra.mxu0 %v3960
        %3990 = vmatprep.subr.mxu0 0.0
        %3991 = vmatpush1.msra.mxu0 %v3961
        %3992 = vmatprep.subr.mxu0 0.0
        %3993 = vmatpush1.msra.mxu0 %v3962
        %3994 = vmatprep.subr.mxu0 0.0
        %3995 = vmatpush1.msra.mxu0 0.0
        %3996 = vmatprep.subr.mxu0 0.0
        %3997 = vmatpush1.msra.mxu0 0.0
        %3998 = vmatprep.subr.mxu0 0.0
        %3999 = vmatpush1.msra.mxu0 0.0
        %4000 = vmatprep.subr.mxu0 0.0
        %4001 = vmatpush1.msra.mxu0 0.0
        %4002 = vmatprep.subr.mxu0 0.0
        %4003 = vmatpush1.msra.mxu0 0.0
        %4004 = vmatprep.subr.mxu0 0.0
        %4005 = vmatpush1.msra.mxu0 0.0
        %4006 = vmatprep.subr.mxu0 0.0
        %4007 = vmatpush1.msra.mxu0 0.0
        %4008 = vmatprep.subr.mxu0 0.0
        %4009 = vmatpush1.msra.mxu0 0.0
        %4010 = vmatprep.subr.mxu0 0.0
        %4011 = vmatpush1.msra.mxu0 0.0
        %4012 = vmatprep.subr.mxu0 0.0
        %4013 = vmatpush1.msra.mxu0 0.0
        %4014 = vmatprep.subr.mxu0 0.0
        %4015 = vmatpush1.msra.mxu0 0.0
        %4016 = vmatprep.subr.mxu0 0.0
        %4017 = vmatpush1.msra.mxu0 0.0
        %4018 = vmatprep.subr.mxu0 0.0
        %4019 = vmatpush1.msra.mxu0 0.0
        %4020 = vmatprep.subr.mxu0 0.0
        %4021 = vmatpush1.msra.mxu0 0.0
        %4022 = vmatprep.subr.mxu0 0.0
        %4023 = vmatpush1.msra.mxu0 0.0
        %4024 = vmatprep.subr.mxu0 0.0
        %4025 = vmatpush1.msra.mxu0 0.0
        %4026 = vmatprep.subr.mxu0 0.0
        %4027 = vmatpush1.msra.mxu0 0.0
        %4028 = vmatprep.subr.mxu0 0.0
        %4029 = vmatpush1.msra.mxu0 0.0
        %4030 = vmatprep.mubr.f32.mxu0 0.0
        %4031 = vmatmul.mubr.f32.gmra.mrb[0].mxu0 %v3964
        %v4032 = vpop.f32.mrb[0].mxu0
        %v4033 = vadd.f32 0.0, %v4032
        %v4034 = vpop.f32.mrb[0].mxu0
        %4035 = vdwg.mxu0
        %v4036 = vadd.f32 %v3946, %v4033
        %v4037 = vld [vmem:[#allocation3 + $0x6] sm:$0x1]
        %s4038 = scalar_lea.vmem %s9, 672
        %v4039 = vld [vmem:[%s4038] sm:$0xff]
        %v4040 = vld [vmem:[%s4038 + $0x8] sm:$0xff]
        %v4041 = vld [vmem:[%s4038 + $0x10] sm:$0xff]
        %v4042 = vld [vmem:[%s4038 + $0x18] sm:$0xff]
        %v4043 = vld [vmem:[%s4038 + $0x20] sm:$0xff]
        %v4044 = vld [vmem:[%s4038 + $0x28] sm:$0xff]
        %v4045 = vld [vmem:[%s4038 + $0x30] sm:$0xff]
        %v4046 = vld [vmem:[%s4038 + $0x38] sm:$0xff]
        %v4047 = vld [vmem:[%s4038 + $0x40] sm:$0xff]
        %v4048 = vld [vmem:[%s4038 + $0x48] sm:$0xff]
        %v4049 = vld [vmem:[%s4038 + $0x50] sm:$0xff]
        %v4050 = vld [vmem:[%s4038 + $0x58] sm:$0xff]
        %v4051 = vld [vmem:[%s4038 + $0x60] sm:$0xff]
        %v4052 = vld [vmem:[%s4038 + $0x68] sm:$0xff]
        %v4054 = vsel %vm3530, %v4037, 0
        %4056 = vmatprep.subr.mxu0 0.0
        %4057 = vmatpush1.msra.mxu0 %v4039
        %4058 = vmatprep.subr.mxu0 0.0
        %4059 = vmatpush1.msra.mxu0 %v4040
        %4060 = vmatprep.subr.mxu0 0.0
        %4061 = vmatpush1.msra.mxu0 %v4041
        %4062 = vmatprep.subr.mxu0 0.0
        %4063 = vmatpush1.msra.mxu0 %v4042
        %4064 = vmatprep.subr.mxu0 0.0
        %4065 = vmatpush1.msra.mxu0 %v4043
        %4066 = vmatprep.subr.mxu0 0.0
        %4067 = vmatpush1.msra.mxu0 %v4044
        %4068 = vmatprep.subr.mxu0 0.0
        %4069 = vmatpush1.msra.mxu0 %v4045
        %4070 = vmatprep.subr.mxu0 0.0
        %4071 = vmatpush1.msra.mxu0 %v4046
        %4072 = vmatprep.subr.mxu0 0.0
        %4073 = vmatpush1.msra.mxu0 %v4047
        %4074 = vmatprep.subr.mxu0 0.0
        %4075 = vmatpush1.msra.mxu0 %v4048
        %4076 = vmatprep.subr.mxu0 0.0
        %4077 = vmatpush1.msra.mxu0 %v4049
        %4078 = vmatprep.subr.mxu0 0.0
        %4079 = vmatpush1.msra.mxu0 %v4050
        %4080 = vmatprep.subr.mxu0 0.0
        %4081 = vmatpush1.msra.mxu0 %v4051
        %4082 = vmatprep.subr.mxu0 0.0
        %4083 = vmatpush1.msra.mxu0 %v4052
        %4084 = vmatprep.subr.mxu0 0.0
        %4085 = vmatpush1.msra.mxu0 0.0
        %4086 = vmatprep.subr.mxu0 0.0
        %4087 = vmatpush1.msra.mxu0 0.0
        %4088 = vmatprep.subr.mxu0 0.0
        %4089 = vmatpush1.msra.mxu0 0.0
        %4090 = vmatprep.subr.mxu0 0.0
        %4091 = vmatpush1.msra.mxu0 0.0
        %4092 = vmatprep.subr.mxu0 0.0
        %4093 = vmatpush1.msra.mxu0 0.0
        %4094 = vmatprep.subr.mxu0 0.0
        %4095 = vmatpush1.msra.mxu0 0.0
        %4096 = vmatprep.subr.mxu0 0.0
        %4097 = vmatpush1.msra.mxu0 0.0
        %4098 = vmatprep.subr.mxu0 0.0
        %4099 = vmatpush1.msra.mxu0 0.0
        %4100 = vmatprep.subr.mxu0 0.0
        %4101 = vmatpush1.msra.mxu0 0.0
        %4102 = vmatprep.subr.mxu0 0.0
        %4103 = vmatpush1.msra.mxu0 0.0
        %4104 = vmatprep.subr.mxu0 0.0
        %4105 = vmatpush1.msra.mxu0 0.0
        %4106 = vmatprep.subr.mxu0 0.0
        %4107 = vmatpush1.msra.mxu0 0.0
        %4108 = vmatprep.subr.mxu0 0.0
        %4109 = vmatpush1.msra.mxu0 0.0
        %4110 = vmatprep.subr.mxu0 0.0
        %4111 = vmatpush1.msra.mxu0 0.0
        %4112 = vmatprep.subr.mxu0 0.0
        %4113 = vmatpush1.msra.mxu0 0.0
        %4114 = vmatprep.subr.mxu0 0.0
        %4115 = vmatpush1.msra.mxu0 0.0
        %4116 = vmatprep.subr.mxu0 0.0
        %4117 = vmatpush1.msra.mxu0 0.0
        %4118 = vmatprep.subr.mxu0 0.0
        %4119 = vmatpush1.msra.mxu0 0.0
        %4120 = vmatprep.mubr.f32.mxu0 0.0
        %4121 = vmatmul.mubr.f32.gmra.mrb[0].mxu0 %v4054
        %v4122 = vpop.f32.mrb[0].mxu0
        %v4123 = vadd.f32 0.0, %v4122
        %v4124 = vpop.f32.mrb[0].mxu0
        %4125 = vdwg.mxu0
        %v4126 = vadd.f32 %v4036, %v4123
        %v4127 = vld [vmem:[%s10] sm:$0x1]
        %v4128 = vadd.f32 %v4126, %v4127
        %vm4129 = vcmask 73728
        %4130 = vst.msk [vmem:[%s378] sm:$0x1] %vm4129, %v4128
        %s4131 = sand.u32 %s269, 1
        %s4132 = scalar_lea.sflag [#allocation5], %s4131
        %s4133 = sand.u32 %s269, 1
        %s4134 = scalar_lea.vmem [#allocation4], %s4133
        // Predicated region
        $region65: #{cnn_forward.1} parent=63 // pred_check
          %p4135 = pneg %p279
        $region66: #{cnn_forward.1} parent=63 // pred_check_branch
          %4137 = sbr.rel (%p4135) target = $region68
        $region67: #{cnn_forward.1} parent=63 // pred_region
          %s4139 = ssub.s32 16, 16
          %4140 = vsyncadd %s4132, %s4139
          %s4141 = smul.addr %s25, 16
          %s4142 = scalar_lea.hbm %s11, %s4141
          %s4144 = sshll.u32 %s4134, 4
          %s4145 = int_to_ptr.vmem [resolvable:$true] %s4144
          %4147 = dma.vmem_to_hbm [thread:$0]  %s4145, 16, %s4142, %s4132
        $region68: #{cnn_forward.1} parent=63 // pred_fallthru
          _
      $region64: #{cnn_forward.1} parent=5 // pred_fallthru
        _
      %p4148 = scmp.le.s32.totalorder 2, %s20
      // Predicated region
      $region69: #{cnn_forward.1} parent=5 // pred_check
        %p4149 = pneg %p4148
      $region70: #{cnn_forward.1} parent=5 // pred_check_branch
        %4151 = sbr.rel (%p4149) target = $region72
      $region71: #{cnn_forward.1} parent=5 // pred_region
        %s4152 = ssub.s32 %s20, 2
        // Predicated region
        $region73: #{cnn_forward.1} parent=71 // pred_check
          %p4153 = pneg %p285
        $region74: #{cnn_forward.1} parent=71 // pred_check_branch
          %4155 = sbr.rel (%p4153) target = $region76
        $region75: #{cnn_forward.1} parent=71 // pred_region
          %s4156 = sand.u32 %s270, 1
          %s4157 = scalar_lea.sflag [#allocation5], %s4156
          %s4158 = sand.u32 %s270, 1
          %s4159 = scalar_lea.vmem [#allocation4], %s4158
          %4160 = dma.done %s4157, 16
        $region76: #{cnn_forward.1} parent=71 // pred_fallthru
          _
      $region72: #{cnn_forward.1} parent=5 // pred_fallthru
        _
    $region6: #{cnn_forward.1} parent=1 // loop_footer
      %s24 = sadd.s32 1, %s20
    $region7: #{cnn_forward.1} parent=1 // loop_footer_branch
      %19 = sbr.rel target = $region3
    $region8: #{cnn_forward.1} parent=1 // loop_exit
      _
    %4161 = vsyncpa [#allocation5], 1
    %s4162 = scalar_lea.sflag [#allocation5], 1
    %4163 = vsyncpa %s4162, 1

</llo_original>
